<compile_context>
chip_gen: v6e
topology: v6e:2x2x1
jax: 0.10.0
libtpu: 0.0.40
codegen_flags: <defaults>
</compile_context>

<pallas_src>
import functools
import math

import jax
import jax.numpy as jnp
from jax.experimental import pallas as pl
from jax.experimental.pallas import tpu as pltpu


_VMEM_FLOOR = 16 * 1024 * 1024          # never request less than any default
_VMEM_HEADROOM = 4 * 1024 * 1024        # slack for compiler temporaries
_SINGLE_BUFFER_MIN_BYTES = 1 << 20      # only single-buffer "big" weights


# ---------------------------------------------------------------------------
# Small helpers
# ---------------------------------------------------------------------------
def _const_block_spec(shape):
    """BlockSpec for a grid-invariant operand (weights / biases).

    Review item: constant-index blocks don't need double-buffering; request a
    single buffer (pipeline_mode=pl.Buffered(1)) to halve their VMEM footprint
    at production sizes (matters most on v7x's 64 MiB VMEM).  Tiny blocks skip
    this so demo shapes never depend on the pipeline_mode API.
    """
    nbytes = 4 * math.prod(shape)
    index_map = lambda c: (0,) * len(shape)
    if nbytes >= _SINGLE_BUFFER_MIN_BYTES:
        try:
            return pl.BlockSpec(shape, index_map, pipeline_mode=pl.Buffered(1))
        except Exception:   # older BlockSpec without pipeline_mode support
            pass
    return pl.BlockSpec(shape, index_map)


def _vmem_limit(needed_bytes):
    """Explicit scoped-VMEM budget: >= platform default, <= 80% of capacity."""
    try:
        cap = int(pltpu.get_tpu_info().vmem_capacity_bytes)
    except Exception:
        cap = 128 * 1024 * 1024
    return int(min(max(_VMEM_FLOOR, needed_bytes + _VMEM_HEADROOM),
                   int(0.8 * cap)))


def _plan_chunks(T, B, max_chunk):
    """Pick (Tc, nc, T_pad).

    Keeps the per-chunk row block (Tc*B) sublane-aligned (multiple of 8)
    whenever the grid has more than one step, and pads T minimally instead of
    degrading to Tc=1 for awkward sequence lengths (review item)."""
    nc = max(1, -(-T // max_chunk))
    if nc == 1:
        return T, 1, T
    m = 8 // math.gcd(B, 8)
    Tc = -(-T // nc)
    Tc = -(-Tc // m) * m
    nc = -(-T // Tc)
    if nc <= 1:
        return T, 1, T
    return Tc, nc, nc * Tc


def _gate_math(gates, c_prev, H):
    """PyTorch LSTM gate order: i, f, g, o."""
    i_g = jax.nn.sigmoid(gates[:, 0:H])
    f_g = jax.nn.sigmoid(gates[:, H:2 * H])
    g_g = jnp.tanh(gates[:, 2 * H:3 * H])
    o_g = jax.nn.sigmoid(gates[:, 3 * H:4 * H])
    c_new = f_g * c_prev + i_g * g_g
    h_new = o_g * jnp.tanh(c_new)
    return h_new, c_new


# ---------------------------------------------------------------------------
# Fused bidirectional LSTM layer kernel
#   - per-chunk input projection for both directions (bias folded in)
#   - block-diagonal (2B, 2H) hidden state -> ONE matmul per timestep
#   - (h, c) carried in vregs, scratch written once per chunk
# ---------------------------------------------------------------------------
def _make_bilstm_layer_kernel(nf, Tc, B, H, T_real, T_pad, nc, unroll):
    mask_rev = (T_pad != T_real)

    def kernel(*refs):
        i0 = 0
        xf_refs = refs[i0:i0 + nf]; i0 += nf          # forward-order chunks
        xr_refs = refs[i0:i0 + nf]; i0 += nf          # reverse-order chunks
        wf_refs = refs[i0:i0 + nf]; i0 += nf          # W_ih^T splits (fwd)
        wr_refs = refs[i0:i0 + nf]; i0 += nf          # W_ih^T splits (rev)
        bf_ref, br_ref, whh_ref = refs[i0:i0 + 3]; i0 += 3
        outf_ref, outr_ref = refs[i0:i0 + 2]; i0 += 2
        h_sc, c_sc, xgf_sc, xgr_sc = refs[i0:i0 + 4]

        c_idx = pl.program_id(0)

        @pl.when(c_idx == 0)
        def _init():
            h_sc[...] = jnp.zeros_like(h_sc)
            c_sc[...] = jnp.zeros_like(c_sc)

        # Hoisted per-chunk input projection (both directions).  (Tc*B, D) @
        # (D, 4H) is a good MXU shape; xg stays in VMEM (no HBM round-trip).
        def project(x_refs, w_refs, b_ref, xg_sc):
            acc = jnp.dot(x_refs[0][...], w_refs[0][...],
                          preferred_element_type=jnp.float32)
            for k in range(1, nf):
                acc = acc + jnp.dot(x_refs[k][...], w_refs[k][...],
                                    preferred_element_type=jnp.float32)
            xg_sc[...] = acc + b_ref[...]

        project(xf_refs, wf_refs, bf_ref, xgf_sc)
        project(xr_refs, wr_refs, br_ref, xgr_sc)

        # Hoisted loop invariants.
        whh = whh_ref[...]                                      # (2H, 4H)
        zeros_bh = jnp.zeros((B, H), jnp.float32)
        ones_bh = jnp.ones((B, H), jnp.float32)
        bd_mask = jnp.concatenate(                              # (2B, 2H)
            [jnp.concatenate([ones_bh, zeros_bh], axis=1),
             jnp.concatenate([zeros_bh, ones_bh], axis=1)], axis=0)

        def step(i, carry):
            h_bd, c_all = carry          # (2B, 2H) block-diag, (2B, H)
            j = Tc - 1 - i
            off_f = pl.multiple_of(i * B, B)
            off_r = pl.multiple_of(j * B, B)
            # ONE fused MXU matmul for both directions.
            hg = jnp.dot(h_bd, whh, preferred_element_type=jnp.float32)
            xg = jnp.concatenate([xgf_sc[pl.ds(off_f, B), :],
                                  xgr_sc[pl.ds(off_r, B), :]], axis=0)
            h_new, c_new = _gate_math(xg + hg, c_all, H)
            if mask_rev:
                # Reverse direction: padded timesteps (t >= T_real) are no-ops
                # so the reverse state is not polluted by the padding.
                t_rev = (nc - 1 - c_idx) * Tc + j
                valid = t_rev < T_real
                h_rev = jnp.where(valid, h_new[B:], h_bd[B:, H:])
                c_rev = jnp.where(valid, c_new[B:], c_all[B:])
                h_new = jnp.concatenate([h_new[:B], h_rev], axis=0)
                c_new = jnp.concatenate([c_new[:B], c_rev], axis=0)
            outf_ref[pl.ds(off_f, B), :] = h_new[:B].astype(outf_ref.dtype)
            outr_ref[pl.ds(off_r, B), :] = h_new[B:].astype(outr_ref.dtype)
            h_bd_new = bd_mask * jnp.concatenate([h_new, h_new], axis=1)
            return (h_bd_new, c_new)

        h_bd_T, c_T = jax.lax.fori_loop(
            0, Tc, step, (h_sc[...], c_sc[...]), unroll=unroll)
        # Scratch written ONCE per chunk (state lives in vregs inside loop).
        h_sc[...] = h_bd_T
        c_sc[...] = c_T

    return kernel


def _bilstm_layer_call(feats, wih_f, wih_r, bias_f, bias_r, whh_stacked, *,
                       T_real, T_pad, Tc, nc, B, H, unroll=True):
    """feats: list of 2-D time-major halves, each (T_pad*B, D_k).
    Returns (out_f, out_r), each (T_pad*B, H) float32."""
    nf = len(feats)
    G = 4 * H
    rows = Tc * B

    in_specs, args = [], []
    stream_bytes = 0
    for f in feats:                                   # forward-order chunks
        D = int(f.shape[1])
        in_specs.append(pl.BlockSpec((rows, D), lambda c: (c, 0)))
        args.append(f)
        stream_bytes += rows * D * 4
    for f in feats:                                   # reverse-order chunks
        D = int(f.shape[1])
        in_specs.append(pl.BlockSpec((rows, D), lambda c: (nc - 1 - c, 0)))
        args.append(f)
        stream_bytes += rows * D * 4

    const_bytes = 0
    consts = (list(wih_f) + list(wih_r)
              + [bias_f.reshape(1, G), bias_r.reshape(1, G), whh_stacked])
    for w in consts:
        w = w.astype(jnp.float32)
        shape = tuple(int(d) for d in w.shape)
        in_specs.append(_const_block_spec(shape))
        args.append(w)
        const_bytes += 4 * math.prod(shape)

    out_specs = (pl.BlockSpec((rows, H), lambda c: (c, 0)),
                 pl.BlockSpec((rows, H), lambda c: (nc - 1 - c, 0)))
    out_shape = (jax.ShapeDtypeStruct((T_pad * B, H), jnp.float32),
                 jax.ShapeDtypeStruct((T_pad * B, H), jnp.float32))
    stream_bytes += 2 * rows * H * 4

    scratch = [pltpu.VMEM((2 * B, 2 * H), jnp.float32),   # block-diag hidden
               pltpu.VMEM((2 * B, H), jnp.float32),       # c-state (f ; r)
               pltpu.VMEM((rows, G), jnp.float32),        # xg forward chunk
               pltpu.VMEM((rows, G), jnp.float32)]        # xg reverse chunk
    scratch_bytes = (2 * B * 2 * H + 2 * B * H + 2 * rows * G) * 4

    needed = 2 * stream_bytes + 2 * const_bytes + scratch_bytes

    kernel = _make_bilstm_layer_kernel(nf, Tc, B, H, T_real, T_pad, nc, unroll)
    out_f, out_r = pl.pallas_call(
        kernel,
        out_shape=out_shape,
        grid_spec=pltpu.PrefetchScalarGridSpec(
            num_scalar_prefetch=0,
            grid=(nc,),
            in_specs=in_specs,
            out_specs=out_specs,
            scratch_shapes=scratch),
        compiler_params=pltpu.CompilerParams(
            dimension_semantics=("arbitrary",),      # serial: state carry
            vmem_limit_bytes=_vmem_limit(needed)),
    )(*args)
    return out_f, out_r


# ---------------------------------------------------------------------------
# Unidirectional variant (bidirectional=False); same fusion ideas.
# ---------------------------------------------------------------------------
def _make_lstm_layer_kernel(nf, Tc, B, H, unroll):
    def kernel(*refs):
        i0 = 0
        x_refs = refs[i0:i0 + nf]; i0 += nf
        w_refs = refs[i0:i0 + nf]; i0 += nf
        b_ref, whh_ref = refs[i0:i0 + 2]; i0 += 2
        out_ref = refs[i0]; i0 += 1
        h_sc, c_sc, xg_sc = refs[i0:i0 + 3]

        @pl.when(pl.program_id(0) == 0)
        def _init():
            h_sc[...] = jnp.zeros_like(h_sc)
            c_sc[...] = jnp.zeros_like(c_sc)

        acc = jnp.dot(x_refs[0][...], w_refs[0][...],
                      preferred_element_type=jnp.float32)
        for k in range(1, nf):
            acc = acc + jnp.dot(x_refs[k][...], w_refs[k][...],
                                preferred_element_type=jnp.float32)
        xg_sc[...] = acc + b_ref[...]

        whh = whh_ref[...]

        def step(i, carry):
            h, c = carry
            off = pl.multiple_of(i * B, B)
            gates = xg_sc[pl.ds(off, B), :] + jnp.dot(
                h, whh, preferred_element_type=jnp.float32)
            h_new, c_new = _gate_math(gates, c, H)
            out_ref[pl.ds(off, B), :] = h_new.astype(out_ref.dtype)
            return (h_new, c_new)

        h_T, c_T = jax.lax.fori_loop(
            0, Tc, step, (h_sc[...], c_sc[...]), unroll=unroll)
        h_sc[...] = h_T
        c_sc[...] = c_T

    return kernel


def _lstm_layer_call(feats, wih, bias, whh_t, *, T_pad, Tc, nc, B, H,
                     unroll=True):
    nf = len(feats)
    G = 4 * H
    rows = Tc * B

    in_specs, args = [], []
    stream_bytes = 0
    for f in feats:
        D = int(f.shape[1])
        in_specs.append(pl.BlockSpec((rows, D), lambda c: (c, 0)))
        args.append(f)
        stream_bytes += rows * D * 4
    const_bytes = 0
    for w in list(wih) + [bias.reshape(1, G), whh_t]:
        w = w.astype(jnp.float32)
        shape = tuple(int(d) for d in w.shape)
        in_specs.append(_const_block_spec(shape))
        args.append(w)
        const_bytes += 4 * math.prod(shape)
    stream_bytes += rows * H * 4

    scratch = [pltpu.VMEM((B, H), jnp.float32),
               pltpu.VMEM((B, H), jnp.float32),
               pltpu.VMEM((rows, G), jnp.float32)]
    scratch_bytes = (2 * B * H + rows * G) * 4
    needed = 2 * stream_bytes + 2 * const_bytes + scratch_bytes

    out = pl.pallas_call(
        _make_lstm_layer_kernel(nf, Tc, B, H, unroll),
        out_shape=jax.ShapeDtypeStruct((T_pad * B, H), jnp.float32),
        grid_spec=pltpu.PrefetchScalarGridSpec(
            num_scalar_prefetch=0,
            grid=(nc,),
            in_specs=in_specs,
            out_specs=pl.BlockSpec((rows, H), lambda c: (c, 0)),
            scratch_shapes=scratch),
        compiler_params=pltpu.CompilerParams(
            dimension_semantics=("arbitrary",),
            vmem_limit_bytes=_vmem_limit(needed)),
    )(*args)
    return out


# ---------------------------------------------------------------------------
# Fused linear (final classifier):  y = sum_k inputs[k] @ weights[k] + bias
# Tiled over rows; consumes the direction halves directly (no concat).
# ---------------------------------------------------------------------------
def _make_fused_linear_kernel(n_in):
    def kernel(*refs):
        x_refs = refs[:n_in]
        w_refs = refs[n_in:2 * n_in]
        b_ref = refs[2 * n_in]
        out_ref = refs[2 * n_in + 1]
        acc = jnp.dot(x_refs[0][...], w_refs[0][...],
                      preferred_element_type=jnp.float32)
        for k in range(1, n_in):
            acc = acc + jnp.dot(x_refs[k][...], w_refs[k][...],
                                preferred_element_type=jnp.float32)
        out_ref[...] = (acc + b_ref[...]).astype(out_ref.dtype)
    return kernel


def fused_linear(inputs, weights, bias, *, max_rows=512):
    """inputs[k]: (N, Dk); weights[k]: (Dk, F); bias: (F,) -> (N, F) f32."""
    n_in = len(inputs)
    N = int(inputs[0].shape[0])
    F = int(bias.shape[0])
    tm = N if N <= max_rows else max_rows
    grid = (pl.cdiv(N, tm),)

    in_specs, args = [], []
    stream_bytes = 0
    for x in inputs:
        D = int(x.shape[1])
        in_specs.append(pl.BlockSpec((tm, D), lambda i: (i, 0)))
        args.append(x)
        stream_bytes += tm * D * 4
    const_bytes = 0
    for w in weights:
        shape = tuple(int(d) for d in w.shape)
        in_specs.append(_const_block_spec(shape))
        args.append(w.astype(jnp.float32))
        const_bytes += 4 * math.prod(shape)
    in_specs.append(_const_block_spec((1, F)))
    args.append(bias.reshape(1, F).astype(jnp.float32))
    const_bytes += 4 * F
    stream_bytes += tm * F * 4

    needed = 2 * stream_bytes + 2 * const_bytes
    out = pl.pallas_call(
        _make_fused_linear_kernel(n_in),
        out_shape=jax.ShapeDtypeStruct((N, F), jnp.float32),
        grid_spec=pltpu.PrefetchScalarGridSpec(
            num_scalar_prefetch=0,
            grid=grid,
            in_specs=in_specs,
            out_specs=pl.BlockSpec((tm, F), lambda i: (i, 0))),
        compiler_params=pltpu.CompilerParams(
            dimension_semantics=("parallel",),
            vmem_limit_bytes=_vmem_limit(needed)),
    )(*args)
    return out


# ---------------------------------------------------------------------------
# Full forward pass (eval mode): dropout (identity) -> multi-layer BiLSTM -> fc
# ---------------------------------------------------------------------------
def sentence_tagging_bilstm_forward(src, params, *, nlayers, bidirectional=True,
                                    max_chunk=32, max_rows=512, unroll=True):
    # src: (B, T, E), batch-first like nn.LSTM(batch_first=True).
    B, T, E = (int(d) for d in src.shape)
    H = int(params["lstm"][0]["w_hh"].shape[1])
    Tc, nc, T_pad = _plan_chunks(T, B, max_chunk)

    x_tm = jnp.transpose(src, (1, 0, 2)).astype(jnp.float32)       # (T, B, E)
    if T_pad != T:
        # Pad at the END: forward consumes padding last (outputs dropped),
        # the reverse direction masks padded steps inside the kernel.
        x_tm = jnp.pad(x_tm, ((0, T_pad - T), (0, 0), (0, 0)))
    feats = [x_tm.reshape(T_pad * B, E)]        # time-major 2-D "halves"

    for layer in range(nlayers):
        p = params["lstm"][layer]
        if bidirectional:
            # Split W_ih over the previous layer's halves (no (T,B,2H) concat).
            wih_f, wih_r = [], []
            for suffix, dst in (("", wih_f), ("_rev", wih_r)):
                w_ih = p["w_ih" + suffix]                       # (4H, in_dim)
                offs = 0
                for f in feats:
                    d = int(f.shape[1])
                    dst.append(jnp.transpose(w_ih[:, offs:offs + d]))  # (d,4H)
                    offs += d
            bias_f = p["b_ih"] + p["b_hh"]
            bias_r = p["b_ih_rev"] + p["b_hh_rev"]
            whh_stacked = jnp.concatenate(
                [jnp.transpose(p["w_hh"]), jnp.transpose(p["w_hh_rev"])],
                axis=0)                                          # (2H, 4H)
            out_f, out_r = _bilstm_layer_call(
                feats, wih_f, wih_r, bias_f, bias_r, whh_stacked,
                T_real=T, T_pad=T_pad, Tc=Tc, nc=nc, B=B, H=H, unroll=unroll)
            feats = [out_f, out_r]
        else:
            w_ih = p["w_ih"]
            offs, wih = 0, []
            for f in feats:
                d = int(f.shape[1])
                wih.append(jnp.transpose(w_ih[:, offs:offs + d]))
                offs += d
            out_f = _lstm_layer_call(
                feats, wih, p["b_ih"] + p["b_hh"], jnp.transpose(p["w_hh"]),
                T_pad=T_pad, Tc=Tc, nc=nc, B=B, H=H, unroll=unroll)
            feats = [out_f]

    # Final classifier fused over the direction halves; drop padded rows first.
    feats_fc = [f[:T * B] for f in feats]
    fc_w = params["fc_w"]                                        # (L, D_out)
    L = int(fc_w.shape[0])
    offs, fc_w_k = 0, []
    for f in feats_fc:
        d = int(f.shape[1])
        fc_w_k.append(jnp.transpose(fc_w[:, offs:offs + d]))     # (d, L)
        offs += d
    logits_flat = fused_linear(feats_fc, fc_w_k, params["fc_b"],
                               max_rows=max_rows)                # (T*B, L)
    # Only the small (T, B, L) logits get transposed to batch-first.
    return jnp.transpose(logits_flat.reshape(T, B, L), (1, 0, 2))  # (B, T, L)


# ---------------------------------------------------------------------------
# Pure-JAX reference (for correctness check)
# ---------------------------------------------------------------------------
def _ref_lstm_dir(x_tbf, w_ih, w_hh, b_ih, b_hh, reverse):
    T, B, _ = x_tbf.shape
    H = w_hh.shape[1]
    xs = x_tbf[::-1] if reverse else x_tbf

    def step(carry, x_t):
        h, c = carry
        gates = x_t @ w_ih.T + h @ w_hh.T + b_ih + b_hh
        i = jax.nn.sigmoid(gates[:, :H])
        f = jax.nn.sigmoid(gates[:, H:2 * H])
        g = jnp.tanh(gates[:, 2 * H:3 * H])
        o = jax.nn.sigmoid(gates[:, 3 * H:4 * H])
        c = f * c + i * g
        h = o * jnp.tanh(c)
        return (h, c), h

    init = (jnp.zeros((B, H), jnp.float32), jnp.zeros((B, H), jnp.float32))
    _, hs = jax.lax.scan(step, init, xs)
    return hs[::-1] if reverse else hs


def _ref_forward(src, params, *, nlayers, bidirectional=True):
    x = jnp.transpose(src, (1, 0, 2)).astype(jnp.float32)
    for layer in range(nlayers):
        p = params["lstm"][layer]
        outs = [_ref_lstm_dir(x, p["w_ih"], p["w_hh"], p["b_ih"], p["b_hh"],
                              False)]
        if bidirectional:
            outs.append(_ref_lstm_dir(x, p["w_ih_rev"], p["w_hh_rev"],
                                      p["b_ih_rev"], p["b_hh_rev"], True))
        x = jnp.concatenate(outs, axis=-1)
    lstm_out = jnp.transpose(x, (1, 0, 2))
    return lstm_out @ params["fc_w"].T + params["fc_b"]


# ---------------------------------------------------------------------------
# Deterministic parameter init (PyTorch-style uniform(-1/sqrt(H), 1/sqrt(H)))
# ---------------------------------------------------------------------------
def init_params(key, *, embedding_dim, hidden_dim, nlayers, num_labels,
                bidirectional=True):
    H = hidden_dim
    k = 1.0 / math.sqrt(H)
    num_dirs = 2 if bidirectional else 1
    params = {"lstm": []}
    for layer in range(nlayers):
        in_dim = embedding_dim if layer == 0 else H * num_dirs
        layer_p = {}
        for suffix in ([""] if not bidirectional else ["", "_rev"]):
            key, k1, k2, k3, k4 = jax.random.split(key, 5)
            layer_p["w_ih" + suffix] = jax.random.uniform(
                k1, (4 * H, in_dim), jnp.float32, -k, k)
            layer_p["w_hh" + suffix] = jax.random.uniform(
                k2, (4 * H, H), jnp.float32, -k, k)
            layer_p["b_ih" + suffix] = jax.random.uniform(
                k3, (4 * H,), jnp.float32, -k, k)
            layer_p["b_hh" + suffix] = jax.random.uniform(
                k4, (4 * H,), jnp.float32, -k, k)
        params["lstm"].append(layer_p)
    out_dim = H * num_dirs
    kf = 1.0 / math.sqrt(out_dim)
    key, k1, k2 = jax.random.split(key, 3)
    params["fc_w"] = jax.random.uniform(k1, (num_labels, out_dim),
                                        jnp.float32, -kf, kf)
    params["fc_b"] = jax.random.uniform(k2, (num_labels,),
                                        jnp.float32, -kf, kf)
    return params


if __name__ == "__main__":
    B, T, E, H, NLAYERS, NUM_LABELS = 2, 8, 32, 32, 2, 8
    BIDIR = True

    key = jax.random.PRNGKey(0)
    key, pkey, xkey, xkey2 = jax.random.split(key, 4)
    params = init_params(
        pkey, embedding_dim=E, hidden_dim=H, nlayers=NLAYERS,
        num_labels=NUM_LABELS, bidirectional=BIDIR)

    # --- test 1: T divisible by the chunk (single-chunk grid) ---------------
    src = jax.random.normal(xkey, (B, T, E), jnp.float32)   # (batch, seq, emb)
    fwd = jax.jit(functools.partial(
        sentence_tagging_bilstm_forward, nlayers=NLAYERS, bidirectional=BIDIR))
    logits = jax.block_until_ready(fwd(src, params))
    ref = jax.block_until_ready(
        _ref_forward(src, params, nlayers=NLAYERS, bidirectional=BIDIR))
    assert logits.shape == (B, T, NUM_LABELS), logits.shape
    if not bool(jnp.allclose(logits, ref, rtol=1e-4, atol=1e-4)):
        raise AssertionError("Pallas BiLSTM output mismatch (test 1)")

    # --- test 2: ragged T exercising the padded-chunk / reverse-mask path ---
    T2 = 7
    src2 = jax.random.normal(xkey2, (B, T2, E), jnp.float32)
    fwd2 = jax.jit(functools.partial(
        sentence_tagging_bilstm_forward, nlayers=NLAYERS, bidirectional=BIDIR,
        max_chunk=4))
    logits2 = jax.block_until_ready(fwd2(src2, params))
    ref2 = jax.block_until_ready(
        _ref_forward(src2, params, nlayers=NLAYERS, bidirectional=BIDIR))
    assert logits2.shape == (B, T2, NUM_LABELS), logits2.shape
    if not bool(jnp.allclose(logits2, ref2, rtol=1e-4, atol=1e-4)):
        raise AssertionError("Pallas BiLSTM output mismatch (test 2, ragged T)")

    print("KERNEL_OK")
</pallas_src>

<mosaic_0001>
module attributes {stable_mosaic.version = 11 : i64} {
  func.func @kernel(%arg0: i32, %arg1: memref<16x32xf32, #tpu.memory_space<vmem>>, %arg2: memref<16x32xf32, #tpu.memory_space<vmem>>, %arg3: memref<16x32xf32, #tpu.memory_space<vmem>>, %arg4: memref<16x32xf32, #tpu.memory_space<vmem>>, %arg5: memref<32x128xf32, #tpu.memory_space<vmem>>, %arg6: memref<32x128xf32, #tpu.memory_space<vmem>>, %arg7: memref<32x128xf32, #tpu.memory_space<vmem>>, %arg8: memref<32x128xf32, #tpu.memory_space<vmem>>, %arg9: memref<1x128xf32, #tpu.memory_space<vmem>>, %arg10: memref<1x128xf32, #tpu.memory_space<vmem>>, %arg11: memref<64x128xf32, #tpu.memory_space<vmem>>, %arg12: memref<16x32xf32, #tpu.memory_space<vmem>>, %arg13: memref<16x32xf32, #tpu.memory_space<vmem>>, %arg14: memref<4x64xf32, #tpu.memory_space<vmem>>, %arg15: memref<4x32xf32, #tpu.memory_space<vmem>>, %arg16: memref<16x128xf32, #tpu.memory_space<vmem>>, %arg17: memref<16x128xf32, #tpu.memory_space<vmem>>) attributes {dimension_semantics = [#tpu.dimension_semantics<arbitrary>], iteration_bounds = array<i64: 1>, scalar_prefetch = 0 : i64, scratch_operands = 4 : i64, tpu.core_type = #tpu.core_type<tc>, window_params = [{transform_indices = @transform_0, window_bounds = array<i64: 16, 32>}, {transform_indices = @transform_1, window_bounds = array<i64: 16, 32>}, {transform_indices = @transform_2, window_bounds = array<i64: 16, 32>}, {transform_indices = @transform_3, window_bounds = array<i64: 16, 32>}, {pipeline_mode = #tpu.pipeline_mode<synchronous>, transform_indices = @transform_4, window_bounds = array<i64: 32, 128>}, {pipeline_mode = #tpu.pipeline_mode<synchronous>, transform_indices = @transform_5, window_bounds = array<i64: 32, 128>}, {pipeline_mode = #tpu.pipeline_mode<synchronous>, transform_indices = @transform_6, window_bounds = array<i64: 32, 128>}, {pipeline_mode = #tpu.pipeline_mode<synchronous>, transform_indices = @transform_7, window_bounds = array<i64: 32, 128>}, {pipeline_mode = #tpu.pipeline_mode<synchronous>, transform_indices = @transform_8, window_bounds = array<i64: 1, 128>}, {pipeline_mode = #tpu.pipeline_mode<synchronous>, transform_indices = @transform_9, window_bounds = array<i64: 1, 128>}, {pipeline_mode = #tpu.pipeline_mode<synchronous>, transform_indices = @transform_10, window_bounds = array<i64: 64, 128>}, {transform_indices = @transform_11, window_bounds = array<i64: 16, 32>}, {transform_indices = @transform_12, window_bounds = array<i64: 16, 32>}]} {
    %c0_i32 = arith.constant 0 : i32
    %0 = arith.cmpi eq, %arg0, %c0_i32 : i32
    %1 = arith.extui %0 : i1 to i32
    %c0_i32_0 = arith.constant 0 : i32
    %2 = arith.cmpi ne, %1, %c0_i32_0 : i32
    scf.if %2 {
      %cst_128 = arith.constant 0.000000e+00 : f32
      %395 = vector.broadcast %cst_128 : f32 to vector<4x64xf32>
      %c0_129 = arith.constant 0 : index
      %c0_130 = arith.constant 0 : index
      %396 = vector.load %arg14[%c0_129, %c0_130] : memref<4x64xf32, #tpu.memory_space<vmem>>, vector<4x64xf32>
      tpu.vector_store %arg14[%c0_129, %c0_130], %395 {strides = array<i32>} : memref<4x64xf32, #tpu.memory_space<vmem>>, vector<4x64xf32>,
      %cst_131 = arith.constant 0.000000e+00 : f32
      %397 = vector.broadcast %cst_131 : f32 to vector<4x32xf32>
      %c0_132 = arith.constant 0 : index
      %c0_133 = arith.constant 0 : index
      %398 = vector.load %arg15[%c0_132, %c0_133] : memref<4x32xf32, #tpu.memory_space<vmem>>, vector<4x32xf32>
      tpu.vector_store %arg15[%c0_132, %c0_133], %397 {strides = array<i32>} : memref<4x32xf32, #tpu.memory_space<vmem>>, vector<4x32xf32>,
    } else {
    }
    %c0 = arith.constant 0 : index
    %c0_1 = arith.constant 0 : index
    %3 = vector.load %arg1[%c0, %c0_1] : memref<16x32xf32, #tpu.memory_space<vmem>>, vector<16x32xf32>
    %c0_2 = arith.constant 0 : index
    %c0_3 = arith.constant 0 : index
    %4 = vector.load %arg5[%c0_2, %c0_3] : memref<32x128xf32, #tpu.memory_space<vmem>>, vector<32x128xf32>
    %cst = arith.constant dense<0.000000e+00> : vector<16x128xf32>
    %5 = tpu.matmul %3, %4, %cst {dimension_numbers = #tpu.dot_dimension_numbers<[1], [0], [0], [1], [0, 0, 1, 1], [], []>} : vector<16x32xf32>, vector<32x128xf32>, vector<16x128xf32> -> vector<16x128xf32>
    %c0_4 = arith.constant 0 : index
    %c0_5 = arith.constant 0 : index
    %6 = vector.load %arg2[%c0_4, %c0_5] : memref<16x32xf32, #tpu.memory_space<vmem>>, vector<16x32xf32>
    %c0_6 = arith.constant 0 : index
    %c0_7 = arith.constant 0 : index
    %7 = vector.load %arg6[%c0_6, %c0_7] : memref<32x128xf32, #tpu.memory_space<vmem>>, vector<32x128xf32>
    %cst_8 = arith.constant dense<0.000000e+00> : vector<16x128xf32>
    %8 = tpu.matmul %6, %7, %cst_8 {dimension_numbers = #tpu.dot_dimension_numbers<[1], [0], [0], [1], [0, 0, 1, 1], [], []>} : vector<16x32xf32>, vector<32x128xf32>, vector<16x128xf32> -> vector<16x128xf32>
    %9 = arith.addf %5, %8 : vector<16x128xf32>
    %c0_9 = arith.constant 0 : index
    %c0_10 = arith.constant 0 : index
    %10 = vector.load %arg9[%c0_9, %c0_10] : memref<1x128xf32, #tpu.memory_space<vmem>>, vector<1x128xf32>
    %11 = vector.broadcast %10 : vector<1x128xf32> to vector<16x128xf32>
    %12 = arith.addf %9, %11 : vector<16x128xf32>
    %c0_11 = arith.constant 0 : index
    %c0_12 = arith.constant 0 : index
    %13 = vector.load %arg16[%c0_11, %c0_12] : memref<16x128xf32, #tpu.memory_space<vmem>>, vector<16x128xf32>
    tpu.vector_store %arg16[%c0_11, %c0_12], %12 {strides = array<i32>} : memref<16x128xf32, #tpu.memory_space<vmem>>, vector<16x128xf32>,
    %c0_13 = arith.constant 0 : index
    %c0_14 = arith.constant 0 : index
    %14 = vector.load %arg3[%c0_13, %c0_14] : memref<16x32xf32, #tpu.memory_space<vmem>>, vector<16x32xf32>
    %c0_15 = arith.constant 0 : index
    %c0_16 = arith.constant 0 : index
    %15 = vector.load %arg7[%c0_15, %c0_16] : memref<32x128xf32, #tpu.memory_space<vmem>>, vector<32x128xf32>
    %cst_17 = arith.constant dense<0.000000e+00> : vector<16x128xf32>
    %16 = tpu.matmul %14, %15, %cst_17 {dimension_numbers = #tpu.dot_dimension_numbers<[1], [0], [0], [1], [0, 0, 1, 1], [], []>} : vector<16x32xf32>, vector<32x128xf32>, vector<16x128xf32> -> vector<16x128xf32>
    %c0_18 = arith.constant 0 : index
    %c0_19 = arith.constant 0 : index
    %17 = vector.load %arg4[%c0_18, %c0_19] : memref<16x32xf32, #tpu.memory_space<vmem>>, vector<16x32xf32>
    %c0_20 = arith.constant 0 : index
    %c0_21 = arith.constant 0 : index
    %18 = vector.load %arg8[%c0_20, %c0_21] : memref<32x128xf32, #tpu.memory_space<vmem>>, vector<32x128xf32>
    %cst_22 = arith.constant dense<0.000000e+00> : vector<16x128xf32>
    %19 = tpu.matmul %17, %18, %cst_22 {dimension_numbers = #tpu.dot_dimension_numbers<[1], [0], [0], [1], [0, 0, 1, 1], [], []>} : vector<16x32xf32>, vector<32x128xf32>, vector<16x128xf32> -> vector<16x128xf32>
    %20 = arith.addf %16, %19 : vector<16x128xf32>
    %c0_23 = arith.constant 0 : index
    %c0_24 = arith.constant 0 : index
    %21 = vector.load %arg10[%c0_23, %c0_24] : memref<1x128xf32, #tpu.memory_space<vmem>>, vector<1x128xf32>
    %22 = vector.broadcast %21 : vector<1x128xf32> to vector<16x128xf32>
    %23 = arith.addf %20, %22 : vector<16x128xf32>
    %c0_25 = arith.constant 0 : index
    %c0_26 = arith.constant 0 : index
    %24 = vector.load %arg17[%c0_25, %c0_26] : memref<16x128xf32, #tpu.memory_space<vmem>>, vector<16x128xf32>
    tpu.vector_store %arg17[%c0_25, %c0_26], %23 {strides = array<i32>} : memref<16x128xf32, #tpu.memory_space<vmem>>, vector<16x128xf32>,
    %c0_27 = arith.constant 0 : index
    %c0_28 = arith.constant 0 : index
    %25 = vector.load %arg11[%c0_27, %c0_28] : memref<64x128xf32, #tpu.memory_space<vmem>>, vector<64x128xf32>
    %cst_29 = arith.constant 0.000000e+00 : f32
    %26 = vector.broadcast %cst_29 : f32 to vector<2x32xf32>
    %cst_30 = arith.constant 1.000000e+00 : f32
    %27 = vector.broadcast %cst_30 : f32 to vector<2x32xf32>
    %28 = tpu.concatenate %27, %26 in 1 : vector<2x32xf32>, vector<2x32xf32> -> vector<2x64xf32>
    %29 = tpu.concatenate %26, %27 in 1 : vector<2x32xf32>, vector<2x32xf32> -> vector<2x64xf32>
    %30 = tpu.concatenate %28, %29 in 0 : vector<2x64xf32>, vector<2x64xf32> -> vector<4x64xf32>
    %c0_31 = arith.constant 0 : index
    %c0_32 = arith.constant 0 : index
    %31 = vector.load %arg14[%c0_31, %c0_32] : memref<4x64xf32, #tpu.memory_space<vmem>>, vector<4x64xf32>
    %c0_33 = arith.constant 0 : index
    %c0_34 = arith.constant 0 : index
    %32 = vector.load %arg15[%c0_33, %c0_34] : memref<4x32xf32, #tpu.memory_space<vmem>>, vector<4x32xf32>
    %c0_i32_35 = arith.constant 0 : i32
    %c7_i32 = arith.constant 7 : i32
    %33 = arith.subi %c7_i32, %c0_i32_35 : i32
    %c2_i32 = arith.constant 2 : i32
    %34 = arith.muli %c0_i32_35, %c2_i32 : i32
    %35 = tpu.assume_multiple %34, 2 : i32
    %c2_i32_36 = arith.constant 2 : i32
    %36 = arith.muli %33, %c2_i32_36 : i32
    %37 = tpu.assume_multiple %36, 2 : i32
    %cst_37 = arith.constant dense<0.000000e+00> : vector<4x128xf32>
    %38 = tpu.matmul %31, %25, %cst_37 {dimension_numbers = #tpu.dot_dimension_numbers<[1], [0], [0], [1], [0, 0, 1, 1], [], []>} : vector<4x64xf32>, vector<64x128xf32>, vector<4x128xf32> -> vector<4x128xf32>
    %39 = arith.index_cast %35 : i32 to index
    %c0_38 = arith.constant 0 : index
    %40 = vector.load %arg16[%39, %c0_38] : memref<16x128xf32, #tpu.memory_space<vmem>>, vector<2x128xf32>
    %41 = arith.index_cast %37 : i32 to index
    %c0_39 = arith.constant 0 : index
    %42 = vector.load %arg17[%41, %c0_39] : memref<16x128xf32, #tpu.memory_space<vmem>>, vector<2x128xf32>
    %43 = tpu.concatenate %40, %42 in 0 : vector<2x128xf32>, vector<2x128xf32> -> vector<4x128xf32>
    %44 = arith.addf %43, %38 : vector<4x128xf32>
    %45 = vector.extract_strided_slice %44 {offsets = [0, 0], sizes = [4, 32], strides = [1, 1]} : vector<4x128xf32> to vector<4x32xf32>
    %46 = arith.negf %45 : vector<4x32xf32>
    %47 = math.exp %46 : vector<4x32xf32>
    %cst_40 = arith.constant 1.000000e+00 : f32
    %48 = vector.broadcast %cst_40 : f32 to vector<4x32xf32>
    %49 = arith.addf %48, %47 : vector<4x32xf32>
    %50 = arith.divf %48, %49 : vector<4x32xf32>
    %51 = vector.extract_strided_slice %44 {offsets = [0, 32], sizes = [4, 32], strides = [1, 1]} : vector<4x128xf32> to vector<4x32xf32>
    %52 = arith.negf %51 : vector<4x32xf32>
    %53 = math.exp %52 : vector<4x32xf32>
    %cst_41 = arith.constant 1.000000e+00 : f32
    %54 = vector.broadcast %cst_41 : f32 to vector<4x32xf32>
    %55 = arith.addf %54, %53 : vector<4x32xf32>
    %56 = arith.divf %54, %55 : vector<4x32xf32>
    %57 = vector.extract_strided_slice %44 {offsets = [0, 64], sizes = [4, 32], strides = [1, 1]} : vector<4x128xf32> to vector<4x32xf32>
    %58 = math.tanh %57 : vector<4x32xf32>
    %59 = vector.extract_strided_slice %44 {offsets = [0, 96], sizes = [4, 32], strides = [1, 1]} : vector<4x128xf32> to vector<4x32xf32>
    %60 = arith.negf %59 : vector<4x32xf32>
    %61 = math.exp %60 : vector<4x32xf32>
    %cst_42 = arith.constant 1.000000e+00 : f32
    %62 = vector.broadcast %cst_42 : f32 to vector<4x32xf32>
    %63 = arith.addf %62, %61 : vector<4x32xf32>
    %64 = arith.divf %62, %63 : vector<4x32xf32>
    %65 = arith.mulf %56, %32 : vector<4x32xf32>
    %66 = arith.mulf %50, %58 : vector<4x32xf32>
    %67 = arith.addf %65, %66 : vector<4x32xf32>
    %68 = math.tanh %67 : vector<4x32xf32>
    %69 = arith.mulf %64, %68 : vector<4x32xf32>
    %70 = vector.extract_strided_slice %69 {offsets = [0, 0], sizes = [2, 32], strides = [1, 1]} : vector<4x32xf32> to vector<2x32xf32>
    %71 = arith.index_cast %35 : i32 to index
    %c0_43 = arith.constant 0 : index
    %72 = vector.load %arg12[%71, %c0_43] : memref<16x32xf32, #tpu.memory_space<vmem>>, vector<2x32xf32>
    tpu.vector_store %arg12[%71, %c0_43], %70 {strides = array<i32>} : memref<16x32xf32, #tpu.memory_space<vmem>>, vector<2x32xf32>,
    %73 = vector.extract_strided_slice %69 {offsets = [2, 0], sizes = [2, 32], strides = [1, 1]} : vector<4x32xf32> to vector<2x32xf32>
    %74 = arith.index_cast %37 : i32 to index
    %c0_44 = arith.constant 0 : index
    %75 = vector.load %arg13[%74, %c0_44] : memref<16x32xf32, #tpu.memory_space<vmem>>, vector<2x32xf32>
    tpu.vector_store %arg13[%74, %c0_44], %73 {strides = array<i32>} : memref<16x32xf32, #tpu.memory_space<vmem>>, vector<2x32xf32>,
    %76 = tpu.concatenate %69, %69 in 1 : vector<4x32xf32>, vector<4x32xf32> -> vector<4x64xf32>
    %77 = arith.mulf %30, %76 : vector<4x64xf32>
    %c1_i32 = arith.constant 1 : i32
    %c7_i32_45 = arith.constant 7 : i32
    %78 = arith.subi %c7_i32_45, %c1_i32 : i32
    %c2_i32_46 = arith.constant 2 : i32
    %79 = arith.muli %c1_i32, %c2_i32_46 : i32
    %80 = tpu.assume_multiple %79, 2 : i32
    %c2_i32_47 = arith.constant 2 : i32
    %81 = arith.muli %78, %c2_i32_47 : i32
    %82 = tpu.assume_multiple %81, 2 : i32
    %cst_48 = arith.constant dense<0.000000e+00> : vector<4x128xf32>
    %83 = tpu.matmul %77, %25, %cst_48 {dimension_numbers = #tpu.dot_dimension_numbers<[1], [0], [0], [1], [0, 0, 1, 1], [], []>} : vector<4x64xf32>, vector<64x128xf32>, vector<4x128xf32> -> vector<4x128xf32>
    %84 = arith.index_cast %80 : i32 to index
    %c0_49 = arith.constant 0 : index
    %85 = vector.load %arg16[%84, %c0_49] : memref<16x128xf32, #tpu.memory_space<vmem>>, vector<2x128xf32>
    %86 = arith.index_cast %82 : i32 to index
    %c0_50 = arith.constant 0 : index
    %87 = vector.load %arg17[%86, %c0_50] : memref<16x128xf32, #tpu.memory_space<vmem>>, vector<2x128xf32>
    %88 = tpu.concatenate %85, %87 in 0 : vector<2x128xf32>, vector<2x128xf32> -> vector<4x128xf32>
    %89 = arith.addf %88, %83 : vector<4x128xf32>
    %90 = vector.extract_strided_slice %89 {offsets = [0, 0], sizes = [4, 32], strides = [1, 1]} : vector<4x128xf32> to vector<4x32xf32>
    %91 = arith.negf %90 : vector<4x32xf32>
    %92 = math.exp %91 : vector<4x32xf32>
    %cst_51 = arith.constant 1.000000e+00 : f32
    %93 = vector.broadcast %cst_51 : f32 to vector<4x32xf32>
    %94 = arith.addf %93, %92 : vector<4x32xf32>
    %95 = arith.divf %93, %94 : vector<4x32xf32>
    %96 = vector.extract_strided_slice %89 {offsets = [0, 32], sizes = [4, 32], strides = [1, 1]} : vector<4x128xf32> to vector<4x32xf32>
    %97 = arith.negf %96 : vector<4x32xf32>
    %98 = math.exp %97 : vector<4x32xf32>
    %cst_52 = arith.constant 1.000000e+00 : f32
    %99 = vector.broadcast %cst_52 : f32 to vector<4x32xf32>
    %100 = arith.addf %99, %98 : vector<4x32xf32>
    %101 = arith.divf %99, %100 : vector<4x32xf32>
    %102 = vector.extract_strided_slice %89 {offsets = [0, 64], sizes = [4, 32], strides = [1, 1]} : vector<4x128xf32> to vector<4x32xf32>
    %103 = math.tanh %102 : vector<4x32xf32>
    %104 = vector.extract_strided_slice %89 {offsets = [0, 96], sizes = [4, 32], strides = [1, 1]} : vector<4x128xf32> to vector<4x32xf32>
    %105 = arith.negf %104 : vector<4x32xf32>
    %106 = math.exp %105 : vector<4x32xf32>
    %cst_53 = arith.constant 1.000000e+00 : f32
    %107 = vector.broadcast %cst_53 : f32 to vector<4x32xf32>
    %108 = arith.addf %107, %106 : vector<4x32xf32>
    %109 = arith.divf %107, %108 : vector<4x32xf32>
    %110 = arith.mulf %101, %67 : vector<4x32xf32>
    %111 = arith.mulf %95, %103 : vector<4x32xf32>
    %112 = arith.addf %110, %111 : vector<4x32xf32>
    %113 = math.tanh %112 : vector<4x32xf32>
    %114 = arith.mulf %109, %113 : vector<4x32xf32>
    %115 = vector.extract_strided_slice %114 {offsets = [0, 0], sizes = [2, 32], strides = [1, 1]} : vector<4x32xf32> to vector<2x32xf32>
    %116 = arith.index_cast %80 : i32 to index
    %c0_54 = arith.constant 0 : index
    %117 = vector.load %arg12[%116, %c0_54] : memref<16x32xf32, #tpu.memory_space<vmem>>, vector<2x32xf32>
    tpu.vector_store %arg12[%116, %c0_54], %115 {strides = array<i32>} : memref<16x32xf32, #tpu.memory_space<vmem>>, vector<2x32xf32>,
    %118 = vector.extract_strided_slice %114 {offsets = [2, 0], sizes = [2, 32], strides = [1, 1]} : vector<4x32xf32> to vector<2x32xf32>
    %119 = arith.index_cast %82 : i32 to index
    %c0_55 = arith.constant 0 : index
    %120 = vector.load %arg13[%119, %c0_55] : memref<16x32xf32, #tpu.memory_space<vmem>>, vector<2x32xf32>
    tpu.vector_store %arg13[%119, %c0_55], %118 {strides = array<i32>} : memref<16x32xf32, #tpu.memory_space<vmem>>, vector<2x32xf32>,
    %121 = tpu.concatenate %114, %114 in 1 : vector<4x32xf32>, vector<4x32xf32> -> vector<4x64xf32>
    %122 = arith.mulf %30, %121 : vector<4x64xf32>
    %c2_i32_56 = arith.constant 2 : i32
    %c7_i32_57 = arith.constant 7 : i32
    %123 = arith.subi %c7_i32_57, %c2_i32_56 : i32
    %c2_i32_58 = arith.constant 2 : i32
    %124 = arith.muli %c2_i32_56, %c2_i32_58 : i32
    %125 = tpu.assume_multiple %124, 2 : i32
    %c2_i32_59 = arith.constant 2 : i32
    %126 = arith.muli %123, %c2_i32_59 : i32
    %127 = tpu.assume_multiple %126, 2 : i32
    %cst_60 = arith.constant dense<0.000000e+00> : vector<4x128xf32>
    %128 = tpu.matmul %122, %25, %cst_60 {dimension_numbers = #tpu.dot_dimension_numbers<[1], [0], [0], [1], [0, 0, 1, 1], [], []>} : vector<4x64xf32>, vector<64x128xf32>, vector<4x128xf32> -> vector<4x128xf32>
    %129 = arith.index_cast %125 : i32 to index
    %c0_61 = arith.constant 0 : index
    %130 = vector.load %arg16[%129, %c0_61] : memref<16x128xf32, #tpu.memory_space<vmem>>, vector<2x128xf32>
    %131 = arith.index_cast %127 : i32 to index
    %c0_62 = arith.constant 0 : index
    %132 = vector.load %arg17[%131, %c0_62] : memref<16x128xf32, #tpu.memory_space<vmem>>, vector<2x128xf32>
    %133 = tpu.concatenate %130, %132 in 0 : vector<2x128xf32>, vector<2x128xf32> -> vector<4x128xf32>
    %134 = arith.addf %133, %128 : vector<4x128xf32>
    %135 = vector.extract_strided_slice %134 {offsets = [0, 0], sizes = [4, 32], strides = [1, 1]} : vector<4x128xf32> to vector<4x32xf32>
    %136 = arith.negf %135 : vector<4x32xf32>
    %137 = math.exp %136 : vector<4x32xf32>
    %cst_63 = arith.constant 1.000000e+00 : f32
    %138 = vector.broadcast %cst_63 : f32 to vector<4x32xf32>
    %139 = arith.addf %138, %137 : vector<4x32xf32>
    %140 = arith.divf %138, %139 : vector<4x32xf32>
    %141 = vector.extract_strided_slice %134 {offsets = [0, 32], sizes = [4, 32], strides = [1, 1]} : vector<4x128xf32> to vector<4x32xf32>
    %142 = arith.negf %141 : vector<4x32xf32>
    %143 = math.exp %142 : vector<4x32xf32>
    %cst_64 = arith.constant 1.000000e+00 : f32
    %144 = vector.broadcast %cst_64 : f32 to vector<4x32xf32>
    %145 = arith.addf %144, %143 : vector<4x32xf32>
    %146 = arith.divf %144, %145 : vector<4x32xf32>
    %147 = vector.extract_strided_slice %134 {offsets = [0, 64], sizes = [4, 32], strides = [1, 1]} : vector<4x128xf32> to vector<4x32xf32>
    %148 = math.tanh %147 : vector<4x32xf32>
    %149 = vector.extract_strided_slice %134 {offsets = [0, 96], sizes = [4, 32], strides = [1, 1]} : vector<4x128xf32> to vector<4x32xf32>
    %150 = arith.negf %149 : vector<4x32xf32>
    %151 = math.exp %150 : vector<4x32xf32>
    %cst_65 = arith.constant 1.000000e+00 : f32
    %152 = vector.broadcast %cst_65 : f32 to vector<4x32xf32>
    %153 = arith.addf %152, %151 : vector<4x32xf32>
    %154 = arith.divf %152, %153 : vector<4x32xf32>
    %155 = arith.mulf %146, %112 : vector<4x32xf32>
    %156 = arith.mulf %140, %148 : vector<4x32xf32>
    %157 = arith.addf %155, %156 : vector<4x32xf32>
    %158 = math.tanh %157 : vector<4x32xf32>
    %159 = arith.mulf %154, %158 : vector<4x32xf32>
    %160 = vector.extract_strided_slice %159 {offsets = [0, 0], sizes = [2, 32], strides = [1, 1]} : vector<4x32xf32> to vector<2x32xf32>
    %161 = arith.index_cast %125 : i32 to index
    %c0_66 = arith.constant 0 : index
    %162 = vector.load %arg12[%161, %c0_66] : memref<16x32xf32, #tpu.memory_space<vmem>>, vector<2x32xf32>
    tpu.vector_store %arg12[%161, %c0_66], %160 {strides = array<i32>} : memref<16x32xf32, #tpu.memory_space<vmem>>, vector<2x32xf32>,
    %163 = vector.extract_strided_slice %159 {offsets = [2, 0], sizes = [2, 32], strides = [1, 1]} : vector<4x32xf32> to vector<2x32xf32>
    %164 = arith.index_cast %127 : i32 to index
    %c0_67 = arith.constant 0 : index
    %165 = vector.load %arg13[%164, %c0_67] : memref<16x32xf32, #tpu.memory_space<vmem>>, vector<2x32xf32>
    tpu.vector_store %arg13[%164, %c0_67], %163 {strides = array<i32>} : memref<16x32xf32, #tpu.memory_space<vmem>>, vector<2x32xf32>,
    %166 = tpu.concatenate %159, %159 in 1 : vector<4x32xf32>, vector<4x32xf32> -> vector<4x64xf32>
    %167 = arith.mulf %30, %166 : vector<4x64xf32>
    %c3_i32 = arith.constant 3 : i32
    %c7_i32_68 = arith.constant 7 : i32
    %168 = arith.subi %c7_i32_68, %c3_i32 : i32
    %c2_i32_69 = arith.constant 2 : i32
    %169 = arith.muli %c3_i32, %c2_i32_69 : i32
    %170 = tpu.assume_multiple %169, 2 : i32
    %c2_i32_70 = arith.constant 2 : i32
    %171 = arith.muli %168, %c2_i32_70 : i32
    %172 = tpu.assume_multiple %171, 2 : i32
    %cst_71 = arith.constant dense<0.000000e+00> : vector<4x128xf32>
    %173 = tpu.matmul %167, %25, %cst_71 {dimension_numbers = #tpu.dot_dimension_numbers<[1], [0], [0], [1], [0, 0, 1, 1], [], []>} : vector<4x64xf32>, vector<64x128xf32>, vector<4x128xf32> -> vector<4x128xf32>
    %174 = arith.index_cast %170 : i32 to index
    %c0_72 = arith.constant 0 : index
    %175 = vector.load %arg16[%174, %c0_72] : memref<16x128xf32, #tpu.memory_space<vmem>>, vector<2x128xf32>
    %176 = arith.index_cast %172 : i32 to index
    %c0_73 = arith.constant 0 : index
    %177 = vector.load %arg17[%176, %c0_73] : memref<16x128xf32, #tpu.memory_space<vmem>>, vector<2x128xf32>
    %178 = tpu.concatenate %175, %177 in 0 : vector<2x128xf32>, vector<2x128xf32> -> vector<4x128xf32>
    %179 = arith.addf %178, %173 : vector<4x128xf32>
    %180 = vector.extract_strided_slice %179 {offsets = [0, 0], sizes = [4, 32], strides = [1, 1]} : vector<4x128xf32> to vector<4x32xf32>
    %181 = arith.negf %180 : vector<4x32xf32>
    %182 = math.exp %181 : vector<4x32xf32>
    %cst_74 = arith.constant 1.000000e+00 : f32
    %183 = vector.broadcast %cst_74 : f32 to vector<4x32xf32>
    %184 = arith.addf %183, %182 : vector<4x32xf32>
    %185 = arith.divf %183, %184 : vector<4x32xf32>
    %186 = vector.extract_strided_slice %179 {offsets = [0, 32], sizes = [4, 32], strides = [1, 1]} : vector<4x128xf32> to vector<4x32xf32>
    %187 = arith.negf %186 : vector<4x32xf32>
    %188 = math.exp %187 : vector<4x32xf32>
    %cst_75 = arith.constant 1.000000e+00 : f32
    %189 = vector.broadcast %cst_75 : f32 to vector<4x32xf32>
    %190 = arith.addf %189, %188 : vector<4x32xf32>
    %191 = arith.divf %189, %190 : vector<4x32xf32>
    %192 = vector.extract_strided_slice %179 {offsets = [0, 64], sizes = [4, 32], strides = [1, 1]} : vector<4x128xf32> to vector<4x32xf32>
    %193 = math.tanh %192 : vector<4x32xf32>
    %194 = vector.extract_strided_slice %179 {offsets = [0, 96], sizes = [4, 32], strides = [1, 1]} : vector<4x128xf32> to vector<4x32xf32>
    %195 = arith.negf %194 : vector<4x32xf32>
    %196 = math.exp %195 : vector<4x32xf32>
    %cst_76 = arith.constant 1.000000e+00 : f32
    %197 = vector.broadcast %cst_76 : f32 to vector<4x32xf32>
    %198 = arith.addf %197, %196 : vector<4x32xf32>
    %199 = arith.divf %197, %198 : vector<4x32xf32>
    %200 = arith.mulf %191, %157 : vector<4x32xf32>
    %201 = arith.mulf %185, %193 : vector<4x32xf32>
    %202 = arith.addf %200, %201 : vector<4x32xf32>
    %203 = math.tanh %202 : vector<4x32xf32>
    %204 = arith.mulf %199, %203 : vector<4x32xf32>
    %205 = vector.extract_strided_slice %204 {offsets = [0, 0], sizes = [2, 32], strides = [1, 1]} : vector<4x32xf32> to vector<2x32xf32>
    %206 = arith.index_cast %170 : i32 to index
    %c0_77 = arith.constant 0 : index
    %207 = vector.load %arg12[%206, %c0_77] : memref<16x32xf32, #tpu.memory_space<vmem>>, vector<2x32xf32>
    tpu.vector_store %arg12[%206, %c0_77], %205 {strides = array<i32>} : memref<16x32xf32, #tpu.memory_space<vmem>>, vector<2x32xf32>,
    %208 = vector.extract_strided_slice %204 {offsets = [2, 0], sizes = [2, 32], strides = [1, 1]} : vector<4x32xf32> to vector<2x32xf32>
    %209 = arith.index_cast %172 : i32 to index
    %c0_78 = arith.constant 0 : index
    %210 = vector.load %arg13[%209, %c0_78] : memref<16x32xf32, #tpu.memory_space<vmem>>, vector<2x32xf32>
    tpu.vector_store %arg13[%209, %c0_78], %208 {strides = array<i32>} : memref<16x32xf32, #tpu.memory_space<vmem>>, vector<2x32xf32>,
    %211 = tpu.concatenate %204, %204 in 1 : vector<4x32xf32>, vector<4x32xf32> -> vector<4x64xf32>
    %212 = arith.mulf %30, %211 : vector<4x64xf32>
    %c4_i32 = arith.constant 4 : i32
    %c7_i32_79 = arith.constant 7 : i32
    %213 = arith.subi %c7_i32_79, %c4_i32 : i32
    %c2_i32_80 = arith.constant 2 : i32
    %214 = arith.muli %c4_i32, %c2_i32_80 : i32
    %215 = tpu.assume_multiple %214, 2 : i32
    %c2_i32_81 = arith.constant 2 : i32
    %216 = arith.muli %213, %c2_i32_81 : i32
    %217 = tpu.assume_multiple %216, 2 : i32
    %cst_82 = arith.constant dense<0.000000e+00> : vector<4x128xf32>
    %218 = tpu.matmul %212, %25, %cst_82 {dimension_numbers = #tpu.dot_dimension_numbers<[1], [0], [0], [1], [0, 0, 1, 1], [], []>} : vector<4x64xf32>, vector<64x128xf32>, vector<4x128xf32> -> vector<4x128xf32>
    %219 = arith.index_cast %215 : i32 to index
    %c0_83 = arith.constant 0 : index
    %220 = vector.load %arg16[%219, %c0_83] : memref<16x128xf32, #tpu.memory_space<vmem>>, vector<2x128xf32>
    %221 = arith.index_cast %217 : i32 to index
    %c0_84 = arith.constant 0 : index
    %222 = vector.load %arg17[%221, %c0_84] : memref<16x128xf32, #tpu.memory_space<vmem>>, vector<2x128xf32>
    %223 = tpu.concatenate %220, %222 in 0 : vector<2x128xf32>, vector<2x128xf32> -> vector<4x128xf32>
    %224 = arith.addf %223, %218 : vector<4x128xf32>
    %225 = vector.extract_strided_slice %224 {offsets = [0, 0], sizes = [4, 32], strides = [1, 1]} : vector<4x128xf32> to vector<4x32xf32>
    %226 = arith.negf %225 : vector<4x32xf32>
    %227 = math.exp %226 : vector<4x32xf32>
    %cst_85 = arith.constant 1.000000e+00 : f32
    %228 = vector.broadcast %cst_85 : f32 to vector<4x32xf32>
    %229 = arith.addf %228, %227 : vector<4x32xf32>
    %230 = arith.divf %228, %229 : vector<4x32xf32>
    %231 = vector.extract_strided_slice %224 {offsets = [0, 32], sizes = [4, 32], strides = [1, 1]} : vector<4x128xf32> to vector<4x32xf32>
    %232 = arith.negf %231 : vector<4x32xf32>
    %233 = math.exp %232 : vector<4x32xf32>
    %cst_86 = arith.constant 1.000000e+00 : f32
    %234 = vector.broadcast %cst_86 : f32 to vector<4x32xf32>
    %235 = arith.addf %234, %233 : vector<4x32xf32>
    %236 = arith.divf %234, %235 : vector<4x32xf32>
    %237 = vector.extract_strided_slice %224 {offsets = [0, 64], sizes = [4, 32], strides = [1, 1]} : vector<4x128xf32> to vector<4x32xf32>
    %238 = math.tanh %237 : vector<4x32xf32>
    %239 = vector.extract_strided_slice %224 {offsets = [0, 96], sizes = [4, 32], strides = [1, 1]} : vector<4x128xf32> to vector<4x32xf32>
    %240 = arith.negf %239 : vector<4x32xf32>
    %241 = math.exp %240 : vector<4x32xf32>
    %cst_87 = arith.constant 1.000000e+00 : f32
    %242 = vector.broadcast %cst_87 : f32 to vector<4x32xf32>
    %243 = arith.addf %242, %241 : vector<4x32xf32>
    %244 = arith.divf %242, %243 : vector<4x32xf32>
    %245 = arith.mulf %236, %202 : vector<4x32xf32>
    %246 = arith.mulf %230, %238 : vector<4x32xf32>
    %247 = arith.addf %245, %246 : vector<4x32xf32>
    %248 = math.tanh %247 : vector<4x32xf32>
    %249 = arith.mulf %244, %248 : vector<4x32xf32>
    %250 = vector.extract_strided_slice %249 {offsets = [0, 0], sizes = [2, 32], strides = [1, 1]} : vector<4x32xf32> to vector<2x32xf32>
    %251 = arith.index_cast %215 : i32 to index
    %c0_88 = arith.constant 0 : index
    %252 = vector.load %arg12[%251, %c0_88] : memref<16x32xf32, #tpu.memory_space<vmem>>, vector<2x32xf32>
    tpu.vector_store %arg12[%251, %c0_88], %250 {strides = array<i32>} : memref<16x32xf32, #tpu.memory_space<vmem>>, vector<2x32xf32>,
    %253 = vector.extract_strided_slice %249 {offsets = [2, 0], sizes = [2, 32], strides = [1, 1]} : vector<4x32xf32> to vector<2x32xf32>
    %254 = arith.index_cast %217 : i32 to index
    %c0_89 = arith.constant 0 : index
    %255 = vector.load %arg13[%254, %c0_89] : memref<16x32xf32, #tpu.memory_space<vmem>>, vector<2x32xf32>
    tpu.vector_store %arg13[%254, %c0_89], %253 {strides = array<i32>} : memref<16x32xf32, #tpu.memory_space<vmem>>, vector<2x32xf32>,
    %256 = tpu.concatenate %249, %249 in 1 : vector<4x32xf32>, vector<4x32xf32> -> vector<4x64xf32>
    %257 = arith.mulf %30, %256 : vector<4x64xf32>
    %c5_i32 = arith.constant 5 : i32
    %c7_i32_90 = arith.constant 7 : i32
    %258 = arith.subi %c7_i32_90, %c5_i32 : i32
    %c2_i32_91 = arith.constant 2 : i32
    %259 = arith.muli %c5_i32, %c2_i32_91 : i32
    %260 = tpu.assume_multiple %259, 2 : i32
    %c2_i32_92 = arith.constant 2 : i32
    %261 = arith.muli %258, %c2_i32_92 : i32
    %262 = tpu.assume_multiple %261, 2 : i32
    %cst_93 = arith.constant dense<0.000000e+00> : vector<4x128xf32>
    %263 = tpu.matmul %257, %25, %cst_93 {dimension_numbers = #tpu.dot_dimension_numbers<[1], [0], [0], [1], [0, 0, 1, 1], [], []>} : vector<4x64xf32>, vector<64x128xf32>, vector<4x128xf32> -> vector<4x128xf32>
    %264 = arith.index_cast %260 : i32 to index
    %c0_94 = arith.constant 0 : index
    %265 = vector.load %arg16[%264, %c0_94] : memref<16x128xf32, #tpu.memory_space<vmem>>, vector<2x128xf32>
    %266 = arith.index_cast %262 : i32 to index
    %c0_95 = arith.constant 0 : index
    %267 = vector.load %arg17[%266, %c0_95] : memref<16x128xf32, #tpu.memory_space<vmem>>, vector<2x128xf32>
    %268 = tpu.concatenate %265, %267 in 0 : vector<2x128xf32>, vector<2x128xf32> -> vector<4x128xf32>
    %269 = arith.addf %268, %263 : vector<4x128xf32>
    %270 = vector.extract_strided_slice %269 {offsets = [0, 0], sizes = [4, 32], strides = [1, 1]} : vector<4x128xf32> to vector<4x32xf32>
    %271 = arith.negf %270 : vector<4x32xf32>
    %272 = math.exp %271 : vector<4x32xf32>
    %cst_96 = arith.constant 1.000000e+00 : f32
    %273 = vector.broadcast %cst_96 : f32 to vector<4x32xf32>
    %274 = arith.addf %273, %272 : vector<4x32xf32>
    %275 = arith.divf %273, %274 : vector<4x32xf32>
    %276 = vector.extract_strided_slice %269 {offsets = [0, 32], sizes = [4, 32], strides = [1, 1]} : vector<4x128xf32> to vector<4x32xf32>
    %277 = arith.negf %276 : vector<4x32xf32>
    %278 = math.exp %277 : vector<4x32xf32>
    %cst_97 = arith.constant 1.000000e+00 : f32
    %279 = vector.broadcast %cst_97 : f32 to vector<4x32xf32>
    %280 = arith.addf %279, %278 : vector<4x32xf32>
    %281 = arith.divf %279, %280 : vector<4x32xf32>
    %282 = vector.extract_strided_slice %269 {offsets = [0, 64], sizes = [4, 32], strides = [1, 1]} : vector<4x128xf32> to vector<4x32xf32>
    %283 = math.tanh %282 : vector<4x32xf32>
    %284 = vector.extract_strided_slice %269 {offsets = [0, 96], sizes = [4, 32], strides = [1, 1]} : vector<4x128xf32> to vector<4x32xf32>
    %285 = arith.negf %284 : vector<4x32xf32>
    %286 = math.exp %285 : vector<4x32xf32>
    %cst_98 = arith.constant 1.000000e+00 : f32
    %287 = vector.broadcast %cst_98 : f32 to vector<4x32xf32>
    %288 = arith.addf %287, %286 : vector<4x32xf32>
    %289 = arith.divf %287, %288 : vector<4x32xf32>
    %290 = arith.mulf %281, %247 : vector<4x32xf32>
    %291 = arith.mulf %275, %283 : vector<4x32xf32>
    %292 = arith.addf %290, %291 : vector<4x32xf32>
    %293 = math.tanh %292 : vector<4x32xf32>
    %294 = arith.mulf %289, %293 : vector<4x32xf32>
    %295 = vector.extract_strided_slice %294 {offsets = [0, 0], sizes = [2, 32], strides = [1, 1]} : vector<4x32xf32> to vector<2x32xf32>
    %296 = arith.index_cast %260 : i32 to index
    %c0_99 = arith.constant 0 : index
    %297 = vector.load %arg12[%296, %c0_99] : memref<16x32xf32, #tpu.memory_space<vmem>>, vector<2x32xf32>
    tpu.vector_store %arg12[%296, %c0_99], %295 {strides = array<i32>} : memref<16x32xf32, #tpu.memory_space<vmem>>, vector<2x32xf32>,
    %298 = vector.extract_strided_slice %294 {offsets = [2, 0], sizes = [2, 32], strides = [1, 1]} : vector<4x32xf32> to vector<2x32xf32>
    %299 = arith.index_cast %262 : i32 to index
    %c0_100 = arith.constant 0 : index
    %300 = vector.load %arg13[%299, %c0_100] : memref<16x32xf32, #tpu.memory_space<vmem>>, vector<2x32xf32>
    tpu.vector_store %arg13[%299, %c0_100], %298 {strides = array<i32>} : memref<16x32xf32, #tpu.memory_space<vmem>>, vector<2x32xf32>,
    %301 = tpu.concatenate %294, %294 in 1 : vector<4x32xf32>, vector<4x32xf32> -> vector<4x64xf32>
    %302 = arith.mulf %30, %301 : vector<4x64xf32>
    %c6_i32 = arith.constant 6 : i32
    %c7_i32_101 = arith.constant 7 : i32
    %303 = arith.subi %c7_i32_101, %c6_i32 : i32
    %c2_i32_102 = arith.constant 2 : i32
    %304 = arith.muli %c6_i32, %c2_i32_102 : i32
    %305 = tpu.assume_multiple %304, 2 : i32
    %c2_i32_103 = arith.constant 2 : i32
    %306 = arith.muli %303, %c2_i32_103 : i32
    %307 = tpu.assume_multiple %306, 2 : i32
    %cst_104 = arith.constant dense<0.000000e+00> : vector<4x128xf32>
    %308 = tpu.matmul %302, %25, %cst_104 {dimension_numbers = #tpu.dot_dimension_numbers<[1], [0], [0], [1], [0, 0, 1, 1], [], []>} : vector<4x64xf32>, vector<64x128xf32>, vector<4x128xf32> -> vector<4x128xf32>
    %309 = arith.index_cast %305 : i32 to index
    %c0_105 = arith.constant 0 : index
    %310 = vector.load %arg16[%309, %c0_105] : memref<16x128xf32, #tpu.memory_space<vmem>>, vector<2x128xf32>
    %311 = arith.index_cast %307 : i32 to index
    %c0_106 = arith.constant 0 : index
    %312 = vector.load %arg17[%311, %c0_106] : memref<16x128xf32, #tpu.memory_space<vmem>>, vector<2x128xf32>
    %313 = tpu.concatenate %310, %312 in 0 : vector<2x128xf32>, vector<2x128xf32> -> vector<4x128xf32>
    %314 = arith.addf %313, %308 : vector<4x128xf32>
    %315 = vector.extract_strided_slice %314 {offsets = [0, 0], sizes = [4, 32], strides = [1, 1]} : vector<4x128xf32> to vector<4x32xf32>
    %316 = arith.negf %315 : vector<4x32xf32>
    %317 = math.exp %316 : vector<4x32xf32>
    %cst_107 = arith.constant 1.000000e+00 : f32
    %318 = vector.broadcast %cst_107 : f32 to vector<4x32xf32>
    %319 = arith.addf %318, %317 : vector<4x32xf32>
    %320 = arith.divf %318, %319 : vector<4x32xf32>
    %321 = vector.extract_strided_slice %314 {offsets = [0, 32], sizes = [4, 32], strides = [1, 1]} : vector<4x128xf32> to vector<4x32xf32>
    %322 = arith.negf %321 : vector<4x32xf32>
    %323 = math.exp %322 : vector<4x32xf32>
    %cst_108 = arith.constant 1.000000e+00 : f32
    %324 = vector.broadcast %cst_108 : f32 to vector<4x32xf32>
    %325 = arith.addf %324, %323 : vector<4x32xf32>
    %326 = arith.divf %324, %325 : vector<4x32xf32>
    %327 = vector.extract_strided_slice %314 {offsets = [0, 64], sizes = [4, 32], strides = [1, 1]} : vector<4x128xf32> to vector<4x32xf32>
    %328 = math.tanh %327 : vector<4x32xf32>
    %329 = vector.extract_strided_slice %314 {offsets = [0, 96], sizes = [4, 32], strides = [1, 1]} : vector<4x128xf32> to vector<4x32xf32>
    %330 = arith.negf %329 : vector<4x32xf32>
    %331 = math.exp %330 : vector<4x32xf32>
    %cst_109 = arith.constant 1.000000e+00 : f32
    %332 = vector.broadcast %cst_109 : f32 to vector<4x32xf32>
    %333 = arith.addf %332, %331 : vector<4x32xf32>
    %334 = arith.divf %332, %333 : vector<4x32xf32>
    %335 = arith.mulf %326, %292 : vector<4x32xf32>
    %336 = arith.mulf %320, %328 : vector<4x32xf32>
    %337 = arith.addf %335, %336 : vector<4x32xf32>
    %338 = math.tanh %337 : vector<4x32xf32>
    %339 = arith.mulf %334, %338 : vector<4x32xf32>
    %340 = vector.extract_strided_slice %339 {offsets = [0, 0], sizes = [2, 32], strides = [1, 1]} : vector<4x32xf32> to vector<2x32xf32>
    %341 = arith.index_cast %305 : i32 to index
    %c0_110 = arith.constant 0 : index
    %342 = vector.load %arg12[%341, %c0_110] : memref<16x32xf32, #tpu.memory_space<vmem>>, vector<2x32xf32>
    tpu.vector_store %arg12[%341, %c0_110], %340 {strides = array<i32>} : memref<16x32xf32, #tpu.memory_space<vmem>>, vector<2x32xf32>,
    %343 = vector.extract_strided_slice %339 {offsets = [2, 0], sizes = [2, 32], strides = [1, 1]} : vector<4x32xf32> to vector<2x32xf32>
    %344 = arith.index_cast %307 : i32 to index
    %c0_111 = arith.constant 0 : index
    %345 = vector.load %arg13[%344, %c0_111] : memref<16x32xf32, #tpu.memory_space<vmem>>, vector<2x32xf32>
    tpu.vector_store %arg13[%344, %c0_111], %343 {strides = array<i32>} : memref<16x32xf32, #tpu.memory_space<vmem>>, vector<2x32xf32>,
    %346 = tpu.concatenate %339, %339 in 1 : vector<4x32xf32>, vector<4x32xf32> -> vector<4x64xf32>
    %347 = arith.mulf %30, %346 : vector<4x64xf32>
    %c7_i32_112 = arith.constant 7 : i32
    %c7_i32_113 = arith.constant 7 : i32
    %348 = arith.subi %c7_i32_113, %c7_i32_112 : i32
    %c2_i32_114 = arith.constant 2 : i32
    %349 = arith.muli %c7_i32_112, %c2_i32_114 : i32
    %350 = tpu.assume_multiple %349, 2 : i32
    %c2_i32_115 = arith.constant 2 : i32
    %351 = arith.muli %348, %c2_i32_115 : i32
    %352 = tpu.assume_multiple %351, 2 : i32
    %cst_116 = arith.constant dense<0.000000e+00> : vector<4x128xf32>
    %353 = tpu.matmul %347, %25, %cst_116 {dimension_numbers = #tpu.dot_dimension_numbers<[1], [0], [0], [1], [0, 0, 1, 1], [], []>} : vector<4x64xf32>, vector<64x128xf32>, vector<4x128xf32> -> vector<4x128xf32>
    %354 = arith.index_cast %350 : i32 to index
    %c0_117 = arith.constant 0 : index
    %355 = vector.load %arg16[%354, %c0_117] : memref<16x128xf32, #tpu.memory_space<vmem>>, vector<2x128xf32>
    %356 = arith.index_cast %352 : i32 to index
    %c0_118 = arith.constant 0 : index
    %357 = vector.load %arg17[%356, %c0_118] : memref<16x128xf32, #tpu.memory_space<vmem>>, vector<2x128xf32>
    %358 = tpu.concatenate %355, %357 in 0 : vector<2x128xf32>, vector<2x128xf32> -> vector<4x128xf32>
    %359 = arith.addf %358, %353 : vector<4x128xf32>
    %360 = vector.extract_strided_slice %359 {offsets = [0, 0], sizes = [4, 32], strides = [1, 1]} : vector<4x128xf32> to vector<4x32xf32>
    %361 = arith.negf %360 : vector<4x32xf32>
    %362 = math.exp %361 : vector<4x32xf32>
    %cst_119 = arith.constant 1.000000e+00 : f32
    %363 = vector.broadcast %cst_119 : f32 to vector<4x32xf32>
    %364 = arith.addf %363, %362 : vector<4x32xf32>
    %365 = arith.divf %363, %364 : vector<4x32xf32>
    %366 = vector.extract_strided_slice %359 {offsets = [0, 32], sizes = [4, 32], strides = [1, 1]} : vector<4x128xf32> to vector<4x32xf32>
    %367 = arith.negf %366 : vector<4x32xf32>
    %368 = math.exp %367 : vector<4x32xf32>
    %cst_120 = arith.constant 1.000000e+00 : f32
    %369 = vector.broadcast %cst_120 : f32 to vector<4x32xf32>
    %370 = arith.addf %369, %368 : vector<4x32xf32>
    %371 = arith.divf %369, %370 : vector<4x32xf32>
    %372 = vector.extract_strided_slice %359 {offsets = [0, 64], sizes = [4, 32], strides = [1, 1]} : vector<4x128xf32> to vector<4x32xf32>
    %373 = math.tanh %372 : vector<4x32xf32>
    %374 = vector.extract_strided_slice %359 {offsets = [0, 96], sizes = [4, 32], strides = [1, 1]} : vector<4x128xf32> to vector<4x32xf32>
    %375 = arith.negf %374 : vector<4x32xf32>
    %376 = math.exp %375 : vector<4x32xf32>
    %cst_121 = arith.constant 1.000000e+00 : f32
    %377 = vector.broadcast %cst_121 : f32 to vector<4x32xf32>
    %378 = arith.addf %377, %376 : vector<4x32xf32>
    %379 = arith.divf %377, %378 : vector<4x32xf32>
    %380 = arith.mulf %371, %337 : vector<4x32xf32>
    %381 = arith.mulf %365, %373 : vector<4x32xf32>
    %382 = arith.addf %380, %381 : vector<4x32xf32>
    %383 = math.tanh %382 : vector<4x32xf32>
    %384 = arith.mulf %379, %383 : vector<4x32xf32>
    %385 = vector.extract_strided_slice %384 {offsets = [0, 0], sizes = [2, 32], strides = [1, 1]} : vector<4x32xf32> to vector<2x32xf32>
    %386 = arith.index_cast %350 : i32 to index
    %c0_122 = arith.constant 0 : index
    %387 = vector.load %arg12[%386, %c0_122] : memref<16x32xf32, #tpu.memory_space<vmem>>, vector<2x32xf32>
    tpu.vector_store %arg12[%386, %c0_122], %385 {strides = array<i32>} : memref<16x32xf32, #tpu.memory_space<vmem>>, vector<2x32xf32>,
    %388 = vector.extract_strided_slice %384 {offsets = [2, 0], sizes = [2, 32], strides = [1, 1]} : vector<4x32xf32> to vector<2x32xf32>
    %389 = arith.index_cast %352 : i32 to index
    %c0_123 = arith.constant 0 : index
    %390 = vector.load %arg13[%389, %c0_123] : memref<16x32xf32, #tpu.memory_space<vmem>>, vector<2x32xf32>
    tpu.vector_store %arg13[%389, %c0_123], %388 {strides = array<i32>} : memref<16x32xf32, #tpu.memory_space<vmem>>, vector<2x32xf32>,
    %391 = tpu.concatenate %384, %384 in 1 : vector<4x32xf32>, vector<4x32xf32> -> vector<4x64xf32>
    %392 = arith.mulf %30, %391 : vector<4x64xf32>
    %c8_i32 = arith.constant 8 : i32
    %c0_124 = arith.constant 0 : index
    %c0_125 = arith.constant 0 : index
    %393 = vector.load %arg14[%c0_124, %c0_125] : memref<4x64xf32, #tpu.memory_space<vmem>>, vector<4x64xf32>
    tpu.vector_store %arg14[%c0_124, %c0_125], %392 {strides = array<i32>} : memref<4x64xf32, #tpu.memory_space<vmem>>, vector<4x64xf32>,
    %c0_126 = arith.constant 0 : index
    %c0_127 = arith.constant 0 : index
    %394 = vector.load %arg15[%c0_126, %c0_127] : memref<4x32xf32, #tpu.memory_space<vmem>>, vector<4x32xf32>
    tpu.vector_store %arg15[%c0_126, %c0_127], %382 {strides = array<i32>} : memref<4x32xf32, #tpu.memory_space<vmem>>, vector<4x32xf32>,
    return
  }
  func.func @transform_0(%arg0: i32) -> (i32, i32) {
    %c0_i32 = arith.constant 0 : i32
    %c0_i32_0 = arith.constant 0 : i32
    return %arg0, %c0_i32 : i32, i32
  }
  func.func @transform_1(%arg0: i32) -> (i32, i32) {
    %c0_i32 = arith.constant 0 : i32
    %c0_i32_0 = arith.constant 0 : i32
    return %arg0, %c0_i32 : i32, i32
  }
  func.func @transform_2(%arg0: i32) -> (i32, i32) {
    %c0_i32 = arith.constant 0 : i32
    %0 = arith.subi %c0_i32, %arg0 : i32
    %c0_i32_0 = arith.constant 0 : i32
    %c0_i32_1 = arith.constant 0 : i32
    return %0, %c0_i32_0 : i32, i32
  }
  func.func @transform_3(%arg0: i32) -> (i32, i32) {
    %c0_i32 = arith.constant 0 : i32
    %0 = arith.subi %c0_i32, %arg0 : i32
    %c0_i32_0 = arith.constant 0 : i32
    %c0_i32_1 = arith.constant 0 : i32
    return %0, %c0_i32_0 : i32, i32
  }
  func.func @transform_4(%arg0: i32) -> (i32, i32) {
    %c0_i32 = arith.constant 0 : i32
    %c0_i32_0 = arith.constant 0 : i32
    %c0_i32_1 = arith.constant 0 : i32
    return %c0_i32, %c0_i32_0 : i32, i32
  }
  func.func @transform_5(%arg0: i32) -> (i32, i32) {
    %c0_i32 = arith.constant 0 : i32
    %c0_i32_0 = arith.constant 0 : i32
    %c0_i32_1 = arith.constant 0 : i32
    return %c0_i32, %c0_i32_0 : i32, i32
  }
  func.func @transform_6(%arg0: i32) -> (i32, i32) {
    %c0_i32 = arith.constant 0 : i32
    %c0_i32_0 = arith.constant 0 : i32
    %c0_i32_1 = arith.constant 0 : i32
    return %c0_i32, %c0_i32_0 : i32, i32
  }
  func.func @transform_7(%arg0: i32) -> (i32, i32) {
    %c0_i32 = arith.constant 0 : i32
    %c0_i32_0 = arith.constant 0 : i32
    %c0_i32_1 = arith.constant 0 : i32
    return %c0_i32, %c0_i32_0 : i32, i32
  }
  func.func @transform_8(%arg0: i32) -> (i32, i32) {
    %c0_i32 = arith.constant 0 : i32
    %c0_i32_0 = arith.constant 0 : i32
    %c0_i32_1 = arith.constant 0 : i32
    return %c0_i32, %c0_i32_0 : i32, i32
  }
  func.func @transform_9(%arg0: i32) -> (i32, i32) {
    %c0_i32 = arith.constant 0 : i32
    %c0_i32_0 = arith.constant 0 : i32
    %c0_i32_1 = arith.constant 0 : i32
    return %c0_i32, %c0_i32_0 : i32, i32
  }
  func.func @transform_10(%arg0: i32) -> (i32, i32) {
    %c0_i32 = arith.constant 0 : i32
    %c0_i32_0 = arith.constant 0 : i32
    %c0_i32_1 = arith.constant 0 : i32
    return %c0_i32, %c0_i32_0 : i32, i32
  }
  func.func @transform_11(%arg0: i32) -> (i32, i32) {
    %c0_i32 = arith.constant 0 : i32
    %c0_i32_0 = arith.constant 0 : i32
    return %arg0, %c0_i32 : i32, i32
  }
  func.func @transform_12(%arg0: i32) -> (i32, i32) {
    %c0_i32 = arith.constant 0 : i32
    %0 = arith.subi %c0_i32, %arg0 : i32
    %c0_i32_0 = arith.constant 0 : i32
    %c0_i32_1 = arith.constant 0 : i32
    return %0, %c0_i32_0 : i32, i32
  }
}

module attributes {stable_mosaic.version = 11 : i64} {
  func.func @kernel(%arg0: i32, %arg1: memref<16x32xf32, #tpu.memory_space<vmem>>, %arg2: memref<16x32xf32, #tpu.memory_space<vmem>>, %arg3: memref<32x8xf32, #tpu.memory_space<vmem>>, %arg4: memref<32x8xf32, #tpu.memory_space<vmem>>, %arg5: memref<1x8xf32, #tpu.memory_space<vmem>>, %arg6: memref<16x8xf32, #tpu.memory_space<vmem>>) attributes {dimension_semantics = [#tpu.dimension_semantics<parallel>], iteration_bounds = array<i64: 1>, scalar_prefetch = 0 : i64, scratch_operands = 0 : i64, tpu.core_type = #tpu.core_type<tc>, window_params = [{transform_indices = @transform_0, window_bounds = array<i64: 16, 32>}, {transform_indices = @transform_1, window_bounds = array<i64: 16, 32>}, {pipeline_mode = #tpu.pipeline_mode<synchronous>, transform_indices = @transform_2, window_bounds = array<i64: 32, 8>}, {pipeline_mode = #tpu.pipeline_mode<synchronous>, transform_indices = @transform_3, window_bounds = array<i64: 32, 8>}, {pipeline_mode = #tpu.pipeline_mode<synchronous>, transform_indices = @transform_4, window_bounds = array<i64: 1, 8>}, {transform_indices = @transform_5, window_bounds = array<i64: 16, 8>}]} {
    %c0 = arith.constant 0 : index
    %c0_0 = arith.constant 0 : index
    %0 = vector.load %arg1[%c0, %c0_0] : memref<16x32xf32, #tpu.memory_space<vmem>>, vector<16x32xf32>
    %c0_1 = arith.constant 0 : index
    %c0_2 = arith.constant 0 : index
    %1 = vector.load %arg3[%c0_1, %c0_2] : memref<32x8xf32, #tpu.memory_space<vmem>>, vector<32x8xf32>
    %cst = arith.constant dense<0.000000e+00> : vector<16x8xf32>
    %2 = tpu.matmul %0, %1, %cst {dimension_numbers = #tpu.dot_dimension_numbers<[1], [0], [0], [1], [0, 0, 1, 1], [], []>} : vector<16x32xf32>, vector<32x8xf32>, vector<16x8xf32> -> vector<16x8xf32>
    %c0_3 = arith.constant 0 : index
    %c0_4 = arith.constant 0 : index
    %3 = vector.load %arg2[%c0_3, %c0_4] : memref<16x32xf32, #tpu.memory_space<vmem>>, vector<16x32xf32>
    %c0_5 = arith.constant 0 : index
    %c0_6 = arith.constant 0 : index
    %4 = vector.load %arg4[%c0_5, %c0_6] : memref<32x8xf32, #tpu.memory_space<vmem>>, vector<32x8xf32>
    %cst_7 = arith.constant dense<0.000000e+00> : vector<16x8xf32>
    %5 = tpu.matmul %3, %4, %cst_7 {dimension_numbers = #tpu.dot_dimension_numbers<[1], [0], [0], [1], [0, 0, 1, 1], [], []>} : vector<16x32xf32>, vector<32x8xf32>, vector<16x8xf32> -> vector<16x8xf32>
    %6 = arith.addf %2, %5 : vector<16x8xf32>
    %c0_8 = arith.constant 0 : index
    %c0_9 = arith.constant 0 : index
    %7 = vector.load %arg5[%c0_8, %c0_9] : memref<1x8xf32, #tpu.memory_space<vmem>>, vector<1x8xf32>
    %8 = vector.broadcast %7 : vector<1x8xf32> to vector<16x8xf32>
    %9 = arith.addf %6, %8 : vector<16x8xf32>
    %c0_10 = arith.constant 0 : index
    %c0_11 = arith.constant 0 : index
    %10 = vector.load %arg6[%c0_10, %c0_11] : memref<16x8xf32, #tpu.memory_space<vmem>>, vector<16x8xf32>
    tpu.vector_store %arg6[%c0_10, %c0_11], %9 {strides = array<i32>} : memref<16x8xf32, #tpu.memory_space<vmem>>, vector<16x8xf32>,
    return
  }
  func.func @transform_0(%arg0: i32) -> (i32, i32) {
    %c0_i32 = arith.constant 0 : i32
    %c0_i32_0 = arith.constant 0 : i32
    return %arg0, %c0_i32 : i32, i32
  }
  func.func @transform_1(%arg0: i32) -> (i32, i32) {
    %c0_i32 = arith.constant 0 : i32
    %c0_i32_0 = arith.constant 0 : i32
    return %arg0, %c0_i32 : i32, i32
  }
  func.func @transform_2(%arg0: i32) -> (i32, i32) {
    %c0_i32 = arith.constant 0 : i32
    %c0_i32_0 = arith.constant 0 : i32
    %c0_i32_1 = arith.constant 0 : i32
    return %c0_i32, %c0_i32_0 : i32, i32
  }
  func.func @transform_3(%arg0: i32) -> (i32, i32) {
    %c0_i32 = arith.constant 0 : i32
    %c0_i32_0 = arith.constant 0 : i32
    %c0_i32_1 = arith.constant 0 : i32
    return %c0_i32, %c0_i32_0 : i32, i32
  }
  func.func @transform_4(%arg0: i32) -> (i32, i32) {
    %c0_i32 = arith.constant 0 : i32
    %c0_i32_0 = arith.constant 0 : i32
    %c0_i32_1 = arith.constant 0 : i32
    return %c0_i32, %c0_i32_0 : i32, i32
  }
  func.func @transform_5(%arg0: i32) -> (i32, i32) {
    %c0_i32 = arith.constant 0 : i32
    %c0_i32_0 = arith.constant 0 : i32
    return %arg0, %c0_i32 : i32, i32
  }
}

module attributes {stable_mosaic.version = 11 : i64} {
  func.func @kernel(%arg0: i32, %arg1: memref<16x32xf32, #tpu.memory_space<vmem>>, %arg2: memref<16x32xf32, #tpu.memory_space<vmem>>, %arg3: memref<32x128xf32, #tpu.memory_space<vmem>>, %arg4: memref<32x128xf32, #tpu.memory_space<vmem>>, %arg5: memref<1x128xf32, #tpu.memory_space<vmem>>, %arg6: memref<1x128xf32, #tpu.memory_space<vmem>>, %arg7: memref<64x128xf32, #tpu.memory_space<vmem>>, %arg8: memref<16x32xf32, #tpu.memory_space<vmem>>, %arg9: memref<16x32xf32, #tpu.memory_space<vmem>>, %arg10: memref<4x64xf32, #tpu.memory_space<vmem>>, %arg11: memref<4x32xf32, #tpu.memory_space<vmem>>, %arg12: memref<16x128xf32, #tpu.memory_space<vmem>>, %arg13: memref<16x128xf32, #tpu.memory_space<vmem>>) attributes {dimension_semantics = [#tpu.dimension_semantics<arbitrary>], iteration_bounds = array<i64: 1>, scalar_prefetch = 0 : i64, scratch_operands = 4 : i64, tpu.core_type = #tpu.core_type<tc>, window_params = [{transform_indices = @transform_0, window_bounds = array<i64: 16, 32>}, {transform_indices = @transform_1, window_bounds = array<i64: 16, 32>}, {pipeline_mode = #tpu.pipeline_mode<synchronous>, transform_indices = @transform_2, window_bounds = array<i64: 32, 128>}, {pipeline_mode = #tpu.pipeline_mode<synchronous>, transform_indices = @transform_3, window_bounds = array<i64: 32, 128>}, {pipeline_mode = #tpu.pipeline_mode<synchronous>, transform_indices = @transform_4, window_bounds = array<i64: 1, 128>}, {pipeline_mode = #tpu.pipeline_mode<synchronous>, transform_indices = @transform_5, window_bounds = array<i64: 1, 128>}, {pipeline_mode = #tpu.pipeline_mode<synchronous>, transform_indices = @transform_6, window_bounds = array<i64: 64, 128>}, {transform_indices = @transform_7, window_bounds = array<i64: 16, 32>}, {transform_indices = @transform_8, window_bounds = array<i64: 16, 32>}]} {
    %c0_i32 = arith.constant 0 : i32
    %0 = arith.cmpi eq, %arg0, %c0_i32 : i32
    %1 = arith.extui %0 : i1 to i32
    %c0_i32_0 = arith.constant 0 : i32
    %2 = arith.cmpi ne, %1, %c0_i32_0 : i32
    scf.if %2 {
      %cst_118 = arith.constant 0.000000e+00 : f32
      %387 = vector.broadcast %cst_118 : f32 to vector<4x64xf32>
      %c0_119 = arith.constant 0 : index
      %c0_120 = arith.constant 0 : index
      %388 = vector.load %arg10[%c0_119, %c0_120] : memref<4x64xf32, #tpu.memory_space<vmem>>, vector<4x64xf32>
      tpu.vector_store %arg10[%c0_119, %c0_120], %387 {strides = array<i32>} : memref<4x64xf32, #tpu.memory_space<vmem>>, vector<4x64xf32>,
      %cst_121 = arith.constant 0.000000e+00 : f32
      %389 = vector.broadcast %cst_121 : f32 to vector<4x32xf32>
      %c0_122 = arith.constant 0 : index
      %c0_123 = arith.constant 0 : index
      %390 = vector.load %arg11[%c0_122, %c0_123] : memref<4x32xf32, #tpu.memory_space<vmem>>, vector<4x32xf32>
      tpu.vector_store %arg11[%c0_122, %c0_123], %389 {strides = array<i32>} : memref<4x32xf32, #tpu.memory_space<vmem>>, vector<4x32xf32>,
    } else {
    }
    %c0 = arith.constant 0 : index
    %c0_1 = arith.constant 0 : index
    %3 = vector.load %arg1[%c0, %c0_1] : memref<16x32xf32, #tpu.memory_space<vmem>>, vector<16x32xf32>
    %c0_2 = arith.constant 0 : index
    %c0_3 = arith.constant 0 : index
    %4 = vector.load %arg3[%c0_2, %c0_3] : memref<32x128xf32, #tpu.memory_space<vmem>>, vector<32x128xf32>
    %cst = arith.constant dense<0.000000e+00> : vector<16x128xf32>
    %5 = tpu.matmul %3, %4, %cst {dimension_numbers = #tpu.dot_dimension_numbers<[1], [0], [0], [1], [0, 0, 1, 1], [], []>} : vector<16x32xf32>, vector<32x128xf32>, vector<16x128xf32> -> vector<16x128xf32>
    %c0_4 = arith.constant 0 : index
    %c0_5 = arith.constant 0 : index
    %6 = vector.load %arg5[%c0_4, %c0_5] : memref<1x128xf32, #tpu.memory_space<vmem>>, vector<1x128xf32>
    %7 = vector.broadcast %6 : vector<1x128xf32> to vector<16x128xf32>
    %8 = arith.addf %5, %7 : vector<16x128xf32>
    %c0_6 = arith.constant 0 : index
    %c0_7 = arith.constant 0 : index
    %9 = vector.load %arg12[%c0_6, %c0_7] : memref<16x128xf32, #tpu.memory_space<vmem>>, vector<16x128xf32>
    tpu.vector_store %arg12[%c0_6, %c0_7], %8 {strides = array<i32>} : memref<16x128xf32, #tpu.memory_space<vmem>>, vector<16x128xf32>,
    %c0_8 = arith.constant 0 : index
    %c0_9 = arith.constant 0 : index
    %10 = vector.load %arg2[%c0_8, %c0_9] : memref<16x32xf32, #tpu.memory_space<vmem>>, vector<16x32xf32>
    %c0_10 = arith.constant 0 : index
    %c0_11 = arith.constant 0 : index
    %11 = vector.load %arg4[%c0_10, %c0_11] : memref<32x128xf32, #tpu.memory_space<vmem>>, vector<32x128xf32>
    %cst_12 = arith.constant dense<0.000000e+00> : vector<16x128xf32>
    %12 = tpu.matmul %10, %11, %cst_12 {dimension_numbers = #tpu.dot_dimension_numbers<[1], [0], [0], [1], [0, 0, 1, 1], [], []>} : vector<16x32xf32>, vector<32x128xf32>, vector<16x128xf32> -> vector<16x128xf32>
    %c0_13 = arith.constant 0 : index
    %c0_14 = arith.constant 0 : index
    %13 = vector.load %arg6[%c0_13, %c0_14] : memref<1x128xf32, #tpu.memory_space<vmem>>, vector<1x128xf32>
    %14 = vector.broadcast %13 : vector<1x128xf32> to vector<16x128xf32>
    %15 = arith.addf %12, %14 : vector<16x128xf32>
    %c0_15 = arith.constant 0 : index
    %c0_16 = arith.constant 0 : index
    %16 = vector.load %arg13[%c0_15, %c0_16] : memref<16x128xf32, #tpu.memory_space<vmem>>, vector<16x128xf32>
    tpu.vector_store %arg13[%c0_15, %c0_16], %15 {strides = array<i32>} : memref<16x128xf32, #tpu.memory_space<vmem>>, vector<16x128xf32>,
    %c0_17 = arith.constant 0 : index
    %c0_18 = arith.constant 0 : index
    %17 = vector.load %arg7[%c0_17, %c0_18] : memref<64x128xf32, #tpu.memory_space<vmem>>, vector<64x128xf32>
    %cst_19 = arith.constant 0.000000e+00 : f32
    %18 = vector.broadcast %cst_19 : f32 to vector<2x32xf32>
    %cst_20 = arith.constant 1.000000e+00 : f32
    %19 = vector.broadcast %cst_20 : f32 to vector<2x32xf32>
    %20 = tpu.concatenate %19, %18 in 1 : vector<2x32xf32>, vector<2x32xf32> -> vector<2x64xf32>
    %21 = tpu.concatenate %18, %19 in 1 : vector<2x32xf32>, vector<2x32xf32> -> vector<2x64xf32>
    %22 = tpu.concatenate %20, %21 in 0 : vector<2x64xf32>, vector<2x64xf32> -> vector<4x64xf32>
    %c0_21 = arith.constant 0 : index
    %c0_22 = arith.constant 0 : index
    %23 = vector.load %arg10[%c0_21, %c0_22] : memref<4x64xf32, #tpu.memory_space<vmem>>, vector<4x64xf32>
    %c0_23 = arith.constant 0 : index
    %c0_24 = arith.constant 0 : index
    %24 = vector.load %arg11[%c0_23, %c0_24] : memref<4x32xf32, #tpu.memory_space<vmem>>, vector<4x32xf32>
    %c0_i32_25 = arith.constant 0 : i32
    %c7_i32 = arith.constant 7 : i32
    %25 = arith.subi %c7_i32, %c0_i32_25 : i32
    %c2_i32 = arith.constant 2 : i32
    %26 = arith.muli %c0_i32_25, %c2_i32 : i32
    %27 = tpu.assume_multiple %26, 2 : i32
    %c2_i32_26 = arith.constant 2 : i32
    %28 = arith.muli %25, %c2_i32_26 : i32
    %29 = tpu.assume_multiple %28, 2 : i32
    %cst_27 = arith.constant dense<0.000000e+00> : vector<4x128xf32>
    %30 = tpu.matmul %23, %17, %cst_27 {dimension_numbers = #tpu.dot_dimension_numbers<[1], [0], [0], [1], [0, 0, 1, 1], [], []>} : vector<4x64xf32>, vector<64x128xf32>, vector<4x128xf32> -> vector<4x128xf32>
    %31 = arith.index_cast %27 : i32 to index
    %c0_28 = arith.constant 0 : index
    %32 = vector.load %arg12[%31, %c0_28] : memref<16x128xf32, #tpu.memory_space<vmem>>, vector<2x128xf32>
    %33 = arith.index_cast %29 : i32 to index
    %c0_29 = arith.constant 0 : index
    %34 = vector.load %arg13[%33, %c0_29] : memref<16x128xf32, #tpu.memory_space<vmem>>, vector<2x128xf32>
    %35 = tpu.concatenate %32, %34 in 0 : vector<2x128xf32>, vector<2x128xf32> -> vector<4x128xf32>
    %36 = arith.addf %35, %30 : vector<4x128xf32>
    %37 = vector.extract_strided_slice %36 {offsets = [0, 0], sizes = [4, 32], strides = [1, 1]} : vector<4x128xf32> to vector<4x32xf32>
    %38 = arith.negf %37 : vector<4x32xf32>
    %39 = math.exp %38 : vector<4x32xf32>
    %cst_30 = arith.constant 1.000000e+00 : f32
    %40 = vector.broadcast %cst_30 : f32 to vector<4x32xf32>
    %41 = arith.addf %40, %39 : vector<4x32xf32>
    %42 = arith.divf %40, %41 : vector<4x32xf32>
    %43 = vector.extract_strided_slice %36 {offsets = [0, 32], sizes = [4, 32], strides = [1, 1]} : vector<4x128xf32> to vector<4x32xf32>
    %44 = arith.negf %43 : vector<4x32xf32>
    %45 = math.exp %44 : vector<4x32xf32>
    %cst_31 = arith.constant 1.000000e+00 : f32
    %46 = vector.broadcast %cst_31 : f32 to vector<4x32xf32>
    %47 = arith.addf %46, %45 : vector<4x32xf32>
    %48 = arith.divf %46, %47 : vector<4x32xf32>
    %49 = vector.extract_strided_slice %36 {offsets = [0, 64], sizes = [4, 32], strides = [1, 1]} : vector<4x128xf32> to vector<4x32xf32>
    %50 = math.tanh %49 : vector<4x32xf32>
    %51 = vector.extract_strided_slice %36 {offsets = [0, 96], sizes = [4, 32], strides = [1, 1]} : vector<4x128xf32> to vector<4x32xf32>
    %52 = arith.negf %51 : vector<4x32xf32>
    %53 = math.exp %52 : vector<4x32xf32>
    %cst_32 = arith.constant 1.000000e+00 : f32
    %54 = vector.broadcast %cst_32 : f32 to vector<4x32xf32>
    %55 = arith.addf %54, %53 : vector<4x32xf32>
    %56 = arith.divf %54, %55 : vector<4x32xf32>
    %57 = arith.mulf %48, %24 : vector<4x32xf32>
    %58 = arith.mulf %42, %50 : vector<4x32xf32>
    %59 = arith.addf %57, %58 : vector<4x32xf32>
    %60 = math.tanh %59 : vector<4x32xf32>
    %61 = arith.mulf %56, %60 : vector<4x32xf32>
    %62 = vector.extract_strided_slice %61 {offsets = [0, 0], sizes = [2, 32], strides = [1, 1]} : vector<4x32xf32> to vector<2x32xf32>
    %63 = arith.index_cast %27 : i32 to index
    %c0_33 = arith.constant 0 : index
    %64 = vector.load %arg8[%63, %c0_33] : memref<16x32xf32, #tpu.memory_space<vmem>>, vector<2x32xf32>
    tpu.vector_store %arg8[%63, %c0_33], %62 {strides = array<i32>} : memref<16x32xf32, #tpu.memory_space<vmem>>, vector<2x32xf32>,
    %65 = vector.extract_strided_slice %61 {offsets = [2, 0], sizes = [2, 32], strides = [1, 1]} : vector<4x32xf32> to vector<2x32xf32>
    %66 = arith.index_cast %29 : i32 to index
    %c0_34 = arith.constant 0 : index
    %67 = vector.load %arg9[%66, %c0_34] : memref<16x32xf32, #tpu.memory_space<vmem>>, vector<2x32xf32>
    tpu.vector_store %arg9[%66, %c0_34], %65 {strides = array<i32>} : memref<16x32xf32, #tpu.memory_space<vmem>>, vector<2x32xf32>,
    %68 = tpu.concatenate %61, %61 in 1 : vector<4x32xf32>, vector<4x32xf32> -> vector<4x64xf32>
    %69 = arith.mulf %22, %68 : vector<4x64xf32>
    %c1_i32 = arith.constant 1 : i32
    %c7_i32_35 = arith.constant 7 : i32
    %70 = arith.subi %c7_i32_35, %c1_i32 : i32
    %c2_i32_36 = arith.constant 2 : i32
    %71 = arith.muli %c1_i32, %c2_i32_36 : i32
    %72 = tpu.assume_multiple %71, 2 : i32
    %c2_i32_37 = arith.constant 2 : i32
    %73 = arith.muli %70, %c2_i32_37 : i32
    %74 = tpu.assume_multiple %73, 2 : i32
    %cst_38 = arith.constant dense<0.000000e+00> : vector<4x128xf32>
    %75 = tpu.matmul %69, %17, %cst_38 {dimension_numbers = #tpu.dot_dimension_numbers<[1], [0], [0], [1], [0, 0, 1, 1], [], []>} : vector<4x64xf32>, vector<64x128xf32>, vector<4x128xf32> -> vector<4x128xf32>
    %76 = arith.index_cast %72 : i32 to index
    %c0_39 = arith.constant 0 : index
    %77 = vector.load %arg12[%76, %c0_39] : memref<16x128xf32, #tpu.memory_space<vmem>>, vector<2x128xf32>
    %78 = arith.index_cast %74 : i32 to index
    %c0_40 = arith.constant 0 : index
    %79 = vector.load %arg13[%78, %c0_40] : memref<16x128xf32, #tpu.memory_space<vmem>>, vector<2x128xf32>
    %80 = tpu.concatenate %77, %79 in 0 : vector<2x128xf32>, vector<2x128xf32> -> vector<4x128xf32>
    %81 = arith.addf %80, %75 : vector<4x128xf32>
    %82 = vector.extract_strided_slice %81 {offsets = [0, 0], sizes = [4, 32], strides = [1, 1]} : vector<4x128xf32> to vector<4x32xf32>
    %83 = arith.negf %82 : vector<4x32xf32>
    %84 = math.exp %83 : vector<4x32xf32>
    %cst_41 = arith.constant 1.000000e+00 : f32
    %85 = vector.broadcast %cst_41 : f32 to vector<4x32xf32>
    %86 = arith.addf %85, %84 : vector<4x32xf32>
    %87 = arith.divf %85, %86 : vector<4x32xf32>
    %88 = vector.extract_strided_slice %81 {offsets = [0, 32], sizes = [4, 32], strides = [1, 1]} : vector<4x128xf32> to vector<4x32xf32>
    %89 = arith.negf %88 : vector<4x32xf32>
    %90 = math.exp %89 : vector<4x32xf32>
    %cst_42 = arith.constant 1.000000e+00 : f32
    %91 = vector.broadcast %cst_42 : f32 to vector<4x32xf32>
    %92 = arith.addf %91, %90 : vector<4x32xf32>
    %93 = arith.divf %91, %92 : vector<4x32xf32>
    %94 = vector.extract_strided_slice %81 {offsets = [0, 64], sizes = [4, 32], strides = [1, 1]} : vector<4x128xf32> to vector<4x32xf32>
    %95 = math.tanh %94 : vector<4x32xf32>
    %96 = vector.extract_strided_slice %81 {offsets = [0, 96], sizes = [4, 32], strides = [1, 1]} : vector<4x128xf32> to vector<4x32xf32>
    %97 = arith.negf %96 : vector<4x32xf32>
    %98 = math.exp %97 : vector<4x32xf32>
    %cst_43 = arith.constant 1.000000e+00 : f32
    %99 = vector.broadcast %cst_43 : f32 to vector<4x32xf32>
    %100 = arith.addf %99, %98 : vector<4x32xf32>
    %101 = arith.divf %99, %100 : vector<4x32xf32>
    %102 = arith.mulf %93, %59 : vector<4x32xf32>
    %103 = arith.mulf %87, %95 : vector<4x32xf32>
    %104 = arith.addf %102, %103 : vector<4x32xf32>
    %105 = math.tanh %104 : vector<4x32xf32>
    %106 = arith.mulf %101, %105 : vector<4x32xf32>
    %107 = vector.extract_strided_slice %106 {offsets = [0, 0], sizes = [2, 32], strides = [1, 1]} : vector<4x32xf32> to vector<2x32xf32>
    %108 = arith.index_cast %72 : i32 to index
    %c0_44 = arith.constant 0 : index
    %109 = vector.load %arg8[%108, %c0_44] : memref<16x32xf32, #tpu.memory_space<vmem>>, vector<2x32xf32>
    tpu.vector_store %arg8[%108, %c0_44], %107 {strides = array<i32>} : memref<16x32xf32, #tpu.memory_space<vmem>>, vector<2x32xf32>,
    %110 = vector.extract_strided_slice %106 {offsets = [2, 0], sizes = [2, 32], strides = [1, 1]} : vector<4x32xf32> to vector<2x32xf32>
    %111 = arith.index_cast %74 : i32 to index
    %c0_45 = arith.constant 0 : index
    %112 = vector.load %arg9[%111, %c0_45] : memref<16x32xf32, #tpu.memory_space<vmem>>, vector<2x32xf32>
    tpu.vector_store %arg9[%111, %c0_45], %110 {strides = array<i32>} : memref<16x32xf32, #tpu.memory_space<vmem>>, vector<2x32xf32>,
    %113 = tpu.concatenate %106, %106 in 1 : vector<4x32xf32>, vector<4x32xf32> -> vector<4x64xf32>
    %114 = arith.mulf %22, %113 : vector<4x64xf32>
    %c2_i32_46 = arith.constant 2 : i32
    %c7_i32_47 = arith.constant 7 : i32
    %115 = arith.subi %c7_i32_47, %c2_i32_46 : i32
    %c2_i32_48 = arith.constant 2 : i32
    %116 = arith.muli %c2_i32_46, %c2_i32_48 : i32
    %117 = tpu.assume_multiple %116, 2 : i32
    %c2_i32_49 = arith.constant 2 : i32
    %118 = arith.muli %115, %c2_i32_49 : i32
    %119 = tpu.assume_multiple %118, 2 : i32
    %cst_50 = arith.constant dense<0.000000e+00> : vector<4x128xf32>
    %120 = tpu.matmul %114, %17, %cst_50 {dimension_numbers = #tpu.dot_dimension_numbers<[1], [0], [0], [1], [0, 0, 1, 1], [], []>} : vector<4x64xf32>, vector<64x128xf32>, vector<4x128xf32> -> vector<4x128xf32>
    %121 = arith.index_cast %117 : i32 to index
    %c0_51 = arith.constant 0 : index
    %122 = vector.load %arg12[%121, %c0_51] : memref<16x128xf32, #tpu.memory_space<vmem>>, vector<2x128xf32>
    %123 = arith.index_cast %119 : i32 to index
    %c0_52 = arith.constant 0 : index
    %124 = vector.load %arg13[%123, %c0_52] : memref<16x128xf32, #tpu.memory_space<vmem>>, vector<2x128xf32>
    %125 = tpu.concatenate %122, %124 in 0 : vector<2x128xf32>, vector<2x128xf32> -> vector<4x128xf32>
    %126 = arith.addf %125, %120 : vector<4x128xf32>
    %127 = vector.extract_strided_slice %126 {offsets = [0, 0], sizes = [4, 32], strides = [1, 1]} : vector<4x128xf32> to vector<4x32xf32>
    %128 = arith.negf %127 : vector<4x32xf32>
    %129 = math.exp %128 : vector<4x32xf32>
    %cst_53 = arith.constant 1.000000e+00 : f32
    %130 = vector.broadcast %cst_53 : f32 to vector<4x32xf32>
    %131 = arith.addf %130, %129 : vector<4x32xf32>
    %132 = arith.divf %130, %131 : vector<4x32xf32>
    %133 = vector.extract_strided_slice %126 {offsets = [0, 32], sizes = [4, 32], strides = [1, 1]} : vector<4x128xf32> to vector<4x32xf32>
    %134 = arith.negf %133 : vector<4x32xf32>
    %135 = math.exp %134 : vector<4x32xf32>
    %cst_54 = arith.constant 1.000000e+00 : f32
    %136 = vector.broadcast %cst_54 : f32 to vector<4x32xf32>
    %137 = arith.addf %136, %135 : vector<4x32xf32>
    %138 = arith.divf %136, %137 : vector<4x32xf32>
    %139 = vector.extract_strided_slice %126 {offsets = [0, 64], sizes = [4, 32], strides = [1, 1]} : vector<4x128xf32> to vector<4x32xf32>
    %140 = math.tanh %139 : vector<4x32xf32>
    %141 = vector.extract_strided_slice %126 {offsets = [0, 96], sizes = [4, 32], strides = [1, 1]} : vector<4x128xf32> to vector<4x32xf32>
    %142 = arith.negf %141 : vector<4x32xf32>
    %143 = math.exp %142 : vector<4x32xf32>
    %cst_55 = arith.constant 1.000000e+00 : f32
    %144 = vector.broadcast %cst_55 : f32 to vector<4x32xf32>
    %145 = arith.addf %144, %143 : vector<4x32xf32>
    %146 = arith.divf %144, %145 : vector<4x32xf32>
    %147 = arith.mulf %138, %104 : vector<4x32xf32>
    %148 = arith.mulf %132, %140 : vector<4x32xf32>
    %149 = arith.addf %147, %148 : vector<4x32xf32>
    %150 = math.tanh %149 : vector<4x32xf32>
    %151 = arith.mulf %146, %150 : vector<4x32xf32>
    %152 = vector.extract_strided_slice %151 {offsets = [0, 0], sizes = [2, 32], strides = [1, 1]} : vector<4x32xf32> to vector<2x32xf32>
    %153 = arith.index_cast %117 : i32 to index
    %c0_56 = arith.constant 0 : index
    %154 = vector.load %arg8[%153, %c0_56] : memref<16x32xf32, #tpu.memory_space<vmem>>, vector<2x32xf32>
    tpu.vector_store %arg8[%153, %c0_56], %152 {strides = array<i32>} : memref<16x32xf32, #tpu.memory_space<vmem>>, vector<2x32xf32>,
    %155 = vector.extract_strided_slice %151 {offsets = [2, 0], sizes = [2, 32], strides = [1, 1]} : vector<4x32xf32> to vector<2x32xf32>
    %156 = arith.index_cast %119 : i32 to index
    %c0_57 = arith.constant 0 : index
    %157 = vector.load %arg9[%156, %c0_57] : memref<16x32xf32, #tpu.memory_space<vmem>>, vector<2x32xf32>
    tpu.vector_store %arg9[%156, %c0_57], %155 {strides = array<i32>} : memref<16x32xf32, #tpu.memory_space<vmem>>, vector<2x32xf32>,
    %158 = tpu.concatenate %151, %151 in 1 : vector<4x32xf32>, vector<4x32xf32> -> vector<4x64xf32>
    %159 = arith.mulf %22, %158 : vector<4x64xf32>
    %c3_i32 = arith.constant 3 : i32
    %c7_i32_58 = arith.constant 7 : i32
    %160 = arith.subi %c7_i32_58, %c3_i32 : i32
    %c2_i32_59 = arith.constant 2 : i32
    %161 = arith.muli %c3_i32, %c2_i32_59 : i32
    %162 = tpu.assume_multiple %161, 2 : i32
    %c2_i32_60 = arith.constant 2 : i32
    %163 = arith.muli %160, %c2_i32_60 : i32
    %164 = tpu.assume_multiple %163, 2 : i32
    %cst_61 = arith.constant dense<0.000000e+00> : vector<4x128xf32>
    %165 = tpu.matmul %159, %17, %cst_61 {dimension_numbers = #tpu.dot_dimension_numbers<[1], [0], [0], [1], [0, 0, 1, 1], [], []>} : vector<4x64xf32>, vector<64x128xf32>, vector<4x128xf32> -> vector<4x128xf32>
    %166 = arith.index_cast %162 : i32 to index
    %c0_62 = arith.constant 0 : index
    %167 = vector.load %arg12[%166, %c0_62] : memref<16x128xf32, #tpu.memory_space<vmem>>, vector<2x128xf32>
    %168 = arith.index_cast %164 : i32 to index
    %c0_63 = arith.constant 0 : index
    %169 = vector.load %arg13[%168, %c0_63] : memref<16x128xf32, #tpu.memory_space<vmem>>, vector<2x128xf32>
    %170 = tpu.concatenate %167, %169 in 0 : vector<2x128xf32>, vector<2x128xf32> -> vector<4x128xf32>
    %171 = arith.addf %170, %165 : vector<4x128xf32>
    %172 = vector.extract_strided_slice %171 {offsets = [0, 0], sizes = [4, 32], strides = [1, 1]} : vector<4x128xf32> to vector<4x32xf32>
    %173 = arith.negf %172 : vector<4x32xf32>
    %174 = math.exp %173 : vector<4x32xf32>
    %cst_64 = arith.constant 1.000000e+00 : f32
    %175 = vector.broadcast %cst_64 : f32 to vector<4x32xf32>
    %176 = arith.addf %175, %174 : vector<4x32xf32>
    %177 = arith.divf %175, %176 : vector<4x32xf32>
    %178 = vector.extract_strided_slice %171 {offsets = [0, 32], sizes = [4, 32], strides = [1, 1]} : vector<4x128xf32> to vector<4x32xf32>
    %179 = arith.negf %178 : vector<4x32xf32>
    %180 = math.exp %179 : vector<4x32xf32>
    %cst_65 = arith.constant 1.000000e+00 : f32
    %181 = vector.broadcast %cst_65 : f32 to vector<4x32xf32>
    %182 = arith.addf %181, %180 : vector<4x32xf32>
    %183 = arith.divf %181, %182 : vector<4x32xf32>
    %184 = vector.extract_strided_slice %171 {offsets = [0, 64], sizes = [4, 32], strides = [1, 1]} : vector<4x128xf32> to vector<4x32xf32>
    %185 = math.tanh %184 : vector<4x32xf32>
    %186 = vector.extract_strided_slice %171 {offsets = [0, 96], sizes = [4, 32], strides = [1, 1]} : vector<4x128xf32> to vector<4x32xf32>
    %187 = arith.negf %186 : vector<4x32xf32>
    %188 = math.exp %187 : vector<4x32xf32>
    %cst_66 = arith.constant 1.000000e+00 : f32
    %189 = vector.broadcast %cst_66 : f32 to vector<4x32xf32>
    %190 = arith.addf %189, %188 : vector<4x32xf32>
    %191 = arith.divf %189, %190 : vector<4x32xf32>
    %192 = arith.mulf %183, %149 : vector<4x32xf32>
    %193 = arith.mulf %177, %185 : vector<4x32xf32>
    %194 = arith.addf %192, %193 : vector<4x32xf32>
    %195 = math.tanh %194 : vector<4x32xf32>
    %196 = arith.mulf %191, %195 : vector<4x32xf32>
    %197 = vector.extract_strided_slice %196 {offsets = [0, 0], sizes = [2, 32], strides = [1, 1]} : vector<4x32xf32> to vector<2x32xf32>
    %198 = arith.index_cast %162 : i32 to index
    %c0_67 = arith.constant 0 : index
    %199 = vector.load %arg8[%198, %c0_67] : memref<16x32xf32, #tpu.memory_space<vmem>>, vector<2x32xf32>
    tpu.vector_store %arg8[%198, %c0_67], %197 {strides = array<i32>} : memref<16x32xf32, #tpu.memory_space<vmem>>, vector<2x32xf32>,
    %200 = vector.extract_strided_slice %196 {offsets = [2, 0], sizes = [2, 32], strides = [1, 1]} : vector<4x32xf32> to vector<2x32xf32>
    %201 = arith.index_cast %164 : i32 to index
    %c0_68 = arith.constant 0 : index
    %202 = vector.load %arg9[%201, %c0_68] : memref<16x32xf32, #tpu.memory_space<vmem>>, vector<2x32xf32>
    tpu.vector_store %arg9[%201, %c0_68], %200 {strides = array<i32>} : memref<16x32xf32, #tpu.memory_space<vmem>>, vector<2x32xf32>,
    %203 = tpu.concatenate %196, %196 in 1 : vector<4x32xf32>, vector<4x32xf32> -> vector<4x64xf32>
    %204 = arith.mulf %22, %203 : vector<4x64xf32>
    %c4_i32 = arith.constant 4 : i32
    %c7_i32_69 = arith.constant 7 : i32
    %205 = arith.subi %c7_i32_69, %c4_i32 : i32
    %c2_i32_70 = arith.constant 2 : i32
    %206 = arith.muli %c4_i32, %c2_i32_70 : i32
    %207 = tpu.assume_multiple %206, 2 : i32
    %c2_i32_71 = arith.constant 2 : i32
    %208 = arith.muli %205, %c2_i32_71 : i32
    %209 = tpu.assume_multiple %208, 2 : i32
    %cst_72 = arith.constant dense<0.000000e+00> : vector<4x128xf32>
    %210 = tpu.matmul %204, %17, %cst_72 {dimension_numbers = #tpu.dot_dimension_numbers<[1], [0], [0], [1], [0, 0, 1, 1], [], []>} : vector<4x64xf32>, vector<64x128xf32>, vector<4x128xf32> -> vector<4x128xf32>
    %211 = arith.index_cast %207 : i32 to index
    %c0_73 = arith.constant 0 : index
    %212 = vector.load %arg12[%211, %c0_73] : memref<16x128xf32, #tpu.memory_space<vmem>>, vector<2x128xf32>
    %213 = arith.index_cast %209 : i32 to index
    %c0_74 = arith.constant 0 : index
    %214 = vector.load %arg13[%213, %c0_74] : memref<16x128xf32, #tpu.memory_space<vmem>>, vector<2x128xf32>
    %215 = tpu.concatenate %212, %214 in 0 : vector<2x128xf32>, vector<2x128xf32> -> vector<4x128xf32>
    %216 = arith.addf %215, %210 : vector<4x128xf32>
    %217 = vector.extract_strided_slice %216 {offsets = [0, 0], sizes = [4, 32], strides = [1, 1]} : vector<4x128xf32> to vector<4x32xf32>
    %218 = arith.negf %217 : vector<4x32xf32>
    %219 = math.exp %218 : vector<4x32xf32>
    %cst_75 = arith.constant 1.000000e+00 : f32
    %220 = vector.broadcast %cst_75 : f32 to vector<4x32xf32>
    %221 = arith.addf %220, %219 : vector<4x32xf32>
    %222 = arith.divf %220, %221 : vector<4x32xf32>
    %223 = vector.extract_strided_slice %216 {offsets = [0, 32], sizes = [4, 32], strides = [1, 1]} : vector<4x128xf32> to vector<4x32xf32>
    %224 = arith.negf %223 : vector<4x32xf32>
    %225 = math.exp %224 : vector<4x32xf32>
    %cst_76 = arith.constant 1.000000e+00 : f32
    %226 = vector.broadcast %cst_76 : f32 to vector<4x32xf32>
    %227 = arith.addf %226, %225 : vector<4x32xf32>
    %228 = arith.divf %226, %227 : vector<4x32xf32>
    %229 = vector.extract_strided_slice %216 {offsets = [0, 64], sizes = [4, 32], strides = [1, 1]} : vector<4x128xf32> to vector<4x32xf32>
    %230 = math.tanh %229 : vector<4x32xf32>
    %231 = vector.extract_strided_slice %216 {offsets = [0, 96], sizes = [4, 32], strides = [1, 1]} : vector<4x128xf32> to vector<4x32xf32>
    %232 = arith.negf %231 : vector<4x32xf32>
    %233 = math.exp %232 : vector<4x32xf32>
    %cst_77 = arith.constant 1.000000e+00 : f32
    %234 = vector.broadcast %cst_77 : f32 to vector<4x32xf32>
    %235 = arith.addf %234, %233 : vector<4x32xf32>
    %236 = arith.divf %234, %235 : vector<4x32xf32>
    %237 = arith.mulf %228, %194 : vector<4x32xf32>
    %238 = arith.mulf %222, %230 : vector<4x32xf32>
    %239 = arith.addf %237, %238 : vector<4x32xf32>
    %240 = math.tanh %239 : vector<4x32xf32>
    %241 = arith.mulf %236, %240 : vector<4x32xf32>
    %242 = vector.extract_strided_slice %241 {offsets = [0, 0], sizes = [2, 32], strides = [1, 1]} : vector<4x32xf32> to vector<2x32xf32>
    %243 = arith.index_cast %207 : i32 to index
    %c0_78 = arith.constant 0 : index
    %244 = vector.load %arg8[%243, %c0_78] : memref<16x32xf32, #tpu.memory_space<vmem>>, vector<2x32xf32>
    tpu.vector_store %arg8[%243, %c0_78], %242 {strides = array<i32>} : memref<16x32xf32, #tpu.memory_space<vmem>>, vector<2x32xf32>,
    %245 = vector.extract_strided_slice %241 {offsets = [2, 0], sizes = [2, 32], strides = [1, 1]} : vector<4x32xf32> to vector<2x32xf32>
    %246 = arith.index_cast %209 : i32 to index
    %c0_79 = arith.constant 0 : index
    %247 = vector.load %arg9[%246, %c0_79] : memref<16x32xf32, #tpu.memory_space<vmem>>, vector<2x32xf32>
    tpu.vector_store %arg9[%246, %c0_79], %245 {strides = array<i32>} : memref<16x32xf32, #tpu.memory_space<vmem>>, vector<2x32xf32>,
    %248 = tpu.concatenate %241, %241 in 1 : vector<4x32xf32>, vector<4x32xf32> -> vector<4x64xf32>
    %249 = arith.mulf %22, %248 : vector<4x64xf32>
    %c5_i32 = arith.constant 5 : i32
    %c7_i32_80 = arith.constant 7 : i32
    %250 = arith.subi %c7_i32_80, %c5_i32 : i32
    %c2_i32_81 = arith.constant 2 : i32
    %251 = arith.muli %c5_i32, %c2_i32_81 : i32
    %252 = tpu.assume_multiple %251, 2 : i32
    %c2_i32_82 = arith.constant 2 : i32
    %253 = arith.muli %250, %c2_i32_82 : i32
    %254 = tpu.assume_multiple %253, 2 : i32
    %cst_83 = arith.constant dense<0.000000e+00> : vector<4x128xf32>
    %255 = tpu.matmul %249, %17, %cst_83 {dimension_numbers = #tpu.dot_dimension_numbers<[1], [0], [0], [1], [0, 0, 1, 1], [], []>} : vector<4x64xf32>, vector<64x128xf32>, vector<4x128xf32> -> vector<4x128xf32>
    %256 = arith.index_cast %252 : i32 to index
    %c0_84 = arith.constant 0 : index
    %257 = vector.load %arg12[%256, %c0_84] : memref<16x128xf32, #tpu.memory_space<vmem>>, vector<2x128xf32>
    %258 = arith.index_cast %254 : i32 to index
    %c0_85 = arith.constant 0 : index
    %259 = vector.load %arg13[%258, %c0_85] : memref<16x128xf32, #tpu.memory_space<vmem>>, vector<2x128xf32>
    %260 = tpu.concatenate %257, %259 in 0 : vector<2x128xf32>, vector<2x128xf32> -> vector<4x128xf32>
    %261 = arith.addf %260, %255 : vector<4x128xf32>
    %262 = vector.extract_strided_slice %261 {offsets = [0, 0], sizes = [4, 32], strides = [1, 1]} : vector<4x128xf32> to vector<4x32xf32>
    %263 = arith.negf %262 : vector<4x32xf32>
    %264 = math.exp %263 : vector<4x32xf32>
    %cst_86 = arith.constant 1.000000e+00 : f32
    %265 = vector.broadcast %cst_86 : f32 to vector<4x32xf32>
    %266 = arith.addf %265, %264 : vector<4x32xf32>
    %267 = arith.divf %265, %266 : vector<4x32xf32>
    %268 = vector.extract_strided_slice %261 {offsets = [0, 32], sizes = [4, 32], strides = [1, 1]} : vector<4x128xf32> to vector<4x32xf32>
    %269 = arith.negf %268 : vector<4x32xf32>
    %270 = math.exp %269 : vector<4x32xf32>
    %cst_87 = arith.constant 1.000000e+00 : f32
    %271 = vector.broadcast %cst_87 : f32 to vector<4x32xf32>
    %272 = arith.addf %271, %270 : vector<4x32xf32>
    %273 = arith.divf %271, %272 : vector<4x32xf32>
    %274 = vector.extract_strided_slice %261 {offsets = [0, 64], sizes = [4, 32], strides = [1, 1]} : vector<4x128xf32> to vector<4x32xf32>
    %275 = math.tanh %274 : vector<4x32xf32>
    %276 = vector.extract_strided_slice %261 {offsets = [0, 96], sizes = [4, 32], strides = [1, 1]} : vector<4x128xf32> to vector<4x32xf32>
    %277 = arith.negf %276 : vector<4x32xf32>
    %278 = math.exp %277 : vector<4x32xf32>
    %cst_88 = arith.constant 1.000000e+00 : f32
    %279 = vector.broadcast %cst_88 : f32 to vector<4x32xf32>
    %280 = arith.addf %279, %278 : vector<4x32xf32>
    %281 = arith.divf %279, %280 : vector<4x32xf32>
    %282 = arith.mulf %273, %239 : vector<4x32xf32>
    %283 = arith.mulf %267, %275 : vector<4x32xf32>
    %284 = arith.addf %282, %283 : vector<4x32xf32>
    %285 = math.tanh %284 : vector<4x32xf32>
    %286 = arith.mulf %281, %285 : vector<4x32xf32>
    %287 = vector.extract_strided_slice %286 {offsets = [0, 0], sizes = [2, 32], strides = [1, 1]} : vector<4x32xf32> to vector<2x32xf32>
    %288 = arith.index_cast %252 : i32 to index
    %c0_89 = arith.constant 0 : index
    %289 = vector.load %arg8[%288, %c0_89] : memref<16x32xf32, #tpu.memory_space<vmem>>, vector<2x32xf32>
    tpu.vector_store %arg8[%288, %c0_89], %287 {strides = array<i32>} : memref<16x32xf32, #tpu.memory_space<vmem>>, vector<2x32xf32>,
    %290 = vector.extract_strided_slice %286 {offsets = [2, 0], sizes = [2, 32], strides = [1, 1]} : vector<4x32xf32> to vector<2x32xf32>
    %291 = arith.index_cast %254 : i32 to index
    %c0_90 = arith.constant 0 : index
    %292 = vector.load %arg9[%291, %c0_90] : memref<16x32xf32, #tpu.memory_space<vmem>>, vector<2x32xf32>
    tpu.vector_store %arg9[%291, %c0_90], %290 {strides = array<i32>} : memref<16x32xf32, #tpu.memory_space<vmem>>, vector<2x32xf32>,
    %293 = tpu.concatenate %286, %286 in 1 : vector<4x32xf32>, vector<4x32xf32> -> vector<4x64xf32>
    %294 = arith.mulf %22, %293 : vector<4x64xf32>
    %c6_i32 = arith.constant 6 : i32
    %c7_i32_91 = arith.constant 7 : i32
    %295 = arith.subi %c7_i32_91, %c6_i32 : i32
    %c2_i32_92 = arith.constant 2 : i32
    %296 = arith.muli %c6_i32, %c2_i32_92 : i32
    %297 = tpu.assume_multiple %296, 2 : i32
    %c2_i32_93 = arith.constant 2 : i32
    %298 = arith.muli %295, %c2_i32_93 : i32
    %299 = tpu.assume_multiple %298, 2 : i32
    %cst_94 = arith.constant dense<0.000000e+00> : vector<4x128xf32>
    %300 = tpu.matmul %294, %17, %cst_94 {dimension_numbers = #tpu.dot_dimension_numbers<[1], [0], [0], [1], [0, 0, 1, 1], [], []>} : vector<4x64xf32>, vector<64x128xf32>, vector<4x128xf32> -> vector<4x128xf32>
    %301 = arith.index_cast %297 : i32 to index
    %c0_95 = arith.constant 0 : index
    %302 = vector.load %arg12[%301, %c0_95] : memref<16x128xf32, #tpu.memory_space<vmem>>, vector<2x128xf32>
    %303 = arith.index_cast %299 : i32 to index
    %c0_96 = arith.constant 0 : index
    %304 = vector.load %arg13[%303, %c0_96] : memref<16x128xf32, #tpu.memory_space<vmem>>, vector<2x128xf32>
    %305 = tpu.concatenate %302, %304 in 0 : vector<2x128xf32>, vector<2x128xf32> -> vector<4x128xf32>
    %306 = arith.addf %305, %300 : vector<4x128xf32>
    %307 = vector.extract_strided_slice %306 {offsets = [0, 0], sizes = [4, 32], strides = [1, 1]} : vector<4x128xf32> to vector<4x32xf32>
    %308 = arith.negf %307 : vector<4x32xf32>
    %309 = math.exp %308 : vector<4x32xf32>
    %cst_97 = arith.constant 1.000000e+00 : f32
    %310 = vector.broadcast %cst_97 : f32 to vector<4x32xf32>
    %311 = arith.addf %310, %309 : vector<4x32xf32>
    %312 = arith.divf %310, %311 : vector<4x32xf32>
    %313 = vector.extract_strided_slice %306 {offsets = [0, 32], sizes = [4, 32], strides = [1, 1]} : vector<4x128xf32> to vector<4x32xf32>
    %314 = arith.negf %313 : vector<4x32xf32>
    %315 = math.exp %314 : vector<4x32xf32>
    %cst_98 = arith.constant 1.000000e+00 : f32
    %316 = vector.broadcast %cst_98 : f32 to vector<4x32xf32>
    %317 = arith.addf %316, %315 : vector<4x32xf32>
    %318 = arith.divf %316, %317 : vector<4x32xf32>
    %319 = vector.extract_strided_slice %306 {offsets = [0, 64], sizes = [4, 32], strides = [1, 1]} : vector<4x128xf32> to vector<4x32xf32>
    %320 = math.tanh %319 : vector<4x32xf32>
    %321 = vector.extract_strided_slice %306 {offsets = [0, 96], sizes = [4, 32], strides = [1, 1]} : vector<4x128xf32> to vector<4x32xf32>
    %322 = arith.negf %321 : vector<4x32xf32>
    %323 = math.exp %322 : vector<4x32xf32>
    %cst_99 = arith.constant 1.000000e+00 : f32
    %324 = vector.broadcast %cst_99 : f32 to vector<4x32xf32>
    %325 = arith.addf %324, %323 : vector<4x32xf32>
    %326 = arith.divf %324, %325 : vector<4x32xf32>
    %327 = arith.mulf %318, %284 : vector<4x32xf32>
    %328 = arith.mulf %312, %320 : vector<4x32xf32>
    %329 = arith.addf %327, %328 : vector<4x32xf32>
    %330 = math.tanh %329 : vector<4x32xf32>
    %331 = arith.mulf %326, %330 : vector<4x32xf32>
    %332 = vector.extract_strided_slice %331 {offsets = [0, 0], sizes = [2, 32], strides = [1, 1]} : vector<4x32xf32> to vector<2x32xf32>
    %333 = arith.index_cast %297 : i32 to index
    %c0_100 = arith.constant 0 : index
    %334 = vector.load %arg8[%333, %c0_100] : memref<16x32xf32, #tpu.memory_space<vmem>>, vector<2x32xf32>
    tpu.vector_store %arg8[%333, %c0_100], %332 {strides = array<i32>} : memref<16x32xf32, #tpu.memory_space<vmem>>, vector<2x32xf32>,
    %335 = vector.extract_strided_slice %331 {offsets = [2, 0], sizes = [2, 32], strides = [1, 1]} : vector<4x32xf32> to vector<2x32xf32>
    %336 = arith.index_cast %299 : i32 to index
    %c0_101 = arith.constant 0 : index
    %337 = vector.load %arg9[%336, %c0_101] : memref<16x32xf32, #tpu.memory_space<vmem>>, vector<2x32xf32>
    tpu.vector_store %arg9[%336, %c0_101], %335 {strides = array<i32>} : memref<16x32xf32, #tpu.memory_space<vmem>>, vector<2x32xf32>,
    %338 = tpu.concatenate %331, %331 in 1 : vector<4x32xf32>, vector<4x32xf32> -> vector<4x64xf32>
    %339 = arith.mulf %22, %338 : vector<4x64xf32>
    %c7_i32_102 = arith.constant 7 : i32
    %c7_i32_103 = arith.constant 7 : i32
    %340 = arith.subi %c7_i32_103, %c7_i32_102 : i32
    %c2_i32_104 = arith.constant 2 : i32
    %341 = arith.muli %c7_i32_102, %c2_i32_104 : i32
    %342 = tpu.assume_multiple %341, 2 : i32
    %c2_i32_105 = arith.constant 2 : i32
    %343 = arith.muli %340, %c2_i32_105 : i32
    %344 = tpu.assume_multiple %343, 2 : i32
    %cst_106 = arith.constant dense<0.000000e+00> : vector<4x128xf32>
    %345 = tpu.matmul %339, %17, %cst_106 {dimension_numbers = #tpu.dot_dimension_numbers<[1], [0], [0], [1], [0, 0, 1, 1], [], []>} : vector<4x64xf32>, vector<64x128xf32>, vector<4x128xf32> -> vector<4x128xf32>
    %346 = arith.index_cast %342 : i32 to index
    %c0_107 = arith.constant 0 : index
    %347 = vector.load %arg12[%346, %c0_107] : memref<16x128xf32, #tpu.memory_space<vmem>>, vector<2x128xf32>
    %348 = arith.index_cast %344 : i32 to index
    %c0_108 = arith.constant 0 : index
    %349 = vector.load %arg13[%348, %c0_108] : memref<16x128xf32, #tpu.memory_space<vmem>>, vector<2x128xf32>
    %350 = tpu.concatenate %347, %349 in 0 : vector<2x128xf32>, vector<2x128xf32> -> vector<4x128xf32>
    %351 = arith.addf %350, %345 : vector<4x128xf32>
    %352 = vector.extract_strided_slice %351 {offsets = [0, 0], sizes = [4, 32], strides = [1, 1]} : vector<4x128xf32> to vector<4x32xf32>
    %353 = arith.negf %352 : vector<4x32xf32>
    %354 = math.exp %353 : vector<4x32xf32>
    %cst_109 = arith.constant 1.000000e+00 : f32
    %355 = vector.broadcast %cst_109 : f32 to vector<4x32xf32>
    %356 = arith.addf %355, %354 : vector<4x32xf32>
    %357 = arith.divf %355, %356 : vector<4x32xf32>
    %358 = vector.extract_strided_slice %351 {offsets = [0, 32], sizes = [4, 32], strides = [1, 1]} : vector<4x128xf32> to vector<4x32xf32>
    %359 = arith.negf %358 : vector<4x32xf32>
    %360 = math.exp %359 : vector<4x32xf32>
    %cst_110 = arith.constant 1.000000e+00 : f32
    %361 = vector.broadcast %cst_110 : f32 to vector<4x32xf32>
    %362 = arith.addf %361, %360 : vector<4x32xf32>
    %363 = arith.divf %361, %362 : vector<4x32xf32>
    %364 = vector.extract_strided_slice %351 {offsets = [0, 64], sizes = [4, 32], strides = [1, 1]} : vector<4x128xf32> to vector<4x32xf32>
    %365 = math.tanh %364 : vector<4x32xf32>
    %366 = vector.extract_strided_slice %351 {offsets = [0, 96], sizes = [4, 32], strides = [1, 1]} : vector<4x128xf32> to vector<4x32xf32>
    %367 = arith.negf %366 : vector<4x32xf32>
    %368 = math.exp %367 : vector<4x32xf32>
    %cst_111 = arith.constant 1.000000e+00 : f32
    %369 = vector.broadcast %cst_111 : f32 to vector<4x32xf32>
    %370 = arith.addf %369, %368 : vector<4x32xf32>
    %371 = arith.divf %369, %370 : vector<4x32xf32>
    %372 = arith.mulf %363, %329 : vector<4x32xf32>
    %373 = arith.mulf %357, %365 : vector<4x32xf32>
    %374 = arith.addf %372, %373 : vector<4x32xf32>
    %375 = math.tanh %374 : vector<4x32xf32>
    %376 = arith.mulf %371, %375 : vector<4x32xf32>
    %377 = vector.extract_strided_slice %376 {offsets = [0, 0], sizes = [2, 32], strides = [1, 1]} : vector<4x32xf32> to vector<2x32xf32>
    %378 = arith.index_cast %342 : i32 to index
    %c0_112 = arith.constant 0 : index
    %379 = vector.load %arg8[%378, %c0_112] : memref<16x32xf32, #tpu.memory_space<vmem>>, vector<2x32xf32>
    tpu.vector_store %arg8[%378, %c0_112], %377 {strides = array<i32>} : memref<16x32xf32, #tpu.memory_space<vmem>>, vector<2x32xf32>,
    %380 = vector.extract_strided_slice %376 {offsets = [2, 0], sizes = [2, 32], strides = [1, 1]} : vector<4x32xf32> to vector<2x32xf32>
    %381 = arith.index_cast %344 : i32 to index
    %c0_113 = arith.constant 0 : index
    %382 = vector.load %arg9[%381, %c0_113] : memref<16x32xf32, #tpu.memory_space<vmem>>, vector<2x32xf32>
    tpu.vector_store %arg9[%381, %c0_113], %380 {strides = array<i32>} : memref<16x32xf32, #tpu.memory_space<vmem>>, vector<2x32xf32>,
    %383 = tpu.concatenate %376, %376 in 1 : vector<4x32xf32>, vector<4x32xf32> -> vector<4x64xf32>
    %384 = arith.mulf %22, %383 : vector<4x64xf32>
    %c8_i32 = arith.constant 8 : i32
    %c0_114 = arith.constant 0 : index
    %c0_115 = arith.constant 0 : index
    %385 = vector.load %arg10[%c0_114, %c0_115] : memref<4x64xf32, #tpu.memory_space<vmem>>, vector<4x64xf32>
    tpu.vector_store %arg10[%c0_114, %c0_115], %384 {strides = array<i32>} : memref<4x64xf32, #tpu.memory_space<vmem>>, vector<4x64xf32>,
    %c0_116 = arith.constant 0 : index
    %c0_117 = arith.constant 0 : index
    %386 = vector.load %arg11[%c0_116, %c0_117] : memref<4x32xf32, #tpu.memory_space<vmem>>, vector<4x32xf32>
    tpu.vector_store %arg11[%c0_116, %c0_117], %374 {strides = array<i32>} : memref<4x32xf32, #tpu.memory_space<vmem>>, vector<4x32xf32>,
    return
  }
  func.func @transform_0(%arg0: i32) -> (i32, i32) {
    %c0_i32 = arith.constant 0 : i32
    %c0_i32_0 = arith.constant 0 : i32
    return %arg0, %c0_i32 : i32, i32
  }
  func.func @transform_1(%arg0: i32) -> (i32, i32) {
    %c0_i32 = arith.constant 0 : i32
    %0 = arith.subi %c0_i32, %arg0 : i32
    %c0_i32_0 = arith.constant 0 : i32
    %c0_i32_1 = arith.constant 0 : i32
    return %0, %c0_i32_0 : i32, i32
  }
  func.func @transform_2(%arg0: i32) -> (i32, i32) {
    %c0_i32 = arith.constant 0 : i32
    %c0_i32_0 = arith.constant 0 : i32
    %c0_i32_1 = arith.constant 0 : i32
    return %c0_i32, %c0_i32_0 : i32, i32
  }
  func.func @transform_3(%arg0: i32) -> (i32, i32) {
    %c0_i32 = arith.constant 0 : i32
    %c0_i32_0 = arith.constant 0 : i32
    %c0_i32_1 = arith.constant 0 : i32
    return %c0_i32, %c0_i32_0 : i32, i32
  }
  func.func @transform_4(%arg0: i32) -> (i32, i32) {
    %c0_i32 = arith.constant 0 : i32
    %c0_i32_0 = arith.constant 0 : i32
    %c0_i32_1 = arith.constant 0 : i32
    return %c0_i32, %c0_i32_0 : i32, i32
  }
  func.func @transform_5(%arg0: i32) -> (i32, i32) {
    %c0_i32 = arith.constant 0 : i32
    %c0_i32_0 = arith.constant 0 : i32
    %c0_i32_1 = arith.constant 0 : i32
    return %c0_i32, %c0_i32_0 : i32, i32
  }
  func.func @transform_6(%arg0: i32) -> (i32, i32) {
    %c0_i32 = arith.constant 0 : i32
    %c0_i32_0 = arith.constant 0 : i32
    %c0_i32_1 = arith.constant 0 : i32
    return %c0_i32, %c0_i32_0 : i32, i32
  }
  func.func @transform_7(%arg0: i32) -> (i32, i32) {
    %c0_i32 = arith.constant 0 : i32
    %c0_i32_0 = arith.constant 0 : i32
    return %arg0, %c0_i32 : i32, i32
  }
  func.func @transform_8(%arg0: i32) -> (i32, i32) {
    %c0_i32 = arith.constant 0 : i32
    %0 = arith.subi %c0_i32, %arg0 : i32
    %c0_i32_0 = arith.constant 0 : i32
    %c0_i32_1 = arith.constant 0 : i32
    return %0, %c0_i32_0 : i32, i32
  }
}

</mosaic_0001>

<llo_original>
// kernel: sentence_tagging_bilstm_forward.5
$region0: #{sentence_tagging_bilstm_forward.5}
  #allocation0 [shape = 'u32[]', space=smem, size = 0x4, offset = 0x4, fixed_abs, tag = 'smem constant byte address 0x4 - core index']
  #allocation1 [shape = 'u32[144,128]{1,0:T(1,128)}', space=vmem, size = 0x12000, scoped, tag = 'internal scratch']
  %s0 = inlined_call_operand.vmem [shape: f32[16,32], index: 0, kind: input, shape index: {}]
  %s1 = inlined_call_operand.vmem [shape: f32[16,32], index: 1, kind: input, shape index: {}]
  %s2 = inlined_call_operand.vmem [shape: f32[32,8], index: 2, kind: input, shape index: {}]
  %s3 = inlined_call_operand.vmem [shape: f32[32,8], index: 3, kind: input, shape index: {}]
  %s4 = inlined_call_operand.vmem [shape: f32[1,8], index: 4, kind: input, shape index: {}]
  %s5 = inlined_call_operand.vmem [shape: f32[16,8], index: 5, kind: output, shape index: {}]
  %s6 = sld [smem:[#allocation0]]
  $region30: #{sentence_tagging_bilstm_forward.5} parent=0
    _
  %s8 = ssub.s32 1, %s6
  %s9 = scalar_select 0, %s8, %s6
  // Predicated region
  $region2: #{sentence_tagging_bilstm_forward.5} parent=0 // pred_check
    _
  $region3: #{sentence_tagging_bilstm_forward.5} parent=0 // pred_check_branch
    %11 = sbr.rel (0) target = $region5
  $region4: #{sentence_tagging_bilstm_forward.5} parent=0 // pred_region
    _
  $region5: #{sentence_tagging_bilstm_forward.5} parent=0 // pred_fallthru
    _
  // Predicated region
  $region6: #{sentence_tagging_bilstm_forward.5} parent=0 // pred_check
    _
  $region7: #{sentence_tagging_bilstm_forward.5} parent=0 // pred_check_branch
    %13 = sbr.rel (0) target = $region9
  $region8: #{sentence_tagging_bilstm_forward.5} parent=0 // pred_region
    _
  $region9: #{sentence_tagging_bilstm_forward.5} parent=0 // pred_fallthru
    _
  // Predicated region
  $region10: #{sentence_tagging_bilstm_forward.5} parent=0 // pred_check
    _
  $region11: #{sentence_tagging_bilstm_forward.5} parent=0 // pred_check_branch
    %15 = sbr.rel (0) target = $region13
  $region12: #{sentence_tagging_bilstm_forward.5} parent=0 // pred_region
    _
  $region13: #{sentence_tagging_bilstm_forward.5} parent=0 // pred_fallthru
    _
  // Predicated region
  $region14: #{sentence_tagging_bilstm_forward.5} parent=0 // pred_check
    _
  $region15: #{sentence_tagging_bilstm_forward.5} parent=0 // pred_check_branch
    %17 = sbr.rel (0) target = $region17
  $region16: #{sentence_tagging_bilstm_forward.5} parent=0 // pred_region
    _
  $region17: #{sentence_tagging_bilstm_forward.5} parent=0 // pred_fallthru
    _
  // Predicated region
  $region18: #{sentence_tagging_bilstm_forward.5} parent=0 // pred_check
    _
  $region19: #{sentence_tagging_bilstm_forward.5} parent=0 // pred_check_branch
    %19 = sbr.rel (0) target = $region21
  $region20: #{sentence_tagging_bilstm_forward.5} parent=0 // pred_region
    _
  $region21: #{sentence_tagging_bilstm_forward.5} parent=0 // pred_fallthru
    _
  %v20 = vld [vmem:[%s0] sm:$0xff]
  %v21 = vld [vmem:[%s0 + $0x8] sm:$0xff]
  %v22 = vld [vmem:[%s2] sm:$0xff]
  %v23 = vld [vmem:[%s2 + $0x8] sm:$0xff]
  %v24 = vld [vmem:[%s2 + $0x10] sm:$0xff]
  %v25 = vld [vmem:[%s2 + $0x18] sm:$0xff]
  %v26 = vld [vmem:[%s1] sm:$0xff]
  %v27 = vld [vmem:[%s1 + $0x8] sm:$0xff]
  %v28 = vld [vmem:[%s3] sm:$0xff]
  %v29 = vld [vmem:[%s3 + $0x8] sm:$0xff]
  %v30 = vld [vmem:[%s3 + $0x10] sm:$0xff]
  %v31 = vld [vmem:[%s3 + $0x18] sm:$0xff]
  %vm32 = vcmask 261120
  %v34 = vsel %vm32, %v26, 0
  %v37 = vsel %vm32, %v27, 0
  %39 = vmatprep.subr.mxu0 0.0
  %40 = vmatpush1.msra.mxu0 0.0
  %41 = vmatprep.subr.mxu0 0.0
  %42 = vmatpush1.msra.mxu0 0.0
  %43 = vmatprep.subr.mxu0 0.0
  %44 = vmatpush1.msra.mxu0 0.0
  %45 = vmatprep.subr.mxu0 0.0
  %46 = vmatpush1.msra.mxu0 0.0
  %47 = vmatprep.subr.mxu0 0.0
  %48 = vmatpush1.msra.mxu0 0.0
  %49 = vmatprep.subr.mxu0 0.0
  %50 = vmatpush1.msra.mxu0 0.0
  %51 = vmatprep.subr.mxu0 0.0
  %52 = vmatpush1.msra.mxu0 0.0
  %53 = vmatprep.subr.mxu0 0.0
  %54 = vmatpush1.msra.mxu0 0.0
  %55 = vmatprep.subr.mxu0 0.0
  %56 = vmatpush1.msra.mxu0 0.0
  %57 = vmatprep.subr.mxu0 0.0
  %58 = vmatpush1.msra.mxu0 0.0
  %59 = vmatprep.subr.mxu0 0.0
  %60 = vmatpush1.msra.mxu0 0.0
  %61 = vmatprep.subr.mxu0 0.0
  %62 = vmatpush1.msra.mxu0 0.0
  %63 = vmatprep.subr.mxu0 0.0
  %64 = vmatpush1.msra.mxu0 %v31
  %65 = vmatprep.subr.mxu0 0.0
  %66 = vmatpush1.msra.mxu0 %v30
  %67 = vmatprep.subr.mxu0 0.0
  %68 = vmatpush1.msra.mxu0 %v29
  %69 = vmatprep.subr.mxu0 0.0
  %70 = vmatpush1.msra.mxu0 %v28
  %71 = vmatprep.subr.mxu0 0.0
  %72 = vmatpush2.msra.mxu0 0.0
  %73 = vmatprep.subr.mxu0 0.0
  %74 = vmatpush2.msra.mxu0 0.0
  %75 = vmatprep.subr.mxu0 0.0
  %76 = vmatpush2.msra.mxu0 0.0
  %77 = vmatprep.subr.mxu0 0.0
  %78 = vmatpush2.msra.mxu0 0.0
  %79 = vmatprep.subr.mxu0 0.0
  %80 = vmatpush2.msra.mxu0 0.0
  %81 = vmatprep.subr.mxu0 0.0
  %82 = vmatpush2.msra.mxu0 0.0
  %83 = vmatprep.subr.mxu0 0.0
  %84 = vmatpush2.msra.mxu0 0.0
  %85 = vmatprep.subr.mxu0 0.0
  %86 = vmatpush2.msra.mxu0 0.0
  %87 = vmatprep.subr.mxu0 0.0
  %88 = vmatpush2.msra.mxu0 0.0
  %89 = vmatprep.subr.mxu0 0.0
  %90 = vmatpush2.msra.mxu0 0.0
  %91 = vmatprep.subr.mxu0 0.0
  %92 = vmatpush2.msra.mxu0 0.0
  %93 = vmatprep.subr.mxu0 0.0
  %94 = vmatpush2.msra.mxu0 0.0
  %95 = vmatprep.subr.mxu0 0.0
  %96 = vmatpush2.msra.mxu0 0.0
  %97 = vmatprep.subr.mxu0 0.0
  %98 = vmatpush2.msra.mxu0 0.0
  %99 = vmatprep.subr.mxu0 0.0
  %100 = vmatpush2.msra.mxu0 0.0
  %101 = vmatprep.subr.mxu0 0.0
  %102 = vmatpush2.msra.mxu0 0.0
  %103 = vmatprep.mubr.f32.mxu0 0.0
  %104 = vmatmul.mubr.f32.gmra.mxu0 %v34
  %v105 = vpop.f32.mrf.mxu0
  %v106 = vadd.f32 0.0, %v105
  %v107 = vpop.f32.mrf.mxu0
  %108 = vmatprep.mubr.f32.mxu0 0.0
  %109 = vmatmul.mubr.f32.gmra.mxu0 %v37
  %v110 = vpop.f32.mrf.mxu0
  %v111 = vadd.f32 0.0, %v110
  %v112 = vpop.f32.mrf.mxu0
  %113 = vdwg.mxu0
  %v115 = vsel %vm32, %v20, 0
  %v118 = vsel %vm32, %v21, 0
  %120 = vmatprep.subr.mxu0 0.0
  %121 = vmatpush1.msra.mxu0 0.0
  %122 = vmatprep.subr.mxu0 0.0
  %123 = vmatpush1.msra.mxu0 0.0
  %124 = vmatprep.subr.mxu0 0.0
  %125 = vmatpush1.msra.mxu0 0.0
  %126 = vmatprep.subr.mxu0 0.0
  %127 = vmatpush1.msra.mxu0 0.0
  %128 = vmatprep.subr.mxu0 0.0
  %129 = vmatpush1.msra.mxu0 0.0
  %130 = vmatprep.subr.mxu0 0.0
  %131 = vmatpush1.msra.mxu0 0.0
  %132 = vmatprep.subr.mxu0 0.0
  %133 = vmatpush1.msra.mxu0 0.0
  %134 = vmatprep.subr.mxu0 0.0
  %135 = vmatpush1.msra.mxu0 0.0
  %136 = vmatprep.subr.mxu0 0.0
  %137 = vmatpush1.msra.mxu0 0.0
  %138 = vmatprep.subr.mxu0 0.0
  %139 = vmatpush1.msra.mxu0 0.0
  %140 = vmatprep.subr.mxu0 0.0
  %141 = vmatpush1.msra.mxu0 0.0
  %142 = vmatprep.subr.mxu0 0.0
  %143 = vmatpush1.msra.mxu0 0.0
  %144 = vmatprep.subr.mxu0 0.0
  %145 = vmatpush1.msra.mxu0 %v25
  %146 = vmatprep.subr.mxu0 0.0
  %147 = vmatpush1.msra.mxu0 %v24
  %148 = vmatprep.subr.mxu0 0.0
  %149 = vmatpush1.msra.mxu0 %v23
  %150 = vmatprep.subr.mxu0 0.0
  %151 = vmatpush1.msra.mxu0 %v22
  %152 = vmatprep.subr.mxu0 0.0
  %153 = vmatpush2.msra.mxu0 0.0
  %154 = vmatprep.subr.mxu0 0.0
  %155 = vmatpush2.msra.mxu0 0.0
  %156 = vmatprep.subr.mxu0 0.0
  %157 = vmatpush2.msra.mxu0 0.0
  %158 = vmatprep.subr.mxu0 0.0
  %159 = vmatpush2.msra.mxu0 0.0
  %160 = vmatprep.subr.mxu0 0.0
  %161 = vmatpush2.msra.mxu0 0.0
  %162 = vmatprep.subr.mxu0 0.0
  %163 = vmatpush2.msra.mxu0 0.0
  %164 = vmatprep.subr.mxu0 0.0
  %165 = vmatpush2.msra.mxu0 0.0
  %166 = vmatprep.subr.mxu0 0.0
  %167 = vmatpush2.msra.mxu0 0.0
  %168 = vmatprep.subr.mxu0 0.0
  %169 = vmatpush2.msra.mxu0 0.0
  %170 = vmatprep.subr.mxu0 0.0
  %171 = vmatpush2.msra.mxu0 0.0
  %172 = vmatprep.subr.mxu0 0.0
  %173 = vmatpush2.msra.mxu0 0.0
  %174 = vmatprep.subr.mxu0 0.0
  %175 = vmatpush2.msra.mxu0 0.0
  %176 = vmatprep.subr.mxu0 0.0
  %177 = vmatpush2.msra.mxu0 0.0
  %178 = vmatprep.subr.mxu0 0.0
  %179 = vmatpush2.msra.mxu0 0.0
  %180 = vmatprep.subr.mxu0 0.0
  %181 = vmatpush2.msra.mxu0 0.0
  %182 = vmatprep.subr.mxu0 0.0
  %183 = vmatpush2.msra.mxu0 0.0
  %184 = vmatprep.mubr.f32.mxu0 0.0
  %185 = vmatmul.mubr.f32.gmra.mxu0 %v115
  %v186 = vpop.f32.mrf.mxu0
  %v187 = vadd.f32 %v106, %v186
  %v188 = vpop.f32.mrf.mxu0
  %189 = vmatprep.mubr.f32.mxu0 0.0
  %190 = vmatmul.mubr.f32.gmra.mxu0 %v118
  %v191 = vpop.f32.mrf.mxu0
  %v192 = vadd.f32 %v111, %v191
  %v193 = vpop.f32.mrf.mxu0
  %194 = vdwg.mxu0
  %v195 = vld [vmem:[%s4] sm:$0x1]
  %v197 = vlaneseq
  %v198 = vshrl.u32 %v197, 7
  %v199 = vsub.s32 0, %v198
  %v200 = vrot.slane %v195, %v199
  %v202 = vadd.f32 %v187, %v200
  %v203 = vadd.f32 %v192, %v200
  %vm204 = vcmask 64512
  %205 = vst.msk [vmem:[%s5] sm:$0xff] %vm204, %v202
  %206 = vst.msk [vmem:[%s5 + $0x8] sm:$0xff] %vm204, %v203
  // Predicated region
  $region22: #{sentence_tagging_bilstm_forward.5} parent=0 // pred_check
    _
  $region23: #{sentence_tagging_bilstm_forward.5} parent=0 // pred_check_branch
    %208 = sbr.rel (0) target = $region25
  $region24: #{sentence_tagging_bilstm_forward.5} parent=0 // pred_region
    _
  $region25: #{sentence_tagging_bilstm_forward.5} parent=0 // pred_fallthru
    _
  // Predicated region
  $region26: #{sentence_tagging_bilstm_forward.5} parent=0 // pred_check
    _
  $region27: #{sentence_tagging_bilstm_forward.5} parent=0 // pred_check_branch
    %210 = sbr.rel (0) target = $region29
  $region28: #{sentence_tagging_bilstm_forward.5} parent=0 // pred_region
    _
  $region29: #{sentence_tagging_bilstm_forward.5} parent=0 // pred_fallthru
    _

// kernel: sentence_tagging_bilstm_forward.4
$region0: #{sentence_tagging_bilstm_forward.4}
  #allocation0 [shape = 'u32[]', space=smem, size = 0x4, offset = 0x4, fixed_abs, tag = 'smem constant byte address 0x4 - core index']
  #allocation1 [shape = 'u32[144,128]{1,0:T(1,128)}', space=vmem, size = 0x12000, scoped, tag = 'internal scratch']
  #allocation2 [shape = 'f32[4,64]{1,0:T(4,128)}', space=vmem, size = 0x800, scoped, tag = 'scratch operand']
  #allocation3 [shape = 'f32[4,32]{1,0:T(4,128)}', space=vmem, size = 0x800, scoped, tag = 'scratch operand']
  #allocation4 [shape = 'f32[16,128]{1,0:T(8,128)}', space=vmem, size = 0x2000, scoped, tag = 'scratch operand']
  #allocation5 [shape = 'f32[16,128]{1,0:T(8,128)}', space=vmem, size = 0x2000, scoped, tag = 'scratch operand']
  %s0 = inlined_call_operand.vmem [shape: f32[16,32], index: 0, kind: input, shape index: {}, may-alias: {0,2}]
  %s1 = inlined_call_operand.vmem [shape: f32[16,32], index: 1, kind: input, shape index: {}, may-alias: {1,3}]
  %s2 = inlined_call_operand.vmem [shape: f32[16,32], index: 2, kind: input, shape index: {}, may-alias: {0,2}]
  %s3 = inlined_call_operand.vmem [shape: f32[16,32], index: 3, kind: input, shape index: {}, may-alias: {1,3}]
  %s4 = inlined_call_operand.vmem [shape: f32[32,128], index: 4, kind: input, shape index: {}]
  %s5 = inlined_call_operand.vmem [shape: f32[32,128], index: 5, kind: input, shape index: {}]
  %s6 = inlined_call_operand.vmem [shape: f32[32,128], index: 6, kind: input, shape index: {}]
  %s7 = inlined_call_operand.vmem [shape: f32[32,128], index: 7, kind: input, shape index: {}]
  %s8 = inlined_call_operand.vmem [shape: f32[1,128], index: 8, kind: input, shape index: {}]
  %s9 = inlined_call_operand.vmem [shape: f32[1,128], index: 9, kind: input, shape index: {}]
  %s10 = inlined_call_operand.vmem [shape: f32[64,128], index: 10, kind: input, shape index: {}]
  %s11 = inlined_call_operand.vmem [shape: f32[16,32], index: 11, kind: output, shape index: {0}]
  %s12 = inlined_call_operand.vmem [shape: f32[16,32], index: 12, kind: output, shape index: {1}]
  %13 = xla_tuple %s11, %s12
  %s14 = sld [smem:[#allocation0]]
  $region66: #{sentence_tagging_bilstm_forward.4} parent=0
    _
  %s16 = ssub.s32 1, %s14
  %s17 = scalar_select 0, %s16, %s14
  // Predicated region
  $region2: #{sentence_tagging_bilstm_forward.4} parent=0 // pred_check
    _
  $region3: #{sentence_tagging_bilstm_forward.4} parent=0 // pred_check_branch
    %19 = sbr.rel (0) target = $region5
  $region4: #{sentence_tagging_bilstm_forward.4} parent=0 // pred_region
    _
  $region5: #{sentence_tagging_bilstm_forward.4} parent=0 // pred_fallthru
    _
  // Predicated region
  $region6: #{sentence_tagging_bilstm_forward.4} parent=0 // pred_check
    _
  $region7: #{sentence_tagging_bilstm_forward.4} parent=0 // pred_check_branch
    %21 = sbr.rel (0) target = $region9
  $region8: #{sentence_tagging_bilstm_forward.4} parent=0 // pred_region
    _
  $region9: #{sentence_tagging_bilstm_forward.4} parent=0 // pred_fallthru
    _
  // Predicated region
  $region10: #{sentence_tagging_bilstm_forward.4} parent=0 // pred_check
    _
  $region11: #{sentence_tagging_bilstm_forward.4} parent=0 // pred_check_branch
    %23 = sbr.rel (0) target = $region13
  $region12: #{sentence_tagging_bilstm_forward.4} parent=0 // pred_region
    %s24 = ssub.s32 0, 0
    %s25 = smul.u32 2, %s24
    %p26 = scmp.lt.s32.totalorder %s25, 1
    %s27 = scalar_select %p26, %s25, 1
    %s28 = smul.addr %s27, 8
    %s29 = scalar_lea.vmem %s2, %s28
    %s30 = ssub.s32 0, 0
    %s31 = smul.u32 2, %s30
  $region13: #{sentence_tagging_bilstm_forward.4} parent=0 // pred_fallthru
    _
  // Predicated region
  $region14: #{sentence_tagging_bilstm_forward.4} parent=0 // pred_check
    _
  $region15: #{sentence_tagging_bilstm_forward.4} parent=0 // pred_check_branch
    %33 = sbr.rel (0) target = $region17
  $region16: #{sentence_tagging_bilstm_forward.4} parent=0 // pred_region
    %s34 = ssub.s32 0, 0
    %s35 = smul.u32 2, %s34
    %p36 = scmp.lt.s32.totalorder %s35, 1
    %s37 = scalar_select %p36, %s35, 1
    %s38 = smul.addr %s37, 8
    %s39 = scalar_lea.vmem %s3, %s38
    %s40 = ssub.s32 0, 0
    %s41 = smul.u32 2, %s40
  $region17: #{sentence_tagging_bilstm_forward.4} parent=0 // pred_fallthru
    _
  // Predicated region
  $region18: #{sentence_tagging_bilstm_forward.4} parent=0 // pred_check
    _
  $region19: #{sentence_tagging_bilstm_forward.4} parent=0 // pred_check_branch
    %43 = sbr.rel (0) target = $region21
  $region20: #{sentence_tagging_bilstm_forward.4} parent=0 // pred_region
    _
  $region21: #{sentence_tagging_bilstm_forward.4} parent=0 // pred_fallthru
    _
  // Predicated region
  $region22: #{sentence_tagging_bilstm_forward.4} parent=0 // pred_check
    _
  $region23: #{sentence_tagging_bilstm_forward.4} parent=0 // pred_check_branch
    %45 = sbr.rel (0) target = $region25
  $region24: #{sentence_tagging_bilstm_forward.4} parent=0 // pred_region
    _
  $region25: #{sentence_tagging_bilstm_forward.4} parent=0 // pred_fallthru
    _
  // Predicated region
  $region26: #{sentence_tagging_bilstm_forward.4} parent=0 // pred_check
    _
  $region27: #{sentence_tagging_bilstm_forward.4} parent=0 // pred_check_branch
    %47 = sbr.rel (0) target = $region29
  $region28: #{sentence_tagging_bilstm_forward.4} parent=0 // pred_region
    _
  $region29: #{sentence_tagging_bilstm_forward.4} parent=0 // pred_fallthru
    _
  // Predicated region
  $region30: #{sentence_tagging_bilstm_forward.4} parent=0 // pred_check
    _
  $region31: #{sentence_tagging_bilstm_forward.4} parent=0 // pred_check_branch
    %49 = sbr.rel (0) target = $region33
  $region32: #{sentence_tagging_bilstm_forward.4} parent=0 // pred_region
    _
  $region33: #{sentence_tagging_bilstm_forward.4} parent=0 // pred_fallthru
    _
  // Predicated region
  $region34: #{sentence_tagging_bilstm_forward.4} parent=0 // pred_check
    _
  $region35: #{sentence_tagging_bilstm_forward.4} parent=0 // pred_check_branch
    %51 = sbr.rel (0) target = $region37
  $region36: #{sentence_tagging_bilstm_forward.4} parent=0 // pred_region
    _
  $region37: #{sentence_tagging_bilstm_forward.4} parent=0 // pred_fallthru
    _
  // Predicated region
  $region38: #{sentence_tagging_bilstm_forward.4} parent=0 // pred_check
    _
  $region39: #{sentence_tagging_bilstm_forward.4} parent=0 // pred_check_branch
    %53 = sbr.rel (0) target = $region41
  $region40: #{sentence_tagging_bilstm_forward.4} parent=0 // pred_region
    _
  $region41: #{sentence_tagging_bilstm_forward.4} parent=0 // pred_fallthru
    _
  // Predicated region
  $region42: #{sentence_tagging_bilstm_forward.4} parent=0 // pred_check
    _
  $region43: #{sentence_tagging_bilstm_forward.4} parent=0 // pred_check_branch
    %55 = sbr.rel (0) target = $region45
  $region44: #{sentence_tagging_bilstm_forward.4} parent=0 // pred_region
    _
  $region45: #{sentence_tagging_bilstm_forward.4} parent=0 // pred_fallthru
    _
  %s56 = ssub.s32 0, 0
  %s57 = smul.u32 2, %s56
  %p58 = scmp.lt.s32.totalorder %s57, 1
  %s59 = scalar_select %p58, %s57, 1
  %s60 = smul.addr %s59, 8
  %s61 = scalar_lea.vmem %s2, %s60
  %s62 = ssub.s32 0, 0
  %s63 = smul.u32 2, %s62
  %p64 = scmp.lt.s32.totalorder %s63, 1
  %s65 = scalar_select %p64, %s63, 1
  %s66 = smul.addr %s65, 8
  %s67 = scalar_lea.vmem %s3, %s66
  %s68 = ssub.s32 0, 0
  %s69 = smul.u32 2, %s68
  %p70 = scmp.lt.s32.totalorder %s69, 1
  %s71 = scalar_select %p70, %s69, 1
  %s72 = smul.addr %s71, 8
  %s73 = scalar_lea.vmem %s12, %s72
  %s74 = ssub.s32 0, 0
  %s75 = smul.u32 2, %s74
  %p76 = scmp.lt.s32.totalorder %s75, 1
  %s77 = scalar_select %p76, %s75, 1
  %s78 = smul.addr %s77, 8
  %s79 = scalar_lea.vmem %s2, %s78
  %s80 = ssub.s32 0, 0
  %s81 = smul.u32 2, %s80
  %s82 = ssub.s32 0, 0
  %s83 = smul.u32 2, %s82
  %p84 = scmp.lt.s32.totalorder %s83, 1
  %s85 = scalar_select %p84, %s83, 1
  %s86 = smul.addr %s85, 8
  %s87 = scalar_lea.vmem %s3, %s86
  %s88 = ssub.s32 0, 0
  %s89 = smul.u32 2, %s88
  %s90 = ssub.s32 0, 0
  %s91 = smul.u32 2, %s90
  %p92 = scmp.lt.s32.totalorder %s91, 1
  %s93 = scalar_select %p92, %s91, 1
  %s94 = smul.addr %s93, 8
  %s95 = scalar_lea.vmem %s12, %s94
  %s96 = ssub.s32 0, 0
  %s97 = smul.u32 2, %s96
  %p98 = scmp.eq.s32.totalorder 0, 0
  // Predicated region
  $region46: #{sentence_tagging_bilstm_forward.4} parent=0 // pred_check
    %p99 = pneg %p98
  $region47: #{sentence_tagging_bilstm_forward.4} parent=0 // pred_check_branch
    %101 = sbr.rel (%p99) target = $region49
  $region48: #{sentence_tagging_bilstm_forward.4} parent=0 // pred_region
    %vm102 = vcmask 519168
    %103 = vst.msk [vmem:[#allocation2] sm:$0xf] %vm102, 0.0
    %vm104 = vcmask 257024
    %105 = vst.msk [vmem:[#allocation3] sm:$0xf] %vm104, 0.0
  $region49: #{sentence_tagging_bilstm_forward.4} parent=0 // pred_fallthru
    _
  %v106 = vld [vmem:[%s0] sm:$0xff]
  %v107 = vld [vmem:[%s0 + $0x8] sm:$0xff]
  %v108 = vld [vmem:[%s4] sm:$0xff]
  %v109 = vld [vmem:[%s4 + $0x8] sm:$0xff]
  %v110 = vld [vmem:[%s4 + $0x10] sm:$0xff]
  %v111 = vld [vmem:[%s4 + $0x18] sm:$0xff]
  %v112 = vld [vmem:[%s1] sm:$0xff]
  %v113 = vld [vmem:[%s1 + $0x8] sm:$0xff]
  %v114 = vld [vmem:[%s5] sm:$0xff]
  %v115 = vld [vmem:[%s5 + $0x8] sm:$0xff]
  %v116 = vld [vmem:[%s5 + $0x10] sm:$0xff]
  %v117 = vld [vmem:[%s5 + $0x18] sm:$0xff]
  %vm118 = vcmask 261120
  %v120 = vsel %vm118, %v112, 0
  %v123 = vsel %vm118, %v113, 0
  %125 = vmatprep.subr.mxu0 0.0
  %126 = vmatpush1.msra.mxu0 0.0
  %127 = vmatprep.subr.mxu0 0.0
  %128 = vmatpush1.msra.mxu0 0.0
  %129 = vmatprep.subr.mxu0 0.0
  %130 = vmatpush1.msra.mxu0 0.0
  %131 = vmatprep.subr.mxu0 0.0
  %132 = vmatpush1.msra.mxu0 0.0
  %133 = vmatprep.subr.mxu0 0.0
  %134 = vmatpush1.msra.mxu0 0.0
  %135 = vmatprep.subr.mxu0 0.0
  %136 = vmatpush1.msra.mxu0 0.0
  %137 = vmatprep.subr.mxu0 0.0
  %138 = vmatpush1.msra.mxu0 0.0
  %139 = vmatprep.subr.mxu0 0.0
  %140 = vmatpush1.msra.mxu0 0.0
  %141 = vmatprep.subr.mxu0 0.0
  %142 = vmatpush1.msra.mxu0 0.0
  %143 = vmatprep.subr.mxu0 0.0
  %144 = vmatpush1.msra.mxu0 0.0
  %145 = vmatprep.subr.mxu0 0.0
  %146 = vmatpush1.msra.mxu0 0.0
  %147 = vmatprep.subr.mxu0 0.0
  %148 = vmatpush1.msra.mxu0 0.0
  %149 = vmatprep.subr.mxu0 0.0
  %150 = vmatpush1.msra.mxu0 %v117
  %151 = vmatprep.subr.mxu0 0.0
  %152 = vmatpush1.msra.mxu0 %v116
  %153 = vmatprep.subr.mxu0 0.0
  %154 = vmatpush1.msra.mxu0 %v115
  %155 = vmatprep.subr.mxu0 0.0
  %156 = vmatpush1.msra.mxu0 %v114
  %157 = vmatprep.subr.mxu0 0.0
  %158 = vmatpush2.msra.mxu0 0.0
  %159 = vmatprep.subr.mxu0 0.0
  %160 = vmatpush2.msra.mxu0 0.0
  %161 = vmatprep.subr.mxu0 0.0
  %162 = vmatpush2.msra.mxu0 0.0
  %163 = vmatprep.subr.mxu0 0.0
  %164 = vmatpush2.msra.mxu0 0.0
  %165 = vmatprep.subr.mxu0 0.0
  %166 = vmatpush2.msra.mxu0 0.0
  %167 = vmatprep.subr.mxu0 0.0
  %168 = vmatpush2.msra.mxu0 0.0
  %169 = vmatprep.subr.mxu0 0.0
  %170 = vmatpush2.msra.mxu0 0.0
  %171 = vmatprep.subr.mxu0 0.0
  %172 = vmatpush2.msra.mxu0 0.0
  %173 = vmatprep.subr.mxu0 0.0
  %174 = vmatpush2.msra.mxu0 0.0
  %175 = vmatprep.subr.mxu0 0.0
  %176 = vmatpush2.msra.mxu0 0.0
  %177 = vmatprep.subr.mxu0 0.0
  %178 = vmatpush2.msra.mxu0 0.0
  %179 = vmatprep.subr.mxu0 0.0
  %180 = vmatpush2.msra.mxu0 0.0
  %181 = vmatprep.subr.mxu0 0.0
  %182 = vmatpush2.msra.mxu0 0.0
  %183 = vmatprep.subr.mxu0 0.0
  %184 = vmatpush2.msra.mxu0 0.0
  %185 = vmatprep.subr.mxu0 0.0
  %186 = vmatpush2.msra.mxu0 0.0
  %187 = vmatprep.subr.mxu0 0.0
  %188 = vmatpush2.msra.mxu0 0.0
  %189 = vmatprep.mubr.f32.mxu0 0.0
  %190 = vmatmul.mubr.f32.gmra.mxu0 %v120
  %v191 = vpop.f32.mrf.mxu0
  %v192 = vadd.f32 0.0, %v191
  %v193 = vpop.f32.mrf.mxu0
  %194 = vmatprep.mubr.f32.mxu0 0.0
  %195 = vmatmul.mubr.f32.gmra.mxu0 %v123
  %v196 = vpop.f32.mrf.mxu0
  %v197 = vadd.f32 0.0, %v196
  %v198 = vpop.f32.mrf.mxu0
  %199 = vdwg.mxu0
  %v201 = vsel %vm118, %v106, 0
  %v204 = vsel %vm118, %v107, 0
  %206 = vmatprep.subr.mxu0 0.0
  %207 = vmatpush1.msra.mxu0 0.0
  %208 = vmatprep.subr.mxu0 0.0
  %209 = vmatpush1.msra.mxu0 0.0
  %210 = vmatprep.subr.mxu0 0.0
  %211 = vmatpush1.msra.mxu0 0.0
  %212 = vmatprep.subr.mxu0 0.0
  %213 = vmatpush1.msra.mxu0 0.0
  %214 = vmatprep.subr.mxu0 0.0
  %215 = vmatpush1.msra.mxu0 0.0
  %216 = vmatprep.subr.mxu0 0.0
  %217 = vmatpush1.msra.mxu0 0.0
  %218 = vmatprep.subr.mxu0 0.0
  %219 = vmatpush1.msra.mxu0 0.0
  %220 = vmatprep.subr.mxu0 0.0
  %221 = vmatpush1.msra.mxu0 0.0
  %222 = vmatprep.subr.mxu0 0.0
  %223 = vmatpush1.msra.mxu0 0.0
  %224 = vmatprep.subr.mxu0 0.0
  %225 = vmatpush1.msra.mxu0 0.0
  %226 = vmatprep.subr.mxu0 0.0
  %227 = vmatpush1.msra.mxu0 0.0
  %228 = vmatprep.subr.mxu0 0.0
  %229 = vmatpush1.msra.mxu0 0.0
  %230 = vmatprep.subr.mxu0 0.0
  %231 = vmatpush1.msra.mxu0 %v111
  %232 = vmatprep.subr.mxu0 0.0
  %233 = vmatpush1.msra.mxu0 %v110
  %234 = vmatprep.subr.mxu0 0.0
  %235 = vmatpush1.msra.mxu0 %v109
  %236 = vmatprep.subr.mxu0 0.0
  %237 = vmatpush1.msra.mxu0 %v108
  %238 = vmatprep.subr.mxu0 0.0
  %239 = vmatpush2.msra.mxu0 0.0
  %240 = vmatprep.subr.mxu0 0.0
  %241 = vmatpush2.msra.mxu0 0.0
  %242 = vmatprep.subr.mxu0 0.0
  %243 = vmatpush2.msra.mxu0 0.0
  %244 = vmatprep.subr.mxu0 0.0
  %245 = vmatpush2.msra.mxu0 0.0
  %246 = vmatprep.subr.mxu0 0.0
  %247 = vmatpush2.msra.mxu0 0.0
  %248 = vmatprep.subr.mxu0 0.0
  %249 = vmatpush2.msra.mxu0 0.0
  %250 = vmatprep.subr.mxu0 0.0
  %251 = vmatpush2.msra.mxu0 0.0
  %252 = vmatprep.subr.mxu0 0.0
  %253 = vmatpush2.msra.mxu0 0.0
  %254 = vmatprep.subr.mxu0 0.0
  %255 = vmatpush2.msra.mxu0 0.0
  %256 = vmatprep.subr.mxu0 0.0
  %257 = vmatpush2.msra.mxu0 0.0
  %258 = vmatprep.subr.mxu0 0.0
  %259 = vmatpush2.msra.mxu0 0.0
  %260 = vmatprep.subr.mxu0 0.0
  %261 = vmatpush2.msra.mxu0 0.0
  %262 = vmatprep.subr.mxu0 0.0
  %263 = vmatpush2.msra.mxu0 0.0
  %264 = vmatprep.subr.mxu0 0.0
  %265 = vmatpush2.msra.mxu0 0.0
  %266 = vmatprep.subr.mxu0 0.0
  %267 = vmatpush2.msra.mxu0 0.0
  %268 = vmatprep.subr.mxu0 0.0
  %269 = vmatpush2.msra.mxu0 0.0
  %270 = vmatprep.mubr.f32.mxu0 0.0
  %271 = vmatmul.mubr.f32.gmra.mxu0 %v201
  %v272 = vpop.f32.mrf.mxu0
  %v273 = vadd.f32 %v192, %v272
  %v274 = vpop.f32.mrf.mxu0
  %275 = vmatprep.mubr.f32.mxu0 0.0
  %276 = vmatmul.mubr.f32.gmra.mxu0 %v204
  %v277 = vpop.f32.mrf.mxu0
  %v278 = vadd.f32 %v197, %v277
  %v279 = vpop.f32.mrf.mxu0
  %280 = vdwg.mxu0
  %v281 = vld [vmem:[%s8] sm:$0x1]
  %v283 = vlaneseq
  %v284 = vshrl.u32 %v283, 7
  %v285 = vsub.s32 0, %v284
  %v286 = vrot.slane %v281, %v285
  %v288 = vadd.f32 %v273, %v286
  %v289 = vadd.f32 %v278, %v286
  %290 = vst [vmem:[#allocation4] sm:$0xff] %v288
  %291 = vst [vmem:[#allocation4 + $0x8] sm:$0xff] %v289
  %v292 = vld [vmem:[%s79] sm:$0xff]
  %v293 = vld [vmem:[%s79 + $0x8] sm:$0xff]
  %v294 = vld [vmem:[%s6] sm:$0xff]
  %v295 = vld [vmem:[%s6 + $0x8] sm:$0xff]
  %v296 = vld [vmem:[%s6 + $0x10] sm:$0xff]
  %v297 = vld [vmem:[%s6 + $0x18] sm:$0xff]
  %v298 = vld [vmem:[%s87] sm:$0xff]
  %v299 = vld [vmem:[%s87 + $0x8] sm:$0xff]
  %v300 = vld [vmem:[%s7] sm:$0xff]
  %v301 = vld [vmem:[%s7 + $0x8] sm:$0xff]
  %v302 = vld [vmem:[%s7 + $0x10] sm:$0xff]
  %v303 = vld [vmem:[%s7 + $0x18] sm:$0xff]
  %v305 = vsel %vm118, %v298, 0
  %v308 = vsel %vm118, %v299, 0
  %310 = vmatprep.subr.mxu0 0.0
  %311 = vmatpush1.msra.mxu0 0.0
  %312 = vmatprep.subr.mxu0 0.0
  %313 = vmatpush1.msra.mxu0 0.0
  %314 = vmatprep.subr.mxu0 0.0
  %315 = vmatpush1.msra.mxu0 0.0
  %316 = vmatprep.subr.mxu0 0.0
  %317 = vmatpush1.msra.mxu0 0.0
  %318 = vmatprep.subr.mxu0 0.0
  %319 = vmatpush1.msra.mxu0 0.0
  %320 = vmatprep.subr.mxu0 0.0
  %321 = vmatpush1.msra.mxu0 0.0
  %322 = vmatprep.subr.mxu0 0.0
  %323 = vmatpush1.msra.mxu0 0.0
  %324 = vmatprep.subr.mxu0 0.0
  %325 = vmatpush1.msra.mxu0 0.0
  %326 = vmatprep.subr.mxu0 0.0
  %327 = vmatpush1.msra.mxu0 0.0
  %328 = vmatprep.subr.mxu0 0.0
  %329 = vmatpush1.msra.mxu0 0.0
  %330 = vmatprep.subr.mxu0 0.0
  %331 = vmatpush1.msra.mxu0 0.0
  %332 = vmatprep.subr.mxu0 0.0
  %333 = vmatpush1.msra.mxu0 0.0
  %334 = vmatprep.subr.mxu0 0.0
  %335 = vmatpush1.msra.mxu0 %v303
  %336 = vmatprep.subr.mxu0 0.0
  %337 = vmatpush1.msra.mxu0 %v302
  %338 = vmatprep.subr.mxu0 0.0
  %339 = vmatpush1.msra.mxu0 %v301
  %340 = vmatprep.subr.mxu0 0.0
  %341 = vmatpush1.msra.mxu0 %v300
  %342 = vmatprep.subr.mxu0 0.0
  %343 = vmatpush2.msra.mxu0 0.0
  %344 = vmatprep.subr.mxu0 0.0
  %345 = vmatpush2.msra.mxu0 0.0
  %346 = vmatprep.subr.mxu0 0.0
  %347 = vmatpush2.msra.mxu0 0.0
  %348 = vmatprep.subr.mxu0 0.0
  %349 = vmatpush2.msra.mxu0 0.0
  %350 = vmatprep.subr.mxu0 0.0
  %351 = vmatpush2.msra.mxu0 0.0
  %352 = vmatprep.subr.mxu0 0.0
  %353 = vmatpush2.msra.mxu0 0.0
  %354 = vmatprep.subr.mxu0 0.0
  %355 = vmatpush2.msra.mxu0 0.0
  %356 = vmatprep.subr.mxu0 0.0
  %357 = vmatpush2.msra.mxu0 0.0
  %358 = vmatprep.subr.mxu0 0.0
  %359 = vmatpush2.msra.mxu0 0.0
  %360 = vmatprep.subr.mxu0 0.0
  %361 = vmatpush2.msra.mxu0 0.0
  %362 = vmatprep.subr.mxu0 0.0
  %363 = vmatpush2.msra.mxu0 0.0
  %364 = vmatprep.subr.mxu0 0.0
  %365 = vmatpush2.msra.mxu0 0.0
  %366 = vmatprep.subr.mxu0 0.0
  %367 = vmatpush2.msra.mxu0 0.0
  %368 = vmatprep.subr.mxu0 0.0
  %369 = vmatpush2.msra.mxu0 0.0
  %370 = vmatprep.subr.mxu0 0.0
  %371 = vmatpush2.msra.mxu0 0.0
  %372 = vmatprep.subr.mxu0 0.0
  %373 = vmatpush2.msra.mxu0 0.0
  %374 = vmatprep.mubr.f32.mxu0 0.0
  %375 = vmatmul.mubr.f32.gmra.mxu0 %v305
  %v376 = vpop.f32.mrf.mxu0
  %v377 = vadd.f32 0.0, %v376
  %v378 = vpop.f32.mrf.mxu0
  %379 = vmatprep.mubr.f32.mxu0 0.0
  %380 = vmatmul.mubr.f32.gmra.mxu0 %v308
  %v381 = vpop.f32.mrf.mxu0
  %v382 = vadd.f32 0.0, %v381
  %v383 = vpop.f32.mrf.mxu0
  %384 = vdwg.mxu0
  %v386 = vsel %vm118, %v292, 0
  %v389 = vsel %vm118, %v293, 0
  %391 = vmatprep.subr.mxu0 0.0
  %392 = vmatpush1.msra.mxu0 0.0
  %393 = vmatprep.subr.mxu0 0.0
  %394 = vmatpush1.msra.mxu0 0.0
  %395 = vmatprep.subr.mxu0 0.0
  %396 = vmatpush1.msra.mxu0 0.0
  %397 = vmatprep.subr.mxu0 0.0
  %398 = vmatpush1.msra.mxu0 0.0
  %399 = vmatprep.subr.mxu0 0.0
  %400 = vmatpush1.msra.mxu0 0.0
  %401 = vmatprep.subr.mxu0 0.0
  %402 = vmatpush1.msra.mxu0 0.0
  %403 = vmatprep.subr.mxu0 0.0
  %404 = vmatpush1.msra.mxu0 0.0
  %405 = vmatprep.subr.mxu0 0.0
  %406 = vmatpush1.msra.mxu0 0.0
  %407 = vmatprep.subr.mxu0 0.0
  %408 = vmatpush1.msra.mxu0 0.0
  %409 = vmatprep.subr.mxu0 0.0
  %410 = vmatpush1.msra.mxu0 0.0
  %411 = vmatprep.subr.mxu0 0.0
  %412 = vmatpush1.msra.mxu0 0.0
  %413 = vmatprep.subr.mxu0 0.0
  %414 = vmatpush1.msra.mxu0 0.0
  %415 = vmatprep.subr.mxu0 0.0
  %416 = vmatpush1.msra.mxu0 %v297
  %417 = vmatprep.subr.mxu0 0.0
  %418 = vmatpush1.msra.mxu0 %v296
  %419 = vmatprep.subr.mxu0 0.0
  %420 = vmatpush1.msra.mxu0 %v295
  %421 = vmatprep.subr.mxu0 0.0
  %422 = vmatpush1.msra.mxu0 %v294
  %423 = vmatprep.subr.mxu0 0.0
  %424 = vmatpush2.msra.mxu0 0.0
  %425 = vmatprep.subr.mxu0 0.0
  %426 = vmatpush2.msra.mxu0 0.0
  %427 = vmatprep.subr.mxu0 0.0
  %428 = vmatpush2.msra.mxu0 0.0
  %429 = vmatprep.subr.mxu0 0.0
  %430 = vmatpush2.msra.mxu0 0.0
  %431 = vmatprep.subr.mxu0 0.0
  %432 = vmatpush2.msra.mxu0 0.0
  %433 = vmatprep.subr.mxu0 0.0
  %434 = vmatpush2.msra.mxu0 0.0
  %435 = vmatprep.subr.mxu0 0.0
  %436 = vmatpush2.msra.mxu0 0.0
  %437 = vmatprep.subr.mxu0 0.0
  %438 = vmatpush2.msra.mxu0 0.0
  %439 = vmatprep.subr.mxu0 0.0
  %440 = vmatpush2.msra.mxu0 0.0
  %441 = vmatprep.subr.mxu0 0.0
  %442 = vmatpush2.msra.mxu0 0.0
  %443 = vmatprep.subr.mxu0 0.0
  %444 = vmatpush2.msra.mxu0 0.0
  %445 = vmatprep.subr.mxu0 0.0
  %446 = vmatpush2.msra.mxu0 0.0
  %447 = vmatprep.subr.mxu0 0.0
  %448 = vmatpush2.msra.mxu0 0.0
  %449 = vmatprep.subr.mxu0 0.0
  %450 = vmatpush2.msra.mxu0 0.0
  %451 = vmatprep.subr.mxu0 0.0
  %452 = vmatpush2.msra.mxu0 0.0
  %453 = vmatprep.subr.mxu0 0.0
  %454 = vmatpush2.msra.mxu0 0.0
  %455 = vmatprep.mubr.f32.mxu0 0.0
  %456 = vmatmul.mubr.f32.gmra.mxu0 %v386
  %v457 = vpop.f32.mrf.mxu0
  %v458 = vadd.f32 %v377, %v457
  %v459 = vpop.f32.mrf.mxu0
  %460 = vmatprep.mubr.f32.mxu0 0.0
  %461 = vmatmul.mubr.f32.gmra.mxu0 %v389
  %v462 = vpop.f32.mrf.mxu0
  %v463 = vadd.f32 %v382, %v462
  %v464 = vpop.f32.mrf.mxu0
  %465 = vdwg.mxu0
  %v466 = vld [vmem:[%s9] sm:$0x1]
  %v468 = vlaneseq
  %v469 = vshrl.u32 %v468, 7
  %v470 = vsub.s32 0, %v469
  %v471 = vrot.slane %v466, %v470
  %v473 = vadd.f32 %v458, %v471
  %v474 = vadd.f32 %v463, %v471
  %475 = vst [vmem:[#allocation5] sm:$0xff] %v473
  %476 = vst [vmem:[#allocation5 + $0x8] sm:$0xff] %v474
  %v477 = vld [vmem:[%s10] sm:$0xff]
  %v478 = vld [vmem:[%s10 + $0x8] sm:$0xff]
  %v479 = vld [vmem:[%s10 + $0x10] sm:$0xff]
  %v480 = vld [vmem:[%s10 + $0x18] sm:$0xff]
  %v481 = vld [vmem:[%s10 + $0x20] sm:$0xff]
  %v482 = vld [vmem:[%s10 + $0x28] sm:$0xff]
  %v483 = vld [vmem:[%s10 + $0x30] sm:$0xff]
  %v484 = vld [vmem:[%s10 + $0x38] sm:$0xff]
  %v485 = vsel %vm118, 1.0, 0.0
  %v486 = vsel %vm118, 0.0, 1.0
  %v488 = vrot.slane %v486, 6
  %vm490 = vcmask 1041408
  %v491 = vsel %vm490, %v485, %v488
  %v492 = vld [vmem:[#allocation2] sm:$0xf]
  %v493 = vld [vmem:[#allocation3] sm:$0xf]
  %vm494 = vcmask 523264
  %v496 = vsel %vm494, %v492, 0
  %498 = vmatprep.subr.mxu0 0.0
  %499 = vmatpush1.msra.mxu0 0.0
  %500 = vmatprep.subr.mxu0 0.0
  %501 = vmatpush1.msra.mxu0 0.0
  %502 = vmatprep.subr.mxu0 0.0
  %503 = vmatpush1.msra.mxu0 0.0
  %504 = vmatprep.subr.mxu0 0.0
  %505 = vmatpush1.msra.mxu0 0.0
  %506 = vmatprep.subr.mxu0 0.0
  %507 = vmatpush1.msra.mxu0 0.0
  %508 = vmatprep.subr.mxu0 0.0
  %509 = vmatpush1.msra.mxu0 0.0
  %510 = vmatprep.subr.mxu0 0.0
  %511 = vmatpush1.msra.mxu0 0.0
  %512 = vmatprep.subr.mxu0 0.0
  %513 = vmatpush1.msra.mxu0 0.0
  %514 = vmatprep.subr.mxu0 0.0
  %515 = vmatpush1.msra.mxu0 %v484
  %516 = vmatprep.subr.mxu0 0.0
  %517 = vmatpush1.msra.mxu0 %v483
  %518 = vmatprep.subr.mxu0 0.0
  %519 = vmatpush1.msra.mxu0 %v482
  %520 = vmatprep.subr.mxu0 0.0
  %521 = vmatpush1.msra.mxu0 %v481
  %522 = vmatprep.subr.mxu0 0.0
  %523 = vmatpush1.msra.mxu0 %v480
  %524 = vmatprep.subr.mxu0 0.0
  %525 = vmatpush1.msra.mxu0 %v479
  %526 = vmatprep.subr.mxu0 0.0
  %527 = vmatpush1.msra.mxu0 %v478
  %528 = vmatprep.subr.mxu0 0.0
  %529 = vmatpush1.msra.mxu0 %v477
  %530 = vmatprep.subr.mxu0 0.0
  %531 = vmatpush2.msra.mxu0 0.0
  %532 = vmatprep.subr.mxu0 0.0
  %533 = vmatpush2.msra.mxu0 0.0
  %534 = vmatprep.subr.mxu0 0.0
  %535 = vmatpush2.msra.mxu0 0.0
  %536 = vmatprep.subr.mxu0 0.0
  %537 = vmatpush2.msra.mxu0 0.0
  %538 = vmatprep.subr.mxu0 0.0
  %539 = vmatpush2.msra.mxu0 0.0
  %540 = vmatprep.subr.mxu0 0.0
  %541 = vmatpush2.msra.mxu0 0.0
  %542 = vmatprep.subr.mxu0 0.0
  %543 = vmatpush2.msra.mxu0 0.0
  %544 = vmatprep.subr.mxu0 0.0
  %545 = vmatpush2.msra.mxu0 0.0
  %546 = vmatprep.subr.mxu0 0.0
  %547 = vmatpush2.msra.mxu0 0.0
  %548 = vmatprep.subr.mxu0 0.0
  %549 = vmatpush2.msra.mxu0 0.0
  %550 = vmatprep.subr.mxu0 0.0
  %551 = vmatpush2.msra.mxu0 0.0
  %552 = vmatprep.subr.mxu0 0.0
  %553 = vmatpush2.msra.mxu0 0.0
  %554 = vmatprep.subr.mxu0 0.0
  %555 = vmatpush2.msra.mxu0 0.0
  %556 = vmatprep.subr.mxu0 0.0
  %557 = vmatpush2.msra.mxu0 0.0
  %558 = vmatprep.subr.mxu0 0.0
  %559 = vmatpush2.msra.mxu0 0.0
  %560 = vmatprep.subr.mxu0 0.0
  %561 = vmatpush2.msra.mxu0 0.0
  %562 = vmatprep.mubr.f32.mxu0 0.0
  %563 = vmatmul.mubr.f32.gmra.mxu0 %v496
  %v564 = vpop.f32.mrf.mxu0
  %v565 = vadd.f32 0.0, %v564
  %v566 = vpop.f32.mrf.mxu0
  %567 = vdwg.mxu0
  %v568 = vld [vmem:[#allocation4] sm:$0x3]
  %s569 = scalar_lea.vmem [#allocation5], 14
  %v570 = vld [vmem:[%s569] sm:$0x3]
  %v572 = vrot.slane %v570, 6
  %v574 = vsel %vm490, %v568, %v572
  %v575 = vadd.f32 %v574, %v565
  %v576 = vxor.u32 %v575, 2147483648
  %v577 = vmul.f32 %v576, 1.442695
  %v578 = vpow.pop %v577
  %v579 = vadd.f32 %v578, 1.0
  %v580 = vrcp.pop %v579
  %v581 = vmul.f32 1.0, %v580
  %v582 = vtanh.pop %v575
  %584 = vrot.lane.b32.xlu0 %v493, 32
  %v585 = vpop.permute.xlu0 %584
  %v587 = vmul.f32 %v581, %v585
  %589 = vrot.lane.b32.xlu0 %v582, 64
  %v590 = vpop.permute.xlu0 %589
  %v592 = vmul.f32 %v581, %v590
  %594 = vrot.lane.b32.xlu0 %v592, 32
  %v595 = vpop.permute.xlu0 %594
  %v597 = vadd.f32 %v587, %v595
  %v598 = vtanh.pop %v597
  %600 = vrot.lane.b32.xlu0 %v598, 64
  %v601 = vpop.permute.xlu0 %600
  %v603 = vmul.f32 %v581, %v601
  %605 = vrot.lane.b32.xlu0 %v603, 32
  %v606 = vpop.permute.xlu0 %605
  %vm608 = vcmask 254976
  %609 = vst.msk [vmem:[%s11] sm:$0x3] %vm608, %v606
  %s610 = scalar_lea.vmem %s95, 14
  %vm611 = vcmask 257026
  %612 = vst.msk [vmem:[%s610 - $0x2] sm:$0xc] %vm611, %v606
  %613 = vrot.lane.b32.xlu0 %v603, 64
  %v614 = vpop.permute.xlu0 %613
  %v616 = vsel %vm118, %v606, %v614
  %v617 = vmul.f32 %v491, %v616
  %v619 = vsel %vm494, %v617, 0
  %621 = vmatprep.subr.mxu0 0.0
  %622 = vmatpush1.msra.mxu0 0.0
  %623 = vmatprep.subr.mxu0 0.0
  %624 = vmatpush1.msra.mxu0 0.0
  %625 = vmatprep.subr.mxu0 0.0
  %626 = vmatpush1.msra.mxu0 0.0
  %627 = vmatprep.subr.mxu0 0.0
  %628 = vmatpush1.msra.mxu0 0.0
  %629 = vmatprep.subr.mxu0 0.0
  %630 = vmatpush1.msra.mxu0 0.0
  %631 = vmatprep.subr.mxu0 0.0
  %632 = vmatpush1.msra.mxu0 0.0
  %633 = vmatprep.subr.mxu0 0.0
  %634 = vmatpush1.msra.mxu0 0.0
  %635 = vmatprep.subr.mxu0 0.0
  %636 = vmatpush1.msra.mxu0 0.0
  %637 = vmatprep.subr.mxu0 0.0
  %638 = vmatpush1.msra.mxu0 %v484
  %639 = vmatprep.subr.mxu0 0.0
  %640 = vmatpush1.msra.mxu0 %v483
  %641 = vmatprep.subr.mxu0 0.0
  %642 = vmatpush1.msra.mxu0 %v482
  %643 = vmatprep.subr.mxu0 0.0
  %644 = vmatpush1.msra.mxu0 %v481
  %645 = vmatprep.subr.mxu0 0.0
  %646 = vmatpush1.msra.mxu0 %v480
  %647 = vmatprep.subr.mxu0 0.0
  %648 = vmatpush1.msra.mxu0 %v479
  %649 = vmatprep.subr.mxu0 0.0
  %650 = vmatpush1.msra.mxu0 %v478
  %651 = vmatprep.subr.mxu0 0.0
  %652 = vmatpush1.msra.mxu0 %v477
  %653 = vmatprep.subr.mxu0 0.0
  %654 = vmatpush2.msra.mxu0 0.0
  %655 = vmatprep.subr.mxu0 0.0
  %656 = vmatpush2.msra.mxu0 0.0
  %657 = vmatprep.subr.mxu0 0.0
  %658 = vmatpush2.msra.mxu0 0.0
  %659 = vmatprep.subr.mxu0 0.0
  %660 = vmatpush2.msra.mxu0 0.0
  %661 = vmatprep.subr.mxu0 0.0
  %662 = vmatpush2.msra.mxu0 0.0
  %663 = vmatprep.subr.mxu0 0.0
  %664 = vmatpush2.msra.mxu0 0.0
  %665 = vmatprep.subr.mxu0 0.0
  %666 = vmatpush2.msra.mxu0 0.0
  %667 = vmatprep.subr.mxu0 0.0
  %668 = vmatpush2.msra.mxu0 0.0
  %669 = vmatprep.subr.mxu0 0.0
  %670 = vmatpush2.msra.mxu0 0.0
  %671 = vmatprep.subr.mxu0 0.0
  %672 = vmatpush2.msra.mxu0 0.0
  %673 = vmatprep.subr.mxu0 0.0
  %674 = vmatpush2.msra.mxu0 0.0
  %675 = vmatprep.subr.mxu0 0.0
  %676 = vmatpush2.msra.mxu0 0.0
  %677 = vmatprep.subr.mxu0 0.0
  %678 = vmatpush2.msra.mxu0 0.0
  %679 = vmatprep.subr.mxu0 0.0
  %680 = vmatpush2.msra.mxu0 0.0
  %681 = vmatprep.subr.mxu0 0.0
  %682 = vmatpush2.msra.mxu0 0.0
  %683 = vmatprep.subr.mxu0 0.0
  %684 = vmatpush2.msra.mxu0 0.0
  %685 = vmatprep.mubr.f32.mxu0 0.0
  %686 = vmatmul.mubr.f32.gmra.mxu0 %v619
  %v687 = vpop.f32.mrf.mxu0
  %v688 = vadd.f32 0.0, %v687
  %v689 = vpop.f32.mrf.mxu0
  %690 = vdwg.mxu0
  %s691 = scalar_lea.vmem [#allocation4], 2
  %v692 = vld [vmem:[%s691] sm:$0x3]
  %s693 = scalar_lea.vmem [#allocation5], 12
  %v694 = vld [vmem:[%s693] sm:$0x3]
  %v696 = vrot.slane %v694, 6
  %v698 = vsel %vm490, %v692, %v696
  %v699 = vadd.f32 %v698, %v688
  %v700 = vxor.u32 %v699, 2147483648
  %v701 = vmul.f32 %v700, 1.442695
  %v702 = vpow.pop %v701
  %v703 = vadd.f32 %v702, 1.0
  %v704 = vrcp.pop %v703
  %v705 = vmul.f32 1.0, %v704
  %v706 = vtanh.pop %v699
  %v707 = vmul.f32 %v705, %v597
  %709 = vrot.lane.b32.xlu0 %v706, 64
  %v710 = vpop.permute.xlu0 %709
  %v712 = vmul.f32 %v705, %v710
  %714 = vrot.lane.b32.xlu0 %v712, 32
  %v715 = vpop.permute.xlu0 %714
  %v717 = vadd.f32 %v707, %v715
  %v718 = vtanh.pop %v717
  %720 = vrot.lane.b32.xlu0 %v718, 64
  %v721 = vpop.permute.xlu0 %720
  %v723 = vmul.f32 %v705, %v721
  %725 = vrot.lane.b32.xlu0 %v723, 32
  %v726 = vpop.permute.xlu0 %725
  %s728 = scalar_lea.vmem %s11, 2
  %729 = vst.msk [vmem:[%s728] sm:$0x3] %vm608, %v726
  %s730 = scalar_lea.vmem %s95, 12
  %731 = vst.msk [vmem:[%s730 - $0x2] sm:$0xc] %vm611, %v726
  %732 = vrot.lane.b32.xlu0 %v723, 64
  %v733 = vpop.permute.xlu0 %732
  %v735 = vsel %vm118, %v726, %v733
  %v736 = vmul.f32 %v491, %v735
  %v738 = vsel %vm494, %v736, 0
  %740 = vmatprep.subr.mxu0 0.0
  %741 = vmatpush1.msra.mxu0 0.0
  %742 = vmatprep.subr.mxu0 0.0
  %743 = vmatpush1.msra.mxu0 0.0
  %744 = vmatprep.subr.mxu0 0.0
  %745 = vmatpush1.msra.mxu0 0.0
  %746 = vmatprep.subr.mxu0 0.0
  %747 = vmatpush1.msra.mxu0 0.0
  %748 = vmatprep.subr.mxu0 0.0
  %749 = vmatpush1.msra.mxu0 0.0
  %750 = vmatprep.subr.mxu0 0.0
  %751 = vmatpush1.msra.mxu0 0.0
  %752 = vmatprep.subr.mxu0 0.0
  %753 = vmatpush1.msra.mxu0 0.0
  %754 = vmatprep.subr.mxu0 0.0
  %755 = vmatpush1.msra.mxu0 0.0
  %756 = vmatprep.subr.mxu0 0.0
  %757 = vmatpush1.msra.mxu0 %v484
  %758 = vmatprep.subr.mxu0 0.0
  %759 = vmatpush1.msra.mxu0 %v483
  %760 = vmatprep.subr.mxu0 0.0
  %761 = vmatpush1.msra.mxu0 %v482
  %762 = vmatprep.subr.mxu0 0.0
  %763 = vmatpush1.msra.mxu0 %v481
  %764 = vmatprep.subr.mxu0 0.0
  %765 = vmatpush1.msra.mxu0 %v480
  %766 = vmatprep.subr.mxu0 0.0
  %767 = vmatpush1.msra.mxu0 %v479
  %768 = vmatprep.subr.mxu0 0.0
  %769 = vmatpush1.msra.mxu0 %v478
  %770 = vmatprep.subr.mxu0 0.0
  %771 = vmatpush1.msra.mxu0 %v477
  %772 = vmatprep.subr.mxu0 0.0
  %773 = vmatpush2.msra.mxu0 0.0
  %774 = vmatprep.subr.mxu0 0.0
  %775 = vmatpush2.msra.mxu0 0.0
  %776 = vmatprep.subr.mxu0 0.0
  %777 = vmatpush2.msra.mxu0 0.0
  %778 = vmatprep.subr.mxu0 0.0
  %779 = vmatpush2.msra.mxu0 0.0
  %780 = vmatprep.subr.mxu0 0.0
  %781 = vmatpush2.msra.mxu0 0.0
  %782 = vmatprep.subr.mxu0 0.0
  %783 = vmatpush2.msra.mxu0 0.0
  %784 = vmatprep.subr.mxu0 0.0
  %785 = vmatpush2.msra.mxu0 0.0
  %786 = vmatprep.subr.mxu0 0.0
  %787 = vmatpush2.msra.mxu0 0.0
  %788 = vmatprep.subr.mxu0 0.0
  %789 = vmatpush2.msra.mxu0 0.0
  %790 = vmatprep.subr.mxu0 0.0
  %791 = vmatpush2.msra.mxu0 0.0
  %792 = vmatprep.subr.mxu0 0.0
  %793 = vmatpush2.msra.mxu0 0.0
  %794 = vmatprep.subr.mxu0 0.0
  %795 = vmatpush2.msra.mxu0 0.0
  %796 = vmatprep.subr.mxu0 0.0
  %797 = vmatpush2.msra.mxu0 0.0
  %798 = vmatprep.subr.mxu0 0.0
  %799 = vmatpush2.msra.mxu0 0.0
  %800 = vmatprep.subr.mxu0 0.0
  %801 = vmatpush2.msra.mxu0 0.0
  %802 = vmatprep.subr.mxu0 0.0
  %803 = vmatpush2.msra.mxu0 0.0
  %804 = vmatprep.mubr.f32.mxu0 0.0
  %805 = vmatmul.mubr.f32.gmra.mxu0 %v738
  %v806 = vpop.f32.mrf.mxu0
  %v807 = vadd.f32 0.0, %v806
  %v808 = vpop.f32.mrf.mxu0
  %809 = vdwg.mxu0
  %s810 = scalar_lea.vmem [#allocation4], 4
  %v811 = vld [vmem:[%s810] sm:$0x3]
  %s812 = scalar_lea.vmem [#allocation5], 10
  %v813 = vld [vmem:[%s812] sm:$0x3]
  %v815 = vrot.slane %v813, 6
  %v817 = vsel %vm490, %v811, %v815
  %v818 = vadd.f32 %v817, %v807
  %v819 = vxor.u32 %v818, 2147483648
  %v820 = vmul.f32 %v819, 1.442695
  %v821 = vpow.pop %v820
  %v822 = vadd.f32 %v821, 1.0
  %v823 = vrcp.pop %v822
  %v824 = vmul.f32 1.0, %v823
  %v825 = vtanh.pop %v818
  %v826 = vmul.f32 %v824, %v717
  %828 = vrot.lane.b32.xlu0 %v825, 64
  %v829 = vpop.permute.xlu0 %828
  %v831 = vmul.f32 %v824, %v829
  %833 = vrot.lane.b32.xlu0 %v831, 32
  %v834 = vpop.permute.xlu0 %833
  %v836 = vadd.f32 %v826, %v834
  %v837 = vtanh.pop %v836
  %839 = vrot.lane.b32.xlu0 %v837, 64
  %v840 = vpop.permute.xlu0 %839
  %v842 = vmul.f32 %v824, %v840
  %844 = vrot.lane.b32.xlu0 %v842, 32
  %v845 = vpop.permute.xlu0 %844
  %s847 = scalar_lea.vmem %s11, 4
  %848 = vst.msk [vmem:[%s847] sm:$0x3] %vm608, %v845
  %s849 = scalar_lea.vmem %s95, 10
  %850 = vst.msk [vmem:[%s849 - $0x2] sm:$0xc] %vm611, %v845
  %851 = vrot.lane.b32.xlu0 %v842, 64
  %v852 = vpop.permute.xlu0 %851
  %v854 = vsel %vm118, %v845, %v852
  %v855 = vmul.f32 %v491, %v854
  %v857 = vsel %vm494, %v855, 0
  %859 = vmatprep.subr.mxu0 0.0
  %860 = vmatpush1.msra.mxu0 0.0
  %861 = vmatprep.subr.mxu0 0.0
  %862 = vmatpush1.msra.mxu0 0.0
  %863 = vmatprep.subr.mxu0 0.0
  %864 = vmatpush1.msra.mxu0 0.0
  %865 = vmatprep.subr.mxu0 0.0
  %866 = vmatpush1.msra.mxu0 0.0
  %867 = vmatprep.subr.mxu0 0.0
  %868 = vmatpush1.msra.mxu0 0.0
  %869 = vmatprep.subr.mxu0 0.0
  %870 = vmatpush1.msra.mxu0 0.0
  %871 = vmatprep.subr.mxu0 0.0
  %872 = vmatpush1.msra.mxu0 0.0
  %873 = vmatprep.subr.mxu0 0.0
  %874 = vmatpush1.msra.mxu0 0.0
  %875 = vmatprep.subr.mxu0 0.0
  %876 = vmatpush1.msra.mxu0 %v484
  %877 = vmatprep.subr.mxu0 0.0
  %878 = vmatpush1.msra.mxu0 %v483
  %879 = vmatprep.subr.mxu0 0.0
  %880 = vmatpush1.msra.mxu0 %v482
  %881 = vmatprep.subr.mxu0 0.0
  %882 = vmatpush1.msra.mxu0 %v481
  %883 = vmatprep.subr.mxu0 0.0
  %884 = vmatpush1.msra.mxu0 %v480
  %885 = vmatprep.subr.mxu0 0.0
  %886 = vmatpush1.msra.mxu0 %v479
  %887 = vmatprep.subr.mxu0 0.0
  %888 = vmatpush1.msra.mxu0 %v478
  %889 = vmatprep.subr.mxu0 0.0
  %890 = vmatpush1.msra.mxu0 %v477
  %891 = vmatprep.subr.mxu0 0.0
  %892 = vmatpush2.msra.mxu0 0.0
  %893 = vmatprep.subr.mxu0 0.0
  %894 = vmatpush2.msra.mxu0 0.0
  %895 = vmatprep.subr.mxu0 0.0
  %896 = vmatpush2.msra.mxu0 0.0
  %897 = vmatprep.subr.mxu0 0.0
  %898 = vmatpush2.msra.mxu0 0.0
  %899 = vmatprep.subr.mxu0 0.0
  %900 = vmatpush2.msra.mxu0 0.0
  %901 = vmatprep.subr.mxu0 0.0
  %902 = vmatpush2.msra.mxu0 0.0
  %903 = vmatprep.subr.mxu0 0.0
  %904 = vmatpush2.msra.mxu0 0.0
  %905 = vmatprep.subr.mxu0 0.0
  %906 = vmatpush2.msra.mxu0 0.0
  %907 = vmatprep.subr.mxu0 0.0
  %908 = vmatpush2.msra.mxu0 0.0
  %909 = vmatprep.subr.mxu0 0.0
  %910 = vmatpush2.msra.mxu0 0.0
  %911 = vmatprep.subr.mxu0 0.0
  %912 = vmatpush2.msra.mxu0 0.0
  %913 = vmatprep.subr.mxu0 0.0
  %914 = vmatpush2.msra.mxu0 0.0
  %915 = vmatprep.subr.mxu0 0.0
  %916 = vmatpush2.msra.mxu0 0.0
  %917 = vmatprep.subr.mxu0 0.0
  %918 = vmatpush2.msra.mxu0 0.0
  %919 = vmatprep.subr.mxu0 0.0
  %920 = vmatpush2.msra.mxu0 0.0
  %921 = vmatprep.subr.mxu0 0.0
  %922 = vmatpush2.msra.mxu0 0.0
  %923 = vmatprep.mubr.f32.mxu0 0.0
  %924 = vmatmul.mubr.f32.gmra.mxu0 %v857
  %v925 = vpop.f32.mrf.mxu0
  %v926 = vadd.f32 0.0, %v925
  %v927 = vpop.f32.mrf.mxu0
  %928 = vdwg.mxu0
  %s929 = scalar_lea.vmem [#allocation4], 6
  %v930 = vld [vmem:[%s929] sm:$0x3]
  %s931 = scalar_lea.vmem [#allocation5], 8
  %v932 = vld [vmem:[%s931] sm:$0x3]
  %v934 = vrot.slane %v932, 6
  %v936 = vsel %vm490, %v930, %v934
  %v937 = vadd.f32 %v936, %v926
  %v938 = vxor.u32 %v937, 2147483648
  %v939 = vmul.f32 %v938, 1.442695
  %v940 = vpow.pop %v939
  %v941 = vadd.f32 %v940, 1.0
  %v942 = vrcp.pop %v941
  %v943 = vmul.f32 1.0, %v942
  %v944 = vtanh.pop %v937
  %v945 = vmul.f32 %v943, %v836
  %947 = vrot.lane.b32.xlu0 %v944, 64
  %v948 = vpop.permute.xlu0 %947
  %v950 = vmul.f32 %v943, %v948
  %952 = vrot.lane.b32.xlu0 %v950, 32
  %v953 = vpop.permute.xlu0 %952
  %v955 = vadd.f32 %v945, %v953
  %v956 = vtanh.pop %v955
  %958 = vrot.lane.b32.xlu0 %v956, 64
  %v959 = vpop.permute.xlu0 %958
  %v961 = vmul.f32 %v943, %v959
  %963 = vrot.lane.b32.xlu0 %v961, 32
  %v964 = vpop.permute.xlu0 %963
  %s966 = scalar_lea.vmem %s11, 6
  %967 = vst.msk [vmem:[%s966] sm:$0x3] %vm608, %v964
  %s968 = scalar_lea.vmem %s95, 8
  %969 = vst.msk [vmem:[%s968 - $0x2] sm:$0xc] %vm611, %v964
  %970 = vrot.lane.b32.xlu0 %v961, 64
  %v971 = vpop.permute.xlu0 %970
  %v973 = vsel %vm118, %v964, %v971
  %v974 = vmul.f32 %v491, %v973
  %v976 = vsel %vm494, %v974, 0
  %978 = vmatprep.subr.mxu0 0.0
  %979 = vmatpush1.msra.mxu0 0.0
  %980 = vmatprep.subr.mxu0 0.0
  %981 = vmatpush1.msra.mxu0 0.0
  %982 = vmatprep.subr.mxu0 0.0
  %983 = vmatpush1.msra.mxu0 0.0
  %984 = vmatprep.subr.mxu0 0.0
  %985 = vmatpush1.msra.mxu0 0.0
  %986 = vmatprep.subr.mxu0 0.0
  %987 = vmatpush1.msra.mxu0 0.0
  %988 = vmatprep.subr.mxu0 0.0
  %989 = vmatpush1.msra.mxu0 0.0
  %990 = vmatprep.subr.mxu0 0.0
  %991 = vmatpush1.msra.mxu0 0.0
  %992 = vmatprep.subr.mxu0 0.0
  %993 = vmatpush1.msra.mxu0 0.0
  %994 = vmatprep.subr.mxu0 0.0
  %995 = vmatpush1.msra.mxu0 %v484
  %996 = vmatprep.subr.mxu0 0.0
  %997 = vmatpush1.msra.mxu0 %v483
  %998 = vmatprep.subr.mxu0 0.0
  %999 = vmatpush1.msra.mxu0 %v482
  %1000 = vmatprep.subr.mxu0 0.0
  %1001 = vmatpush1.msra.mxu0 %v481
  %1002 = vmatprep.subr.mxu0 0.0
  %1003 = vmatpush1.msra.mxu0 %v480
  %1004 = vmatprep.subr.mxu0 0.0
  %1005 = vmatpush1.msra.mxu0 %v479
  %1006 = vmatprep.subr.mxu0 0.0
  %1007 = vmatpush1.msra.mxu0 %v478
  %1008 = vmatprep.subr.mxu0 0.0
  %1009 = vmatpush1.msra.mxu0 %v477
  %1010 = vmatprep.subr.mxu0 0.0
  %1011 = vmatpush2.msra.mxu0 0.0
  %1012 = vmatprep.subr.mxu0 0.0
  %1013 = vmatpush2.msra.mxu0 0.0
  %1014 = vmatprep.subr.mxu0 0.0
  %1015 = vmatpush2.msra.mxu0 0.0
  %1016 = vmatprep.subr.mxu0 0.0
  %1017 = vmatpush2.msra.mxu0 0.0
  %1018 = vmatprep.subr.mxu0 0.0
  %1019 = vmatpush2.msra.mxu0 0.0
  %1020 = vmatprep.subr.mxu0 0.0
  %1021 = vmatpush2.msra.mxu0 0.0
  %1022 = vmatprep.subr.mxu0 0.0
  %1023 = vmatpush2.msra.mxu0 0.0
  %1024 = vmatprep.subr.mxu0 0.0
  %1025 = vmatpush2.msra.mxu0 0.0
  %1026 = vmatprep.subr.mxu0 0.0
  %1027 = vmatpush2.msra.mxu0 0.0
  %1028 = vmatprep.subr.mxu0 0.0
  %1029 = vmatpush2.msra.mxu0 0.0
  %1030 = vmatprep.subr.mxu0 0.0
  %1031 = vmatpush2.msra.mxu0 0.0
  %1032 = vmatprep.subr.mxu0 0.0
  %1033 = vmatpush2.msra.mxu0 0.0
  %1034 = vmatprep.subr.mxu0 0.0
  %1035 = vmatpush2.msra.mxu0 0.0
  %1036 = vmatprep.subr.mxu0 0.0
  %1037 = vmatpush2.msra.mxu0 0.0
  %1038 = vmatprep.subr.mxu0 0.0
  %1039 = vmatpush2.msra.mxu0 0.0
  %1040 = vmatprep.subr.mxu0 0.0
  %1041 = vmatpush2.msra.mxu0 0.0
  %1042 = vmatprep.mubr.f32.mxu0 0.0
  %1043 = vmatmul.mubr.f32.gmra.mxu0 %v976
  %v1044 = vpop.f32.mrf.mxu0
  %v1045 = vadd.f32 0.0, %v1044
  %v1046 = vpop.f32.mrf.mxu0
  %1047 = vdwg.mxu0
  %s1048 = scalar_lea.vmem [#allocation4], 8
  %v1049 = vld [vmem:[%s1048] sm:$0x3]
  %s1050 = scalar_lea.vmem [#allocation5], 6
  %v1051 = vld [vmem:[%s1050] sm:$0x3]
  %v1053 = vrot.slane %v1051, 6
  %v1055 = vsel %vm490, %v1049, %v1053
  %v1056 = vadd.f32 %v1055, %v1045
  %v1057 = vxor.u32 %v1056, 2147483648
  %v1058 = vmul.f32 %v1057, 1.442695
  %v1059 = vpow.pop %v1058
  %v1060 = vadd.f32 %v1059, 1.0
  %v1061 = vrcp.pop %v1060
  %v1062 = vmul.f32 1.0, %v1061
  %v1063 = vtanh.pop %v1056
  %v1064 = vmul.f32 %v1062, %v955
  %1066 = vrot.lane.b32.xlu0 %v1063, 64
  %v1067 = vpop.permute.xlu0 %1066
  %v1069 = vmul.f32 %v1062, %v1067
  %1071 = vrot.lane.b32.xlu0 %v1069, 32
  %v1072 = vpop.permute.xlu0 %1071
  %v1074 = vadd.f32 %v1064, %v1072
  %v1075 = vtanh.pop %v1074
  %1077 = vrot.lane.b32.xlu0 %v1075, 64
  %v1078 = vpop.permute.xlu0 %1077
  %v1080 = vmul.f32 %v1062, %v1078
  %1082 = vrot.lane.b32.xlu0 %v1080, 32
  %v1083 = vpop.permute.xlu0 %1082
  %s1085 = scalar_lea.vmem %s11, 8
  %1086 = vst.msk [vmem:[%s1085] sm:$0x3] %vm608, %v1083
  %s1087 = scalar_lea.vmem %s95, 6
  %1088 = vst.msk [vmem:[%s1087 - $0x2] sm:$0xc] %vm611, %v1083
  %1089 = vrot.lane.b32.xlu0 %v1080, 64
  %v1090 = vpop.permute.xlu0 %1089
  %v1092 = vsel %vm118, %v1083, %v1090
  %v1093 = vmul.f32 %v491, %v1092
  %v1095 = vsel %vm494, %v1093, 0
  %1097 = vmatprep.subr.mxu0 0.0
  %1098 = vmatpush1.msra.mxu0 0.0
  %1099 = vmatprep.subr.mxu0 0.0
  %1100 = vmatpush1.msra.mxu0 0.0
  %1101 = vmatprep.subr.mxu0 0.0
  %1102 = vmatpush1.msra.mxu0 0.0
  %1103 = vmatprep.subr.mxu0 0.0
  %1104 = vmatpush1.msra.mxu0 0.0
  %1105 = vmatprep.subr.mxu0 0.0
  %1106 = vmatpush1.msra.mxu0 0.0
  %1107 = vmatprep.subr.mxu0 0.0
  %1108 = vmatpush1.msra.mxu0 0.0
  %1109 = vmatprep.subr.mxu0 0.0
  %1110 = vmatpush1.msra.mxu0 0.0
  %1111 = vmatprep.subr.mxu0 0.0
  %1112 = vmatpush1.msra.mxu0 0.0
  %1113 = vmatprep.subr.mxu0 0.0
  %1114 = vmatpush1.msra.mxu0 %v484
  %1115 = vmatprep.subr.mxu0 0.0
  %1116 = vmatpush1.msra.mxu0 %v483
  %1117 = vmatprep.subr.mxu0 0.0
  %1118 = vmatpush1.msra.mxu0 %v482
  %1119 = vmatprep.subr.mxu0 0.0
  %1120 = vmatpush1.msra.mxu0 %v481
  %1121 = vmatprep.subr.mxu0 0.0
  %1122 = vmatpush1.msra.mxu0 %v480
  %1123 = vmatprep.subr.mxu0 0.0
  %1124 = vmatpush1.msra.mxu0 %v479
  %1125 = vmatprep.subr.mxu0 0.0
  %1126 = vmatpush1.msra.mxu0 %v478
  %1127 = vmatprep.subr.mxu0 0.0
  %1128 = vmatpush1.msra.mxu0 %v477
  %1129 = vmatprep.subr.mxu0 0.0
  %1130 = vmatpush2.msra.mxu0 0.0
  %1131 = vmatprep.subr.mxu0 0.0
  %1132 = vmatpush2.msra.mxu0 0.0
  %1133 = vmatprep.subr.mxu0 0.0
  %1134 = vmatpush2.msra.mxu0 0.0
  %1135 = vmatprep.subr.mxu0 0.0
  %1136 = vmatpush2.msra.mxu0 0.0
  %1137 = vmatprep.subr.mxu0 0.0
  %1138 = vmatpush2.msra.mxu0 0.0
  %1139 = vmatprep.subr.mxu0 0.0
  %1140 = vmatpush2.msra.mxu0 0.0
  %1141 = vmatprep.subr.mxu0 0.0
  %1142 = vmatpush2.msra.mxu0 0.0
  %1143 = vmatprep.subr.mxu0 0.0
  %1144 = vmatpush2.msra.mxu0 0.0
  %1145 = vmatprep.subr.mxu0 0.0
  %1146 = vmatpush2.msra.mxu0 0.0
  %1147 = vmatprep.subr.mxu0 0.0
  %1148 = vmatpush2.msra.mxu0 0.0
  %1149 = vmatprep.subr.mxu0 0.0
  %1150 = vmatpush2.msra.mxu0 0.0
  %1151 = vmatprep.subr.mxu0 0.0
  %1152 = vmatpush2.msra.mxu0 0.0
  %1153 = vmatprep.subr.mxu0 0.0
  %1154 = vmatpush2.msra.mxu0 0.0
  %1155 = vmatprep.subr.mxu0 0.0
  %1156 = vmatpush2.msra.mxu0 0.0
  %1157 = vmatprep.subr.mxu0 0.0
  %1158 = vmatpush2.msra.mxu0 0.0
  %1159 = vmatprep.subr.mxu0 0.0
  %1160 = vmatpush2.msra.mxu0 0.0
  %1161 = vmatprep.mubr.f32.mxu0 0.0
  %1162 = vmatmul.mubr.f32.gmra.mxu0 %v1095
  %v1163 = vpop.f32.mrf.mxu0
  %v1164 = vadd.f32 0.0, %v1163
  %v1165 = vpop.f32.mrf.mxu0
  %1166 = vdwg.mxu0
  %s1167 = scalar_lea.vmem [#allocation4], 10
  %v1168 = vld [vmem:[%s1167] sm:$0x3]
  %s1169 = scalar_lea.vmem [#allocation5], 4
  %v1170 = vld [vmem:[%s1169] sm:$0x3]
  %v1172 = vrot.slane %v1170, 6
  %v1174 = vsel %vm490, %v1168, %v1172
  %v1175 = vadd.f32 %v1174, %v1164
  %v1176 = vxor.u32 %v1175, 2147483648
  %v1177 = vmul.f32 %v1176, 1.442695
  %v1178 = vpow.pop %v1177
  %v1179 = vadd.f32 %v1178, 1.0
  %v1180 = vrcp.pop %v1179
  %v1181 = vmul.f32 1.0, %v1180
  %v1182 = vtanh.pop %v1175
  %v1183 = vmul.f32 %v1181, %v1074
  %1185 = vrot.lane.b32.xlu0 %v1182, 64
  %v1186 = vpop.permute.xlu0 %1185
  %v1188 = vmul.f32 %v1181, %v1186
  %1190 = vrot.lane.b32.xlu0 %v1188, 32
  %v1191 = vpop.permute.xlu0 %1190
  %v1193 = vadd.f32 %v1183, %v1191
  %v1194 = vtanh.pop %v1193
  %1196 = vrot.lane.b32.xlu0 %v1194, 64
  %v1197 = vpop.permute.xlu0 %1196
  %v1199 = vmul.f32 %v1181, %v1197
  %1201 = vrot.lane.b32.xlu0 %v1199, 32
  %v1202 = vpop.permute.xlu0 %1201
  %s1204 = scalar_lea.vmem %s11, 10
  %1205 = vst.msk [vmem:[%s1204] sm:$0x3] %vm608, %v1202
  %s1206 = scalar_lea.vmem %s95, 4
  %1207 = vst.msk [vmem:[%s1206 - $0x2] sm:$0xc] %vm611, %v1202
  %1208 = vrot.lane.b32.xlu0 %v1199, 64
  %v1209 = vpop.permute.xlu0 %1208
  %v1211 = vsel %vm118, %v1202, %v1209
  %v1212 = vmul.f32 %v491, %v1211
  %v1214 = vsel %vm494, %v1212, 0
  %1216 = vmatprep.subr.mxu0 0.0
  %1217 = vmatpush1.msra.mxu0 0.0
  %1218 = vmatprep.subr.mxu0 0.0
  %1219 = vmatpush1.msra.mxu0 0.0
  %1220 = vmatprep.subr.mxu0 0.0
  %1221 = vmatpush1.msra.mxu0 0.0
  %1222 = vmatprep.subr.mxu0 0.0
  %1223 = vmatpush1.msra.mxu0 0.0
  %1224 = vmatprep.subr.mxu0 0.0
  %1225 = vmatpush1.msra.mxu0 0.0
  %1226 = vmatprep.subr.mxu0 0.0
  %1227 = vmatpush1.msra.mxu0 0.0
  %1228 = vmatprep.subr.mxu0 0.0
  %1229 = vmatpush1.msra.mxu0 0.0
  %1230 = vmatprep.subr.mxu0 0.0
  %1231 = vmatpush1.msra.mxu0 0.0
  %1232 = vmatprep.subr.mxu0 0.0
  %1233 = vmatpush1.msra.mxu0 %v484
  %1234 = vmatprep.subr.mxu0 0.0
  %1235 = vmatpush1.msra.mxu0 %v483
  %1236 = vmatprep.subr.mxu0 0.0
  %1237 = vmatpush1.msra.mxu0 %v482
  %1238 = vmatprep.subr.mxu0 0.0
  %1239 = vmatpush1.msra.mxu0 %v481
  %1240 = vmatprep.subr.mxu0 0.0
  %1241 = vmatpush1.msra.mxu0 %v480
  %1242 = vmatprep.subr.mxu0 0.0
  %1243 = vmatpush1.msra.mxu0 %v479
  %1244 = vmatprep.subr.mxu0 0.0
  %1245 = vmatpush1.msra.mxu0 %v478
  %1246 = vmatprep.subr.mxu0 0.0
  %1247 = vmatpush1.msra.mxu0 %v477
  %1248 = vmatprep.subr.mxu0 0.0
  %1249 = vmatpush2.msra.mxu0 0.0
  %1250 = vmatprep.subr.mxu0 0.0
  %1251 = vmatpush2.msra.mxu0 0.0
  %1252 = vmatprep.subr.mxu0 0.0
  %1253 = vmatpush2.msra.mxu0 0.0
  %1254 = vmatprep.subr.mxu0 0.0
  %1255 = vmatpush2.msra.mxu0 0.0
  %1256 = vmatprep.subr.mxu0 0.0
  %1257 = vmatpush2.msra.mxu0 0.0
  %1258 = vmatprep.subr.mxu0 0.0
  %1259 = vmatpush2.msra.mxu0 0.0
  %1260 = vmatprep.subr.mxu0 0.0
  %1261 = vmatpush2.msra.mxu0 0.0
  %1262 = vmatprep.subr.mxu0 0.0
  %1263 = vmatpush2.msra.mxu0 0.0
  %1264 = vmatprep.subr.mxu0 0.0
  %1265 = vmatpush2.msra.mxu0 0.0
  %1266 = vmatprep.subr.mxu0 0.0
  %1267 = vmatpush2.msra.mxu0 0.0
  %1268 = vmatprep.subr.mxu0 0.0
  %1269 = vmatpush2.msra.mxu0 0.0
  %1270 = vmatprep.subr.mxu0 0.0
  %1271 = vmatpush2.msra.mxu0 0.0
  %1272 = vmatprep.subr.mxu0 0.0
  %1273 = vmatpush2.msra.mxu0 0.0
  %1274 = vmatprep.subr.mxu0 0.0
  %1275 = vmatpush2.msra.mxu0 0.0
  %1276 = vmatprep.subr.mxu0 0.0
  %1277 = vmatpush2.msra.mxu0 0.0
  %1278 = vmatprep.subr.mxu0 0.0
  %1279 = vmatpush2.msra.mxu0 0.0
  %1280 = vmatprep.mubr.f32.mxu0 0.0
  %1281 = vmatmul.mubr.f32.gmra.mxu0 %v1214
  %v1282 = vpop.f32.mrf.mxu0
  %v1283 = vadd.f32 0.0, %v1282
  %v1284 = vpop.f32.mrf.mxu0
  %1285 = vdwg.mxu0
  %s1286 = scalar_lea.vmem [#allocation4], 12
  %v1287 = vld [vmem:[%s1286] sm:$0x3]
  %s1288 = scalar_lea.vmem [#allocation5], 2
  %v1289 = vld [vmem:[%s1288] sm:$0x3]
  %v1291 = vrot.slane %v1289, 6
  %v1293 = vsel %vm490, %v1287, %v1291
  %v1294 = vadd.f32 %v1293, %v1283
  %v1295 = vxor.u32 %v1294, 2147483648
  %v1296 = vmul.f32 %v1295, 1.442695
  %v1297 = vpow.pop %v1296
  %v1298 = vadd.f32 %v1297, 1.0
  %v1299 = vrcp.pop %v1298
  %v1300 = vmul.f32 1.0, %v1299
  %v1301 = vtanh.pop %v1294
  %v1302 = vmul.f32 %v1300, %v1193
  %1304 = vrot.lane.b32.xlu0 %v1301, 64
  %v1305 = vpop.permute.xlu0 %1304
  %v1307 = vmul.f32 %v1300, %v1305
  %1309 = vrot.lane.b32.xlu0 %v1307, 32
  %v1310 = vpop.permute.xlu0 %1309
  %v1312 = vadd.f32 %v1302, %v1310
  %v1313 = vtanh.pop %v1312
  %1315 = vrot.lane.b32.xlu0 %v1313, 64
  %v1316 = vpop.permute.xlu0 %1315
  %v1318 = vmul.f32 %v1300, %v1316
  %1320 = vrot.lane.b32.xlu0 %v1318, 32
  %v1321 = vpop.permute.xlu0 %1320
  %s1323 = scalar_lea.vmem %s11, 12
  %1324 = vst.msk [vmem:[%s1323] sm:$0x3] %vm608, %v1321
  %s1325 = scalar_lea.vmem %s95, 2
  %1326 = vst.msk [vmem:[%s1325 - $0x2] sm:$0xc] %vm611, %v1321
  %1327 = vrot.lane.b32.xlu0 %v1318, 64
  %v1328 = vpop.permute.xlu0 %1327
  %v1330 = vsel %vm118, %v1321, %v1328
  %v1331 = vmul.f32 %v491, %v1330
  %v1333 = vsel %vm494, %v1331, 0
  %1335 = vmatprep.subr.mxu0 0.0
  %1336 = vmatpush1.msra.mxu0 0.0
  %1337 = vmatprep.subr.mxu0 0.0
  %1338 = vmatpush1.msra.mxu0 0.0
  %1339 = vmatprep.subr.mxu0 0.0
  %1340 = vmatpush1.msra.mxu0 0.0
  %1341 = vmatprep.subr.mxu0 0.0
  %1342 = vmatpush1.msra.mxu0 0.0
  %1343 = vmatprep.subr.mxu0 0.0
  %1344 = vmatpush1.msra.mxu0 0.0
  %1345 = vmatprep.subr.mxu0 0.0
  %1346 = vmatpush1.msra.mxu0 0.0
  %1347 = vmatprep.subr.mxu0 0.0
  %1348 = vmatpush1.msra.mxu0 0.0
  %1349 = vmatprep.subr.mxu0 0.0
  %1350 = vmatpush1.msra.mxu0 0.0
  %1351 = vmatprep.subr.mxu0 0.0
  %1352 = vmatpush1.msra.mxu0 %v484
  %1353 = vmatprep.subr.mxu0 0.0
  %1354 = vmatpush1.msra.mxu0 %v483
  %1355 = vmatprep.subr.mxu0 0.0
  %1356 = vmatpush1.msra.mxu0 %v482
  %1357 = vmatprep.subr.mxu0 0.0
  %1358 = vmatpush1.msra.mxu0 %v481
  %1359 = vmatprep.subr.mxu0 0.0
  %1360 = vmatpush1.msra.mxu0 %v480
  %1361 = vmatprep.subr.mxu0 0.0
  %1362 = vmatpush1.msra.mxu0 %v479
  %1363 = vmatprep.subr.mxu0 0.0
  %1364 = vmatpush1.msra.mxu0 %v478
  %1365 = vmatprep.subr.mxu0 0.0
  %1366 = vmatpush1.msra.mxu0 %v477
  %1367 = vmatprep.subr.mxu0 0.0
  %1368 = vmatpush2.msra.mxu0 0.0
  %1369 = vmatprep.subr.mxu0 0.0
  %1370 = vmatpush2.msra.mxu0 0.0
  %1371 = vmatprep.subr.mxu0 0.0
  %1372 = vmatpush2.msra.mxu0 0.0
  %1373 = vmatprep.subr.mxu0 0.0
  %1374 = vmatpush2.msra.mxu0 0.0
  %1375 = vmatprep.subr.mxu0 0.0
  %1376 = vmatpush2.msra.mxu0 0.0
  %1377 = vmatprep.subr.mxu0 0.0
  %1378 = vmatpush2.msra.mxu0 0.0
  %1379 = vmatprep.subr.mxu0 0.0
  %1380 = vmatpush2.msra.mxu0 0.0
  %1381 = vmatprep.subr.mxu0 0.0
  %1382 = vmatpush2.msra.mxu0 0.0
  %1383 = vmatprep.subr.mxu0 0.0
  %1384 = vmatpush2.msra.mxu0 0.0
  %1385 = vmatprep.subr.mxu0 0.0
  %1386 = vmatpush2.msra.mxu0 0.0
  %1387 = vmatprep.subr.mxu0 0.0
  %1388 = vmatpush2.msra.mxu0 0.0
  %1389 = vmatprep.subr.mxu0 0.0
  %1390 = vmatpush2.msra.mxu0 0.0
  %1391 = vmatprep.subr.mxu0 0.0
  %1392 = vmatpush2.msra.mxu0 0.0
  %1393 = vmatprep.subr.mxu0 0.0
  %1394 = vmatpush2.msra.mxu0 0.0
  %1395 = vmatprep.subr.mxu0 0.0
  %1396 = vmatpush2.msra.mxu0 0.0
  %1397 = vmatprep.subr.mxu0 0.0
  %1398 = vmatpush2.msra.mxu0 0.0
  %1399 = vmatprep.mubr.f32.mxu0 0.0
  %1400 = vmatmul.mubr.f32.gmra.mxu0 %v1333
  %v1401 = vpop.f32.mrf.mxu0
  %v1402 = vadd.f32 0.0, %v1401
  %v1403 = vpop.f32.mrf.mxu0
  %1404 = vdwg.mxu0
  %s1405 = scalar_lea.vmem [#allocation4], 14
  %v1406 = vld [vmem:[%s1405] sm:$0x3]
  %v1407 = vld [vmem:[#allocation5] sm:$0x3]
  %v1409 = vrot.slane %v1407, 6
  %v1411 = vsel %vm490, %v1406, %v1409
  %v1412 = vadd.f32 %v1411, %v1402
  %v1413 = vxor.u32 %v1412, 2147483648
  %v1414 = vmul.f32 %v1413, 1.442695
  %v1415 = vpow.pop %v1414
  %v1416 = vadd.f32 %v1415, 1.0
  %v1417 = vrcp.pop %v1416
  %v1418 = vmul.f32 1.0, %v1417
  %v1419 = vtanh.pop %v1412
  %v1420 = vmul.f32 %v1418, %v1312
  %1422 = vrot.lane.b32.xlu0 %v1419, 64
  %v1423 = vpop.permute.xlu0 %1422
  %v1425 = vmul.f32 %v1418, %v1423
  %1427 = vrot.lane.b32.xlu0 %v1425, 32
  %v1428 = vpop.permute.xlu0 %1427
  %v1430 = vadd.f32 %v1420, %v1428
  %v1431 = vtanh.pop %v1430
  %1433 = vrot.lane.b32.xlu0 %v1431, 64
  %v1434 = vpop.permute.xlu0 %1433
  %v1436 = vmul.f32 %v1418, %v1434
  %1438 = vrot.lane.b32.xlu0 %v1436, 32
  %v1439 = vpop.permute.xlu0 %1438
  %s1441 = scalar_lea.vmem %s11, 14
  %1442 = vst.msk [vmem:[%s1441] sm:$0x3] %vm608, %v1439
  %1443 = vst.msk [vmem:[%s95 - $0x2] sm:$0xc] %vm611, %v1439
  %1444 = vrot.lane.b32.xlu0 %v1436, 64
  %v1445 = vpop.permute.xlu0 %1444
  %v1447 = vsel %vm118, %v1439, %v1445
  %v1448 = vmul.f32 %v491, %v1447
  %vm1449 = vcmask 519168
  %1450 = vst.msk [vmem:[#allocation2] sm:$0xf] %vm1449, %v1448
  %1452 = vrot.lane.b32.xlu0 %v1430, 96
  %v1453 = vpop.permute.xlu0 %1452
  %vm1455 = vcmask 257024
  %1456 = vst.msk [vmem:[#allocation3] sm:$0xf] %vm1455, %v1453
  %s1457 = ssub.s32 0, 0
  %s1458 = smul.u32 2, %s1457
  %p1459 = scmp.lt.s32.totalorder %s1458, 1
  %s1460 = scalar_select %p1459, %s1458, 1
  %s1461 = smul.addr %s1460, 8
  %s1462 = scalar_lea.vmem %s12, %s1461
  // Predicated region
  $region50: #{sentence_tagging_bilstm_forward.4} parent=0 // pred_check
    _
  $region51: #{sentence_tagging_bilstm_forward.4} parent=0 // pred_check_branch
    %1464 = sbr.rel (0) target = $region53
  $region52: #{sentence_tagging_bilstm_forward.4} parent=0 // pred_region
    _
  $region53: #{sentence_tagging_bilstm_forward.4} parent=0 // pred_fallthru
    _
  // Predicated region
  $region54: #{sentence_tagging_bilstm_forward.4} parent=0 // pred_check
    _
  $region55: #{sentence_tagging_bilstm_forward.4} parent=0 // pred_check_branch
    %1466 = sbr.rel (0) target = $region57
  $region56: #{sentence_tagging_bilstm_forward.4} parent=0 // pred_region
    %s1467 = ssub.s32 0, 0
    %s1468 = smul.u32 2, %s1467
  $region57: #{sentence_tagging_bilstm_forward.4} parent=0 // pred_fallthru
    _
  // Predicated region
  $region58: #{sentence_tagging_bilstm_forward.4} parent=0 // pred_check
    _
  $region59: #{sentence_tagging_bilstm_forward.4} parent=0 // pred_check_branch
    %1470 = sbr.rel (0) target = $region61
  $region60: #{sentence_tagging_bilstm_forward.4} parent=0 // pred_region
    _
  $region61: #{sentence_tagging_bilstm_forward.4} parent=0 // pred_fallthru
    _
  // Predicated region
  $region62: #{sentence_tagging_bilstm_forward.4} parent=0 // pred_check
    _
  $region63: #{sentence_tagging_bilstm_forward.4} parent=0 // pred_check_branch
    %1472 = sbr.rel (0) target = $region65
  $region64: #{sentence_tagging_bilstm_forward.4} parent=0 // pred_region
    %s1473 = ssub.s32 0, 0
    %s1474 = smul.u32 2, %s1473
    %p1475 = scmp.lt.s32.totalorder %s1474, 1
    %s1476 = scalar_select %p1475, %s1474, 1
    %s1477 = smul.addr %s1476, 8
    %s1478 = scalar_lea.vmem %s12, %s1477
  $region65: #{sentence_tagging_bilstm_forward.4} parent=0 // pred_fallthru
    _

// kernel: sentence_tagging_bilstm_forward.3
$region0: #{sentence_tagging_bilstm_forward.3}
  #allocation0 [shape = 'u32[]', space=smem, size = 0x4, offset = 0x4, fixed_abs, tag = 'smem constant byte address 0x4 - core index']
  #allocation1 [shape = 'u32[144,128]{1,0:T(1,128)}', space=vmem, size = 0x12000, scoped, tag = 'internal scratch']
  #allocation2 [shape = 'f32[4,64]{1,0:T(4,128)}', space=vmem, size = 0x800, scoped, tag = 'scratch operand']
  #allocation3 [shape = 'f32[4,32]{1,0:T(4,128)}', space=vmem, size = 0x800, scoped, tag = 'scratch operand']
  #allocation4 [shape = 'f32[16,128]{1,0:T(8,128)}', space=vmem, size = 0x2000, scoped, tag = 'scratch operand']
  #allocation5 [shape = 'f32[16,128]{1,0:T(8,128)}', space=vmem, size = 0x2000, scoped, tag = 'scratch operand']
  %s0 = inlined_call_operand.vmem [shape: f32[16,32], index: 0, kind: input, shape index: {}, may-alias: {0,1}]
  %s1 = inlined_call_operand.vmem [shape: f32[16,32], index: 1, kind: input, shape index: {}, may-alias: {0,1}]
  %s2 = inlined_call_operand.vmem [shape: f32[32,128], index: 2, kind: input, shape index: {}]
  %s3 = inlined_call_operand.vmem [shape: f32[32,128], index: 3, kind: input, shape index: {}]
  %s4 = inlined_call_operand.vmem [shape: f32[1,128], index: 4, kind: input, shape index: {}]
  %s5 = inlined_call_operand.vmem [shape: f32[1,128], index: 5, kind: input, shape index: {}]
  %s6 = inlined_call_operand.vmem [shape: f32[64,128], index: 6, kind: input, shape index: {}]
  %s7 = inlined_call_operand.vmem [shape: f32[16,32], index: 7, kind: output, shape index: {0}]
  %s8 = inlined_call_operand.vmem [shape: f32[16,32], index: 8, kind: output, shape index: {1}]
  %9 = xla_tuple %s7, %s8
  %s10 = sld [smem:[#allocation0]]
  $region50: #{sentence_tagging_bilstm_forward.3} parent=0
    _
  %s12 = ssub.s32 1, %s10
  %s13 = scalar_select 0, %s12, %s10
  // Predicated region
  $region2: #{sentence_tagging_bilstm_forward.3} parent=0 // pred_check
    _
  $region3: #{sentence_tagging_bilstm_forward.3} parent=0 // pred_check_branch
    %15 = sbr.rel (0) target = $region5
  $region4: #{sentence_tagging_bilstm_forward.3} parent=0 // pred_region
    _
  $region5: #{sentence_tagging_bilstm_forward.3} parent=0 // pred_fallthru
    _
  // Predicated region
  $region6: #{sentence_tagging_bilstm_forward.3} parent=0 // pred_check
    _
  $region7: #{sentence_tagging_bilstm_forward.3} parent=0 // pred_check_branch
    %17 = sbr.rel (0) target = $region9
  $region8: #{sentence_tagging_bilstm_forward.3} parent=0 // pred_region
    %s18 = ssub.s32 0, 0
    %s19 = smul.u32 2, %s18
    %p20 = scmp.lt.s32.totalorder %s19, 1
    %s21 = scalar_select %p20, %s19, 1
    %s22 = smul.addr %s21, 8
    %s23 = scalar_lea.vmem %s1, %s22
    %s24 = ssub.s32 0, 0
    %s25 = smul.u32 2, %s24
  $region9: #{sentence_tagging_bilstm_forward.3} parent=0 // pred_fallthru
    _
  // Predicated region
  $region10: #{sentence_tagging_bilstm_forward.3} parent=0 // pred_check
    _
  $region11: #{sentence_tagging_bilstm_forward.3} parent=0 // pred_check_branch
    %27 = sbr.rel (0) target = $region13
  $region12: #{sentence_tagging_bilstm_forward.3} parent=0 // pred_region
    _
  $region13: #{sentence_tagging_bilstm_forward.3} parent=0 // pred_fallthru
    _
  // Predicated region
  $region14: #{sentence_tagging_bilstm_forward.3} parent=0 // pred_check
    _
  $region15: #{sentence_tagging_bilstm_forward.3} parent=0 // pred_check_branch
    %29 = sbr.rel (0) target = $region17
  $region16: #{sentence_tagging_bilstm_forward.3} parent=0 // pred_region
    _
  $region17: #{sentence_tagging_bilstm_forward.3} parent=0 // pred_fallthru
    _
  // Predicated region
  $region18: #{sentence_tagging_bilstm_forward.3} parent=0 // pred_check
    _
  $region19: #{sentence_tagging_bilstm_forward.3} parent=0 // pred_check_branch
    %31 = sbr.rel (0) target = $region21
  $region20: #{sentence_tagging_bilstm_forward.3} parent=0 // pred_region
    _
  $region21: #{sentence_tagging_bilstm_forward.3} parent=0 // pred_fallthru
    _
  // Predicated region
  $region22: #{sentence_tagging_bilstm_forward.3} parent=0 // pred_check
    _
  $region23: #{sentence_tagging_bilstm_forward.3} parent=0 // pred_check_branch
    %33 = sbr.rel (0) target = $region25
  $region24: #{sentence_tagging_bilstm_forward.3} parent=0 // pred_region
    _
  $region25: #{sentence_tagging_bilstm_forward.3} parent=0 // pred_fallthru
    _
  // Predicated region
  $region26: #{sentence_tagging_bilstm_forward.3} parent=0 // pred_check
    _
  $region27: #{sentence_tagging_bilstm_forward.3} parent=0 // pred_check_branch
    %35 = sbr.rel (0) target = $region29
  $region28: #{sentence_tagging_bilstm_forward.3} parent=0 // pred_region
    _
  $region29: #{sentence_tagging_bilstm_forward.3} parent=0 // pred_fallthru
    _
  %s36 = ssub.s32 0, 0
  %s37 = smul.u32 2, %s36
  %p38 = scmp.lt.s32.totalorder %s37, 1
  %s39 = scalar_select %p38, %s37, 1
  %s40 = smul.addr %s39, 8
  %s41 = scalar_lea.vmem %s1, %s40
  %s42 = ssub.s32 0, 0
  %s43 = smul.u32 2, %s42
  %p44 = scmp.lt.s32.totalorder %s43, 1
  %s45 = scalar_select %p44, %s43, 1
  %s46 = smul.addr %s45, 8
  %s47 = scalar_lea.vmem %s8, %s46
  %s48 = ssub.s32 0, 0
  %s49 = smul.u32 2, %s48
  %p50 = scmp.lt.s32.totalorder %s49, 1
  %s51 = scalar_select %p50, %s49, 1
  %s52 = smul.addr %s51, 8
  %s53 = scalar_lea.vmem %s1, %s52
  %s54 = ssub.s32 0, 0
  %s55 = smul.u32 2, %s54
  %s56 = ssub.s32 0, 0
  %s57 = smul.u32 2, %s56
  %p58 = scmp.lt.s32.totalorder %s57, 1
  %s59 = scalar_select %p58, %s57, 1
  %s60 = smul.addr %s59, 8
  %s61 = scalar_lea.vmem %s8, %s60
  %s62 = ssub.s32 0, 0
  %s63 = smul.u32 2, %s62
  %p64 = scmp.eq.s32.totalorder 0, 0
  // Predicated region
  $region30: #{sentence_tagging_bilstm_forward.3} parent=0 // pred_check
    %p65 = pneg %p64
  $region31: #{sentence_tagging_bilstm_forward.3} parent=0 // pred_check_branch
    %67 = sbr.rel (%p65) target = $region33
  $region32: #{sentence_tagging_bilstm_forward.3} parent=0 // pred_region
    %vm68 = vcmask 519168
    %69 = vst.msk [vmem:[#allocation2] sm:$0xf] %vm68, 0.0
    %vm70 = vcmask 257024
    %71 = vst.msk [vmem:[#allocation3] sm:$0xf] %vm70, 0.0
  $region33: #{sentence_tagging_bilstm_forward.3} parent=0 // pred_fallthru
    _
  %v72 = vld [vmem:[%s0] sm:$0xff]
  %v73 = vld [vmem:[%s0 + $0x8] sm:$0xff]
  %v74 = vld [vmem:[%s2] sm:$0xff]
  %v75 = vld [vmem:[%s2 + $0x8] sm:$0xff]
  %v76 = vld [vmem:[%s2 + $0x10] sm:$0xff]
  %v77 = vld [vmem:[%s2 + $0x18] sm:$0xff]
  %v78 = vld [vmem:[%s4] sm:$0x1]
  %v80 = vlaneseq
  %v81 = vshrl.u32 %v80, 7
  %v82 = vsub.s32 0, %v81
  %v83 = vrot.slane %v78, %v82
  %vm85 = vcmask 261120
  %v87 = vsel %vm85, %v72, 0
  %v90 = vsel %vm85, %v73, 0
  %92 = vmatprep.subr.mxu0 0.0
  %93 = vmatpush1.msra.mxu0 0.0
  %94 = vmatprep.subr.mxu0 0.0
  %95 = vmatpush1.msra.mxu0 0.0
  %96 = vmatprep.subr.mxu0 0.0
  %97 = vmatpush1.msra.mxu0 0.0
  %98 = vmatprep.subr.mxu0 0.0
  %99 = vmatpush1.msra.mxu0 0.0
  %100 = vmatprep.subr.mxu0 0.0
  %101 = vmatpush1.msra.mxu0 0.0
  %102 = vmatprep.subr.mxu0 0.0
  %103 = vmatpush1.msra.mxu0 0.0
  %104 = vmatprep.subr.mxu0 0.0
  %105 = vmatpush1.msra.mxu0 0.0
  %106 = vmatprep.subr.mxu0 0.0
  %107 = vmatpush1.msra.mxu0 0.0
  %108 = vmatprep.subr.mxu0 0.0
  %109 = vmatpush1.msra.mxu0 0.0
  %110 = vmatprep.subr.mxu0 0.0
  %111 = vmatpush1.msra.mxu0 0.0
  %112 = vmatprep.subr.mxu0 0.0
  %113 = vmatpush1.msra.mxu0 0.0
  %114 = vmatprep.subr.mxu0 0.0
  %115 = vmatpush1.msra.mxu0 0.0
  %116 = vmatprep.subr.mxu0 0.0
  %117 = vmatpush1.msra.mxu0 %v77
  %118 = vmatprep.subr.mxu0 0.0
  %119 = vmatpush1.msra.mxu0 %v76
  %120 = vmatprep.subr.mxu0 0.0
  %121 = vmatpush1.msra.mxu0 %v75
  %122 = vmatprep.subr.mxu0 0.0
  %123 = vmatpush1.msra.mxu0 %v74
  %124 = vmatprep.subr.mxu0 0.0
  %125 = vmatpush2.msra.mxu0 0.0
  %126 = vmatprep.subr.mxu0 0.0
  %127 = vmatpush2.msra.mxu0 0.0
  %128 = vmatprep.subr.mxu0 0.0
  %129 = vmatpush2.msra.mxu0 0.0
  %130 = vmatprep.subr.mxu0 0.0
  %131 = vmatpush2.msra.mxu0 0.0
  %132 = vmatprep.subr.mxu0 0.0
  %133 = vmatpush2.msra.mxu0 0.0
  %134 = vmatprep.subr.mxu0 0.0
  %135 = vmatpush2.msra.mxu0 0.0
  %136 = vmatprep.subr.mxu0 0.0
  %137 = vmatpush2.msra.mxu0 0.0
  %138 = vmatprep.subr.mxu0 0.0
  %139 = vmatpush2.msra.mxu0 0.0
  %140 = vmatprep.subr.mxu0 0.0
  %141 = vmatpush2.msra.mxu0 0.0
  %142 = vmatprep.subr.mxu0 0.0
  %143 = vmatpush2.msra.mxu0 0.0
  %144 = vmatprep.subr.mxu0 0.0
  %145 = vmatpush2.msra.mxu0 0.0
  %146 = vmatprep.subr.mxu0 0.0
  %147 = vmatpush2.msra.mxu0 0.0
  %148 = vmatprep.subr.mxu0 0.0
  %149 = vmatpush2.msra.mxu0 0.0
  %150 = vmatprep.subr.mxu0 0.0
  %151 = vmatpush2.msra.mxu0 0.0
  %152 = vmatprep.subr.mxu0 0.0
  %153 = vmatpush2.msra.mxu0 0.0
  %154 = vmatprep.subr.mxu0 0.0
  %155 = vmatpush2.msra.mxu0 0.0
  %156 = vmatprep.mubr.f32.mxu0 0.0
  %157 = vmatmul.mubr.f32.gmra.mxu0 %v87
  %v158 = vpop.f32.mrf.mxu0
  %v159 = vadd.f32 %v83, %v158
  %v160 = vpop.f32.mrf.mxu0
  %161 = vmatprep.mubr.f32.mxu0 0.0
  %162 = vmatmul.mubr.f32.gmra.mxu0 %v90
  %v163 = vpop.f32.mrf.mxu0
  %v164 = vadd.f32 %v83, %v163
  %v165 = vpop.f32.mrf.mxu0
  %166 = vdwg.mxu0
  %167 = vst [vmem:[#allocation4] sm:$0xff] %v159
  %168 = vst [vmem:[#allocation4 + $0x8] sm:$0xff] %v164
  %v169 = vld [vmem:[%s53] sm:$0xff]
  %v170 = vld [vmem:[%s53 + $0x8] sm:$0xff]
  %v171 = vld [vmem:[%s3] sm:$0xff]
  %v172 = vld [vmem:[%s3 + $0x8] sm:$0xff]
  %v173 = vld [vmem:[%s3 + $0x10] sm:$0xff]
  %v174 = vld [vmem:[%s3 + $0x18] sm:$0xff]
  %v175 = vld [vmem:[%s5] sm:$0x1]
  %v177 = vlaneseq
  %v178 = vshrl.u32 %v177, 7
  %v179 = vsub.s32 0, %v178
  %v180 = vrot.slane %v175, %v179
  %v183 = vsel %vm85, %v169, 0
  %v186 = vsel %vm85, %v170, 0
  %188 = vmatprep.subr.mxu0 0.0
  %189 = vmatpush1.msra.mxu0 0.0
  %190 = vmatprep.subr.mxu0 0.0
  %191 = vmatpush1.msra.mxu0 0.0
  %192 = vmatprep.subr.mxu0 0.0
  %193 = vmatpush1.msra.mxu0 0.0
  %194 = vmatprep.subr.mxu0 0.0
  %195 = vmatpush1.msra.mxu0 0.0
  %196 = vmatprep.subr.mxu0 0.0
  %197 = vmatpush1.msra.mxu0 0.0
  %198 = vmatprep.subr.mxu0 0.0
  %199 = vmatpush1.msra.mxu0 0.0
  %200 = vmatprep.subr.mxu0 0.0
  %201 = vmatpush1.msra.mxu0 0.0
  %202 = vmatprep.subr.mxu0 0.0
  %203 = vmatpush1.msra.mxu0 0.0
  %204 = vmatprep.subr.mxu0 0.0
  %205 = vmatpush1.msra.mxu0 0.0
  %206 = vmatprep.subr.mxu0 0.0
  %207 = vmatpush1.msra.mxu0 0.0
  %208 = vmatprep.subr.mxu0 0.0
  %209 = vmatpush1.msra.mxu0 0.0
  %210 = vmatprep.subr.mxu0 0.0
  %211 = vmatpush1.msra.mxu0 0.0
  %212 = vmatprep.subr.mxu0 0.0
  %213 = vmatpush1.msra.mxu0 %v174
  %214 = vmatprep.subr.mxu0 0.0
  %215 = vmatpush1.msra.mxu0 %v173
  %216 = vmatprep.subr.mxu0 0.0
  %217 = vmatpush1.msra.mxu0 %v172
  %218 = vmatprep.subr.mxu0 0.0
  %219 = vmatpush1.msra.mxu0 %v171
  %220 = vmatprep.subr.mxu0 0.0
  %221 = vmatpush2.msra.mxu0 0.0
  %222 = vmatprep.subr.mxu0 0.0
  %223 = vmatpush2.msra.mxu0 0.0
  %224 = vmatprep.subr.mxu0 0.0
  %225 = vmatpush2.msra.mxu0 0.0
  %226 = vmatprep.subr.mxu0 0.0
  %227 = vmatpush2.msra.mxu0 0.0
  %228 = vmatprep.subr.mxu0 0.0
  %229 = vmatpush2.msra.mxu0 0.0
  %230 = vmatprep.subr.mxu0 0.0
  %231 = vmatpush2.msra.mxu0 0.0
  %232 = vmatprep.subr.mxu0 0.0
  %233 = vmatpush2.msra.mxu0 0.0
  %234 = vmatprep.subr.mxu0 0.0
  %235 = vmatpush2.msra.mxu0 0.0
  %236 = vmatprep.subr.mxu0 0.0
  %237 = vmatpush2.msra.mxu0 0.0
  %238 = vmatprep.subr.mxu0 0.0
  %239 = vmatpush2.msra.mxu0 0.0
  %240 = vmatprep.subr.mxu0 0.0
  %241 = vmatpush2.msra.mxu0 0.0
  %242 = vmatprep.subr.mxu0 0.0
  %243 = vmatpush2.msra.mxu0 0.0
  %244 = vmatprep.subr.mxu0 0.0
  %245 = vmatpush2.msra.mxu0 0.0
  %246 = vmatprep.subr.mxu0 0.0
  %247 = vmatpush2.msra.mxu0 0.0
  %248 = vmatprep.subr.mxu0 0.0
  %249 = vmatpush2.msra.mxu0 0.0
  %250 = vmatprep.subr.mxu0 0.0
  %251 = vmatpush2.msra.mxu0 0.0
  %252 = vmatprep.mubr.f32.mxu0 0.0
  %253 = vmatmul.mubr.f32.gmra.mxu0 %v183
  %v254 = vpop.f32.mrf.mxu0
  %v255 = vadd.f32 %v180, %v254
  %v256 = vpop.f32.mrf.mxu0
  %257 = vmatprep.mubr.f32.mxu0 0.0
  %258 = vmatmul.mubr.f32.gmra.mxu0 %v186
  %v259 = vpop.f32.mrf.mxu0
  %v260 = vadd.f32 %v180, %v259
  %v261 = vpop.f32.mrf.mxu0
  %262 = vdwg.mxu0
  %263 = vst [vmem:[#allocation5] sm:$0xff] %v255
  %264 = vst [vmem:[#allocation5 + $0x8] sm:$0xff] %v260
  %v265 = vld [vmem:[%s6] sm:$0xff]
  %v266 = vld [vmem:[%s6 + $0x8] sm:$0xff]
  %v267 = vld [vmem:[%s6 + $0x10] sm:$0xff]
  %v268 = vld [vmem:[%s6 + $0x18] sm:$0xff]
  %v269 = vld [vmem:[%s6 + $0x20] sm:$0xff]
  %v270 = vld [vmem:[%s6 + $0x28] sm:$0xff]
  %v271 = vld [vmem:[%s6 + $0x30] sm:$0xff]
  %v272 = vld [vmem:[%s6 + $0x38] sm:$0xff]
  %v273 = vsel %vm85, 1.0, 0.0
  %v274 = vsel %vm85, 0.0, 1.0
  %v276 = vrot.slane %v274, 6
  %vm278 = vcmask 1041408
  %v279 = vsel %vm278, %v273, %v276
  %v280 = vld [vmem:[#allocation2] sm:$0xf]
  %v281 = vld [vmem:[#allocation3] sm:$0xf]
  %vm282 = vcmask 523264
  %v284 = vsel %vm282, %v280, 0
  %286 = vmatprep.subr.mxu0 0.0
  %287 = vmatpush1.msra.mxu0 0.0
  %288 = vmatprep.subr.mxu0 0.0
  %289 = vmatpush1.msra.mxu0 0.0
  %290 = vmatprep.subr.mxu0 0.0
  %291 = vmatpush1.msra.mxu0 0.0
  %292 = vmatprep.subr.mxu0 0.0
  %293 = vmatpush1.msra.mxu0 0.0
  %294 = vmatprep.subr.mxu0 0.0
  %295 = vmatpush1.msra.mxu0 0.0
  %296 = vmatprep.subr.mxu0 0.0
  %297 = vmatpush1.msra.mxu0 0.0
  %298 = vmatprep.subr.mxu0 0.0
  %299 = vmatpush1.msra.mxu0 0.0
  %300 = vmatprep.subr.mxu0 0.0
  %301 = vmatpush1.msra.mxu0 0.0
  %302 = vmatprep.subr.mxu0 0.0
  %303 = vmatpush1.msra.mxu0 %v272
  %304 = vmatprep.subr.mxu0 0.0
  %305 = vmatpush1.msra.mxu0 %v271
  %306 = vmatprep.subr.mxu0 0.0
  %307 = vmatpush1.msra.mxu0 %v270
  %308 = vmatprep.subr.mxu0 0.0
  %309 = vmatpush1.msra.mxu0 %v269
  %310 = vmatprep.subr.mxu0 0.0
  %311 = vmatpush1.msra.mxu0 %v268
  %312 = vmatprep.subr.mxu0 0.0
  %313 = vmatpush1.msra.mxu0 %v267
  %314 = vmatprep.subr.mxu0 0.0
  %315 = vmatpush1.msra.mxu0 %v266
  %316 = vmatprep.subr.mxu0 0.0
  %317 = vmatpush1.msra.mxu0 %v265
  %318 = vmatprep.subr.mxu0 0.0
  %319 = vmatpush2.msra.mxu0 0.0
  %320 = vmatprep.subr.mxu0 0.0
  %321 = vmatpush2.msra.mxu0 0.0
  %322 = vmatprep.subr.mxu0 0.0
  %323 = vmatpush2.msra.mxu0 0.0
  %324 = vmatprep.subr.mxu0 0.0
  %325 = vmatpush2.msra.mxu0 0.0
  %326 = vmatprep.subr.mxu0 0.0
  %327 = vmatpush2.msra.mxu0 0.0
  %328 = vmatprep.subr.mxu0 0.0
  %329 = vmatpush2.msra.mxu0 0.0
  %330 = vmatprep.subr.mxu0 0.0
  %331 = vmatpush2.msra.mxu0 0.0
  %332 = vmatprep.subr.mxu0 0.0
  %333 = vmatpush2.msra.mxu0 0.0
  %334 = vmatprep.subr.mxu0 0.0
  %335 = vmatpush2.msra.mxu0 0.0
  %336 = vmatprep.subr.mxu0 0.0
  %337 = vmatpush2.msra.mxu0 0.0
  %338 = vmatprep.subr.mxu0 0.0
  %339 = vmatpush2.msra.mxu0 0.0
  %340 = vmatprep.subr.mxu0 0.0
  %341 = vmatpush2.msra.mxu0 0.0
  %342 = vmatprep.subr.mxu0 0.0
  %343 = vmatpush2.msra.mxu0 0.0
  %344 = vmatprep.subr.mxu0 0.0
  %345 = vmatpush2.msra.mxu0 0.0
  %346 = vmatprep.subr.mxu0 0.0
  %347 = vmatpush2.msra.mxu0 0.0
  %348 = vmatprep.subr.mxu0 0.0
  %349 = vmatpush2.msra.mxu0 0.0
  %350 = vmatprep.mubr.f32.mxu0 0.0
  %351 = vmatmul.mubr.f32.gmra.mxu0 %v284
  %v352 = vpop.f32.mrf.mxu0
  %v353 = vadd.f32 0.0, %v352
  %v354 = vpop.f32.mrf.mxu0
  %355 = vdwg.mxu0
  %v356 = vld [vmem:[#allocation4] sm:$0x3]
  %s357 = scalar_lea.vmem [#allocation5], 14
  %v358 = vld [vmem:[%s357] sm:$0x3]
  %v360 = vrot.slane %v358, 6
  %v362 = vsel %vm278, %v356, %v360
  %v363 = vadd.f32 %v362, %v353
  %v364 = vxor.u32 %v363, 2147483648
  %v365 = vmul.f32 %v364, 1.442695
  %v366 = vpow.pop %v365
  %v367 = vadd.f32 %v366, 1.0
  %v368 = vrcp.pop %v367
  %v369 = vmul.f32 1.0, %v368
  %v370 = vtanh.pop %v363
  %372 = vrot.lane.b32.xlu0 %v281, 32
  %v373 = vpop.permute.xlu0 %372
  %v375 = vmul.f32 %v369, %v373
  %377 = vrot.lane.b32.xlu0 %v370, 64
  %v378 = vpop.permute.xlu0 %377
  %v380 = vmul.f32 %v369, %v378
  %382 = vrot.lane.b32.xlu0 %v380, 32
  %v383 = vpop.permute.xlu0 %382
  %v385 = vadd.f32 %v375, %v383
  %v386 = vtanh.pop %v385
  %388 = vrot.lane.b32.xlu0 %v386, 64
  %v389 = vpop.permute.xlu0 %388
  %v391 = vmul.f32 %v369, %v389
  %393 = vrot.lane.b32.xlu0 %v391, 32
  %v394 = vpop.permute.xlu0 %393
  %vm396 = vcmask 254976
  %397 = vst.msk [vmem:[%s7] sm:$0x3] %vm396, %v394
  %s398 = scalar_lea.vmem %s61, 14
  %vm399 = vcmask 257026
  %400 = vst.msk [vmem:[%s398 - $0x2] sm:$0xc] %vm399, %v394
  %401 = vrot.lane.b32.xlu0 %v391, 64
  %v402 = vpop.permute.xlu0 %401
  %v404 = vsel %vm85, %v394, %v402
  %v405 = vmul.f32 %v279, %v404
  %v407 = vsel %vm282, %v405, 0
  %409 = vmatprep.subr.mxu0 0.0
  %410 = vmatpush1.msra.mxu0 0.0
  %411 = vmatprep.subr.mxu0 0.0
  %412 = vmatpush1.msra.mxu0 0.0
  %413 = vmatprep.subr.mxu0 0.0
  %414 = vmatpush1.msra.mxu0 0.0
  %415 = vmatprep.subr.mxu0 0.0
  %416 = vmatpush1.msra.mxu0 0.0
  %417 = vmatprep.subr.mxu0 0.0
  %418 = vmatpush1.msra.mxu0 0.0
  %419 = vmatprep.subr.mxu0 0.0
  %420 = vmatpush1.msra.mxu0 0.0
  %421 = vmatprep.subr.mxu0 0.0
  %422 = vmatpush1.msra.mxu0 0.0
  %423 = vmatprep.subr.mxu0 0.0
  %424 = vmatpush1.msra.mxu0 0.0
  %425 = vmatprep.subr.mxu0 0.0
  %426 = vmatpush1.msra.mxu0 %v272
  %427 = vmatprep.subr.mxu0 0.0
  %428 = vmatpush1.msra.mxu0 %v271
  %429 = vmatprep.subr.mxu0 0.0
  %430 = vmatpush1.msra.mxu0 %v270
  %431 = vmatprep.subr.mxu0 0.0
  %432 = vmatpush1.msra.mxu0 %v269
  %433 = vmatprep.subr.mxu0 0.0
  %434 = vmatpush1.msra.mxu0 %v268
  %435 = vmatprep.subr.mxu0 0.0
  %436 = vmatpush1.msra.mxu0 %v267
  %437 = vmatprep.subr.mxu0 0.0
  %438 = vmatpush1.msra.mxu0 %v266
  %439 = vmatprep.subr.mxu0 0.0
  %440 = vmatpush1.msra.mxu0 %v265
  %441 = vmatprep.subr.mxu0 0.0
  %442 = vmatpush2.msra.mxu0 0.0
  %443 = vmatprep.subr.mxu0 0.0
  %444 = vmatpush2.msra.mxu0 0.0
  %445 = vmatprep.subr.mxu0 0.0
  %446 = vmatpush2.msra.mxu0 0.0
  %447 = vmatprep.subr.mxu0 0.0
  %448 = vmatpush2.msra.mxu0 0.0
  %449 = vmatprep.subr.mxu0 0.0
  %450 = vmatpush2.msra.mxu0 0.0
  %451 = vmatprep.subr.mxu0 0.0
  %452 = vmatpush2.msra.mxu0 0.0
  %453 = vmatprep.subr.mxu0 0.0
  %454 = vmatpush2.msra.mxu0 0.0
  %455 = vmatprep.subr.mxu0 0.0
  %456 = vmatpush2.msra.mxu0 0.0
  %457 = vmatprep.subr.mxu0 0.0
  %458 = vmatpush2.msra.mxu0 0.0
  %459 = vmatprep.subr.mxu0 0.0
  %460 = vmatpush2.msra.mxu0 0.0
  %461 = vmatprep.subr.mxu0 0.0
  %462 = vmatpush2.msra.mxu0 0.0
  %463 = vmatprep.subr.mxu0 0.0
  %464 = vmatpush2.msra.mxu0 0.0
  %465 = vmatprep.subr.mxu0 0.0
  %466 = vmatpush2.msra.mxu0 0.0
  %467 = vmatprep.subr.mxu0 0.0
  %468 = vmatpush2.msra.mxu0 0.0
  %469 = vmatprep.subr.mxu0 0.0
  %470 = vmatpush2.msra.mxu0 0.0
  %471 = vmatprep.subr.mxu0 0.0
  %472 = vmatpush2.msra.mxu0 0.0
  %473 = vmatprep.mubr.f32.mxu0 0.0
  %474 = vmatmul.mubr.f32.gmra.mxu0 %v407
  %v475 = vpop.f32.mrf.mxu0
  %v476 = vadd.f32 0.0, %v475
  %v477 = vpop.f32.mrf.mxu0
  %478 = vdwg.mxu0
  %s479 = scalar_lea.vmem [#allocation4], 2
  %v480 = vld [vmem:[%s479] sm:$0x3]
  %s481 = scalar_lea.vmem [#allocation5], 12
  %v482 = vld [vmem:[%s481] sm:$0x3]
  %v484 = vrot.slane %v482, 6
  %v486 = vsel %vm278, %v480, %v484
  %v487 = vadd.f32 %v486, %v476
  %v488 = vxor.u32 %v487, 2147483648
  %v489 = vmul.f32 %v488, 1.442695
  %v490 = vpow.pop %v489
  %v491 = vadd.f32 %v490, 1.0
  %v492 = vrcp.pop %v491
  %v493 = vmul.f32 1.0, %v492
  %v494 = vtanh.pop %v487
  %v495 = vmul.f32 %v493, %v385
  %497 = vrot.lane.b32.xlu0 %v494, 64
  %v498 = vpop.permute.xlu0 %497
  %v500 = vmul.f32 %v493, %v498
  %502 = vrot.lane.b32.xlu0 %v500, 32
  %v503 = vpop.permute.xlu0 %502
  %v505 = vadd.f32 %v495, %v503
  %v506 = vtanh.pop %v505
  %508 = vrot.lane.b32.xlu0 %v506, 64
  %v509 = vpop.permute.xlu0 %508
  %v511 = vmul.f32 %v493, %v509
  %513 = vrot.lane.b32.xlu0 %v511, 32
  %v514 = vpop.permute.xlu0 %513
  %s516 = scalar_lea.vmem %s7, 2
  %517 = vst.msk [vmem:[%s516] sm:$0x3] %vm396, %v514
  %s518 = scalar_lea.vmem %s61, 12
  %519 = vst.msk [vmem:[%s518 - $0x2] sm:$0xc] %vm399, %v514
  %520 = vrot.lane.b32.xlu0 %v511, 64
  %v521 = vpop.permute.xlu0 %520
  %v523 = vsel %vm85, %v514, %v521
  %v524 = vmul.f32 %v279, %v523
  %v526 = vsel %vm282, %v524, 0
  %528 = vmatprep.subr.mxu0 0.0
  %529 = vmatpush1.msra.mxu0 0.0
  %530 = vmatprep.subr.mxu0 0.0
  %531 = vmatpush1.msra.mxu0 0.0
  %532 = vmatprep.subr.mxu0 0.0
  %533 = vmatpush1.msra.mxu0 0.0
  %534 = vmatprep.subr.mxu0 0.0
  %535 = vmatpush1.msra.mxu0 0.0
  %536 = vmatprep.subr.mxu0 0.0
  %537 = vmatpush1.msra.mxu0 0.0
  %538 = vmatprep.subr.mxu0 0.0
  %539 = vmatpush1.msra.mxu0 0.0
  %540 = vmatprep.subr.mxu0 0.0
  %541 = vmatpush1.msra.mxu0 0.0
  %542 = vmatprep.subr.mxu0 0.0
  %543 = vmatpush1.msra.mxu0 0.0
  %544 = vmatprep.subr.mxu0 0.0
  %545 = vmatpush1.msra.mxu0 %v272
  %546 = vmatprep.subr.mxu0 0.0
  %547 = vmatpush1.msra.mxu0 %v271
  %548 = vmatprep.subr.mxu0 0.0
  %549 = vmatpush1.msra.mxu0 %v270
  %550 = vmatprep.subr.mxu0 0.0
  %551 = vmatpush1.msra.mxu0 %v269
  %552 = vmatprep.subr.mxu0 0.0
  %553 = vmatpush1.msra.mxu0 %v268
  %554 = vmatprep.subr.mxu0 0.0
  %555 = vmatpush1.msra.mxu0 %v267
  %556 = vmatprep.subr.mxu0 0.0
  %557 = vmatpush1.msra.mxu0 %v266
  %558 = vmatprep.subr.mxu0 0.0
  %559 = vmatpush1.msra.mxu0 %v265
  %560 = vmatprep.subr.mxu0 0.0
  %561 = vmatpush2.msra.mxu0 0.0
  %562 = vmatprep.subr.mxu0 0.0
  %563 = vmatpush2.msra.mxu0 0.0
  %564 = vmatprep.subr.mxu0 0.0
  %565 = vmatpush2.msra.mxu0 0.0
  %566 = vmatprep.subr.mxu0 0.0
  %567 = vmatpush2.msra.mxu0 0.0
  %568 = vmatprep.subr.mxu0 0.0
  %569 = vmatpush2.msra.mxu0 0.0
  %570 = vmatprep.subr.mxu0 0.0
  %571 = vmatpush2.msra.mxu0 0.0
  %572 = vmatprep.subr.mxu0 0.0
  %573 = vmatpush2.msra.mxu0 0.0
  %574 = vmatprep.subr.mxu0 0.0
  %575 = vmatpush2.msra.mxu0 0.0
  %576 = vmatprep.subr.mxu0 0.0
  %577 = vmatpush2.msra.mxu0 0.0
  %578 = vmatprep.subr.mxu0 0.0
  %579 = vmatpush2.msra.mxu0 0.0
  %580 = vmatprep.subr.mxu0 0.0
  %581 = vmatpush2.msra.mxu0 0.0
  %582 = vmatprep.subr.mxu0 0.0
  %583 = vmatpush2.msra.mxu0 0.0
  %584 = vmatprep.subr.mxu0 0.0
  %585 = vmatpush2.msra.mxu0 0.0
  %586 = vmatprep.subr.mxu0 0.0
  %587 = vmatpush2.msra.mxu0 0.0
  %588 = vmatprep.subr.mxu0 0.0
  %589 = vmatpush2.msra.mxu0 0.0
  %590 = vmatprep.subr.mxu0 0.0
  %591 = vmatpush2.msra.mxu0 0.0
  %592 = vmatprep.mubr.f32.mxu0 0.0
  %593 = vmatmul.mubr.f32.gmra.mxu0 %v526
  %v594 = vpop.f32.mrf.mxu0
  %v595 = vadd.f32 0.0, %v594
  %v596 = vpop.f32.mrf.mxu0
  %597 = vdwg.mxu0
  %s598 = scalar_lea.vmem [#allocation4], 4
  %v599 = vld [vmem:[%s598] sm:$0x3]
  %s600 = scalar_lea.vmem [#allocation5], 10
  %v601 = vld [vmem:[%s600] sm:$0x3]
  %v603 = vrot.slane %v601, 6
  %v605 = vsel %vm278, %v599, %v603
  %v606 = vadd.f32 %v605, %v595
  %v607 = vxor.u32 %v606, 2147483648
  %v608 = vmul.f32 %v607, 1.442695
  %v609 = vpow.pop %v608
  %v610 = vadd.f32 %v609, 1.0
  %v611 = vrcp.pop %v610
  %v612 = vmul.f32 1.0, %v611
  %v613 = vtanh.pop %v606
  %v614 = vmul.f32 %v612, %v505
  %616 = vrot.lane.b32.xlu0 %v613, 64
  %v617 = vpop.permute.xlu0 %616
  %v619 = vmul.f32 %v612, %v617
  %621 = vrot.lane.b32.xlu0 %v619, 32
  %v622 = vpop.permute.xlu0 %621
  %v624 = vadd.f32 %v614, %v622
  %v625 = vtanh.pop %v624
  %627 = vrot.lane.b32.xlu0 %v625, 64
  %v628 = vpop.permute.xlu0 %627
  %v630 = vmul.f32 %v612, %v628
  %632 = vrot.lane.b32.xlu0 %v630, 32
  %v633 = vpop.permute.xlu0 %632
  %s635 = scalar_lea.vmem %s7, 4
  %636 = vst.msk [vmem:[%s635] sm:$0x3] %vm396, %v633
  %s637 = scalar_lea.vmem %s61, 10
  %638 = vst.msk [vmem:[%s637 - $0x2] sm:$0xc] %vm399, %v633
  %639 = vrot.lane.b32.xlu0 %v630, 64
  %v640 = vpop.permute.xlu0 %639
  %v642 = vsel %vm85, %v633, %v640
  %v643 = vmul.f32 %v279, %v642
  %v645 = vsel %vm282, %v643, 0
  %647 = vmatprep.subr.mxu0 0.0
  %648 = vmatpush1.msra.mxu0 0.0
  %649 = vmatprep.subr.mxu0 0.0
  %650 = vmatpush1.msra.mxu0 0.0
  %651 = vmatprep.subr.mxu0 0.0
  %652 = vmatpush1.msra.mxu0 0.0
  %653 = vmatprep.subr.mxu0 0.0
  %654 = vmatpush1.msra.mxu0 0.0
  %655 = vmatprep.subr.mxu0 0.0
  %656 = vmatpush1.msra.mxu0 0.0
  %657 = vmatprep.subr.mxu0 0.0
  %658 = vmatpush1.msra.mxu0 0.0
  %659 = vmatprep.subr.mxu0 0.0
  %660 = vmatpush1.msra.mxu0 0.0
  %661 = vmatprep.subr.mxu0 0.0
  %662 = vmatpush1.msra.mxu0 0.0
  %663 = vmatprep.subr.mxu0 0.0
  %664 = vmatpush1.msra.mxu0 %v272
  %665 = vmatprep.subr.mxu0 0.0
  %666 = vmatpush1.msra.mxu0 %v271
  %667 = vmatprep.subr.mxu0 0.0
  %668 = vmatpush1.msra.mxu0 %v270
  %669 = vmatprep.subr.mxu0 0.0
  %670 = vmatpush1.msra.mxu0 %v269
  %671 = vmatprep.subr.mxu0 0.0
  %672 = vmatpush1.msra.mxu0 %v268
  %673 = vmatprep.subr.mxu0 0.0
  %674 = vmatpush1.msra.mxu0 %v267
  %675 = vmatprep.subr.mxu0 0.0
  %676 = vmatpush1.msra.mxu0 %v266
  %677 = vmatprep.subr.mxu0 0.0
  %678 = vmatpush1.msra.mxu0 %v265
  %679 = vmatprep.subr.mxu0 0.0
  %680 = vmatpush2.msra.mxu0 0.0
  %681 = vmatprep.subr.mxu0 0.0
  %682 = vmatpush2.msra.mxu0 0.0
  %683 = vmatprep.subr.mxu0 0.0
  %684 = vmatpush2.msra.mxu0 0.0
  %685 = vmatprep.subr.mxu0 0.0
  %686 = vmatpush2.msra.mxu0 0.0
  %687 = vmatprep.subr.mxu0 0.0
  %688 = vmatpush2.msra.mxu0 0.0
  %689 = vmatprep.subr.mxu0 0.0
  %690 = vmatpush2.msra.mxu0 0.0
  %691 = vmatprep.subr.mxu0 0.0
  %692 = vmatpush2.msra.mxu0 0.0
  %693 = vmatprep.subr.mxu0 0.0
  %694 = vmatpush2.msra.mxu0 0.0
  %695 = vmatprep.subr.mxu0 0.0
  %696 = vmatpush2.msra.mxu0 0.0
  %697 = vmatprep.subr.mxu0 0.0
  %698 = vmatpush2.msra.mxu0 0.0
  %699 = vmatprep.subr.mxu0 0.0
  %700 = vmatpush2.msra.mxu0 0.0
  %701 = vmatprep.subr.mxu0 0.0
  %702 = vmatpush2.msra.mxu0 0.0
  %703 = vmatprep.subr.mxu0 0.0
  %704 = vmatpush2.msra.mxu0 0.0
  %705 = vmatprep.subr.mxu0 0.0
  %706 = vmatpush2.msra.mxu0 0.0
  %707 = vmatprep.subr.mxu0 0.0
  %708 = vmatpush2.msra.mxu0 0.0
  %709 = vmatprep.subr.mxu0 0.0
  %710 = vmatpush2.msra.mxu0 0.0
  %711 = vmatprep.mubr.f32.mxu0 0.0
  %712 = vmatmul.mubr.f32.gmra.mxu0 %v645
  %v713 = vpop.f32.mrf.mxu0
  %v714 = vadd.f32 0.0, %v713
  %v715 = vpop.f32.mrf.mxu0
  %716 = vdwg.mxu0
  %s717 = scalar_lea.vmem [#allocation4], 6
  %v718 = vld [vmem:[%s717] sm:$0x3]
  %s719 = scalar_lea.vmem [#allocation5], 8
  %v720 = vld [vmem:[%s719] sm:$0x3]
  %v722 = vrot.slane %v720, 6
  %v724 = vsel %vm278, %v718, %v722
  %v725 = vadd.f32 %v724, %v714
  %v726 = vxor.u32 %v725, 2147483648
  %v727 = vmul.f32 %v726, 1.442695
  %v728 = vpow.pop %v727
  %v729 = vadd.f32 %v728, 1.0
  %v730 = vrcp.pop %v729
  %v731 = vmul.f32 1.0, %v730
  %v732 = vtanh.pop %v725
  %v733 = vmul.f32 %v731, %v624
  %735 = vrot.lane.b32.xlu0 %v732, 64
  %v736 = vpop.permute.xlu0 %735
  %v738 = vmul.f32 %v731, %v736
  %740 = vrot.lane.b32.xlu0 %v738, 32
  %v741 = vpop.permute.xlu0 %740
  %v743 = vadd.f32 %v733, %v741
  %v744 = vtanh.pop %v743
  %746 = vrot.lane.b32.xlu0 %v744, 64
  %v747 = vpop.permute.xlu0 %746
  %v749 = vmul.f32 %v731, %v747
  %751 = vrot.lane.b32.xlu0 %v749, 32
  %v752 = vpop.permute.xlu0 %751
  %s754 = scalar_lea.vmem %s7, 6
  %755 = vst.msk [vmem:[%s754] sm:$0x3] %vm396, %v752
  %s756 = scalar_lea.vmem %s61, 8
  %757 = vst.msk [vmem:[%s756 - $0x2] sm:$0xc] %vm399, %v752
  %758 = vrot.lane.b32.xlu0 %v749, 64
  %v759 = vpop.permute.xlu0 %758
  %v761 = vsel %vm85, %v752, %v759
  %v762 = vmul.f32 %v279, %v761
  %v764 = vsel %vm282, %v762, 0
  %766 = vmatprep.subr.mxu0 0.0
  %767 = vmatpush1.msra.mxu0 0.0
  %768 = vmatprep.subr.mxu0 0.0
  %769 = vmatpush1.msra.mxu0 0.0
  %770 = vmatprep.subr.mxu0 0.0
  %771 = vmatpush1.msra.mxu0 0.0
  %772 = vmatprep.subr.mxu0 0.0
  %773 = vmatpush1.msra.mxu0 0.0
  %774 = vmatprep.subr.mxu0 0.0
  %775 = vmatpush1.msra.mxu0 0.0
  %776 = vmatprep.subr.mxu0 0.0
  %777 = vmatpush1.msra.mxu0 0.0
  %778 = vmatprep.subr.mxu0 0.0
  %779 = vmatpush1.msra.mxu0 0.0
  %780 = vmatprep.subr.mxu0 0.0
  %781 = vmatpush1.msra.mxu0 0.0
  %782 = vmatprep.subr.mxu0 0.0
  %783 = vmatpush1.msra.mxu0 %v272
  %784 = vmatprep.subr.mxu0 0.0
  %785 = vmatpush1.msra.mxu0 %v271
  %786 = vmatprep.subr.mxu0 0.0
  %787 = vmatpush1.msra.mxu0 %v270
  %788 = vmatprep.subr.mxu0 0.0
  %789 = vmatpush1.msra.mxu0 %v269
  %790 = vmatprep.subr.mxu0 0.0
  %791 = vmatpush1.msra.mxu0 %v268
  %792 = vmatprep.subr.mxu0 0.0
  %793 = vmatpush1.msra.mxu0 %v267
  %794 = vmatprep.subr.mxu0 0.0
  %795 = vmatpush1.msra.mxu0 %v266
  %796 = vmatprep.subr.mxu0 0.0
  %797 = vmatpush1.msra.mxu0 %v265
  %798 = vmatprep.subr.mxu0 0.0
  %799 = vmatpush2.msra.mxu0 0.0
  %800 = vmatprep.subr.mxu0 0.0
  %801 = vmatpush2.msra.mxu0 0.0
  %802 = vmatprep.subr.mxu0 0.0
  %803 = vmatpush2.msra.mxu0 0.0
  %804 = vmatprep.subr.mxu0 0.0
  %805 = vmatpush2.msra.mxu0 0.0
  %806 = vmatprep.subr.mxu0 0.0
  %807 = vmatpush2.msra.mxu0 0.0
  %808 = vmatprep.subr.mxu0 0.0
  %809 = vmatpush2.msra.mxu0 0.0
  %810 = vmatprep.subr.mxu0 0.0
  %811 = vmatpush2.msra.mxu0 0.0
  %812 = vmatprep.subr.mxu0 0.0
  %813 = vmatpush2.msra.mxu0 0.0
  %814 = vmatprep.subr.mxu0 0.0
  %815 = vmatpush2.msra.mxu0 0.0
  %816 = vmatprep.subr.mxu0 0.0
  %817 = vmatpush2.msra.mxu0 0.0
  %818 = vmatprep.subr.mxu0 0.0
  %819 = vmatpush2.msra.mxu0 0.0
  %820 = vmatprep.subr.mxu0 0.0
  %821 = vmatpush2.msra.mxu0 0.0
  %822 = vmatprep.subr.mxu0 0.0
  %823 = vmatpush2.msra.mxu0 0.0
  %824 = vmatprep.subr.mxu0 0.0
  %825 = vmatpush2.msra.mxu0 0.0
  %826 = vmatprep.subr.mxu0 0.0
  %827 = vmatpush2.msra.mxu0 0.0
  %828 = vmatprep.subr.mxu0 0.0
  %829 = vmatpush2.msra.mxu0 0.0
  %830 = vmatprep.mubr.f32.mxu0 0.0
  %831 = vmatmul.mubr.f32.gmra.mxu0 %v764
  %v832 = vpop.f32.mrf.mxu0
  %v833 = vadd.f32 0.0, %v832
  %v834 = vpop.f32.mrf.mxu0
  %835 = vdwg.mxu0
  %s836 = scalar_lea.vmem [#allocation4], 8
  %v837 = vld [vmem:[%s836] sm:$0x3]
  %s838 = scalar_lea.vmem [#allocation5], 6
  %v839 = vld [vmem:[%s838] sm:$0x3]
  %v841 = vrot.slane %v839, 6
  %v843 = vsel %vm278, %v837, %v841
  %v844 = vadd.f32 %v843, %v833
  %v845 = vxor.u32 %v844, 2147483648
  %v846 = vmul.f32 %v845, 1.442695
  %v847 = vpow.pop %v846
  %v848 = vadd.f32 %v847, 1.0
  %v849 = vrcp.pop %v848
  %v850 = vmul.f32 1.0, %v849
  %v851 = vtanh.pop %v844
  %v852 = vmul.f32 %v850, %v743
  %854 = vrot.lane.b32.xlu0 %v851, 64
  %v855 = vpop.permute.xlu0 %854
  %v857 = vmul.f32 %v850, %v855
  %859 = vrot.lane.b32.xlu0 %v857, 32
  %v860 = vpop.permute.xlu0 %859
  %v862 = vadd.f32 %v852, %v860
  %v863 = vtanh.pop %v862
  %865 = vrot.lane.b32.xlu0 %v863, 64
  %v866 = vpop.permute.xlu0 %865
  %v868 = vmul.f32 %v850, %v866
  %870 = vrot.lane.b32.xlu0 %v868, 32
  %v871 = vpop.permute.xlu0 %870
  %s873 = scalar_lea.vmem %s7, 8
  %874 = vst.msk [vmem:[%s873] sm:$0x3] %vm396, %v871
  %s875 = scalar_lea.vmem %s61, 6
  %876 = vst.msk [vmem:[%s875 - $0x2] sm:$0xc] %vm399, %v871
  %877 = vrot.lane.b32.xlu0 %v868, 64
  %v878 = vpop.permute.xlu0 %877
  %v880 = vsel %vm85, %v871, %v878
  %v881 = vmul.f32 %v279, %v880
  %v883 = vsel %vm282, %v881, 0
  %885 = vmatprep.subr.mxu0 0.0
  %886 = vmatpush1.msra.mxu0 0.0
  %887 = vmatprep.subr.mxu0 0.0
  %888 = vmatpush1.msra.mxu0 0.0
  %889 = vmatprep.subr.mxu0 0.0
  %890 = vmatpush1.msra.mxu0 0.0
  %891 = vmatprep.subr.mxu0 0.0
  %892 = vmatpush1.msra.mxu0 0.0
  %893 = vmatprep.subr.mxu0 0.0
  %894 = vmatpush1.msra.mxu0 0.0
  %895 = vmatprep.subr.mxu0 0.0
  %896 = vmatpush1.msra.mxu0 0.0
  %897 = vmatprep.subr.mxu0 0.0
  %898 = vmatpush1.msra.mxu0 0.0
  %899 = vmatprep.subr.mxu0 0.0
  %900 = vmatpush1.msra.mxu0 0.0
  %901 = vmatprep.subr.mxu0 0.0
  %902 = vmatpush1.msra.mxu0 %v272
  %903 = vmatprep.subr.mxu0 0.0
  %904 = vmatpush1.msra.mxu0 %v271
  %905 = vmatprep.subr.mxu0 0.0
  %906 = vmatpush1.msra.mxu0 %v270
  %907 = vmatprep.subr.mxu0 0.0
  %908 = vmatpush1.msra.mxu0 %v269
  %909 = vmatprep.subr.mxu0 0.0
  %910 = vmatpush1.msra.mxu0 %v268
  %911 = vmatprep.subr.mxu0 0.0
  %912 = vmatpush1.msra.mxu0 %v267
  %913 = vmatprep.subr.mxu0 0.0
  %914 = vmatpush1.msra.mxu0 %v266
  %915 = vmatprep.subr.mxu0 0.0
  %916 = vmatpush1.msra.mxu0 %v265
  %917 = vmatprep.subr.mxu0 0.0
  %918 = vmatpush2.msra.mxu0 0.0
  %919 = vmatprep.subr.mxu0 0.0
  %920 = vmatpush2.msra.mxu0 0.0
  %921 = vmatprep.subr.mxu0 0.0
  %922 = vmatpush2.msra.mxu0 0.0
  %923 = vmatprep.subr.mxu0 0.0
  %924 = vmatpush2.msra.mxu0 0.0
  %925 = vmatprep.subr.mxu0 0.0
  %926 = vmatpush2.msra.mxu0 0.0
  %927 = vmatprep.subr.mxu0 0.0
  %928 = vmatpush2.msra.mxu0 0.0
  %929 = vmatprep.subr.mxu0 0.0
  %930 = vmatpush2.msra.mxu0 0.0
  %931 = vmatprep.subr.mxu0 0.0
  %932 = vmatpush2.msra.mxu0 0.0
  %933 = vmatprep.subr.mxu0 0.0
  %934 = vmatpush2.msra.mxu0 0.0
  %935 = vmatprep.subr.mxu0 0.0
  %936 = vmatpush2.msra.mxu0 0.0
  %937 = vmatprep.subr.mxu0 0.0
  %938 = vmatpush2.msra.mxu0 0.0
  %939 = vmatprep.subr.mxu0 0.0
  %940 = vmatpush2.msra.mxu0 0.0
  %941 = vmatprep.subr.mxu0 0.0
  %942 = vmatpush2.msra.mxu0 0.0
  %943 = vmatprep.subr.mxu0 0.0
  %944 = vmatpush2.msra.mxu0 0.0
  %945 = vmatprep.subr.mxu0 0.0
  %946 = vmatpush2.msra.mxu0 0.0
  %947 = vmatprep.subr.mxu0 0.0
  %948 = vmatpush2.msra.mxu0 0.0
  %949 = vmatprep.mubr.f32.mxu0 0.0
  %950 = vmatmul.mubr.f32.gmra.mxu0 %v883
  %v951 = vpop.f32.mrf.mxu0
  %v952 = vadd.f32 0.0, %v951
  %v953 = vpop.f32.mrf.mxu0
  %954 = vdwg.mxu0
  %s955 = scalar_lea.vmem [#allocation4], 10
  %v956 = vld [vmem:[%s955] sm:$0x3]
  %s957 = scalar_lea.vmem [#allocation5], 4
  %v958 = vld [vmem:[%s957] sm:$0x3]
  %v960 = vrot.slane %v958, 6
  %v962 = vsel %vm278, %v956, %v960
  %v963 = vadd.f32 %v962, %v952
  %v964 = vxor.u32 %v963, 2147483648
  %v965 = vmul.f32 %v964, 1.442695
  %v966 = vpow.pop %v965
  %v967 = vadd.f32 %v966, 1.0
  %v968 = vrcp.pop %v967
  %v969 = vmul.f32 1.0, %v968
  %v970 = vtanh.pop %v963
  %v971 = vmul.f32 %v969, %v862
  %973 = vrot.lane.b32.xlu0 %v970, 64
  %v974 = vpop.permute.xlu0 %973
  %v976 = vmul.f32 %v969, %v974
  %978 = vrot.lane.b32.xlu0 %v976, 32
  %v979 = vpop.permute.xlu0 %978
  %v981 = vadd.f32 %v971, %v979
  %v982 = vtanh.pop %v981
  %984 = vrot.lane.b32.xlu0 %v982, 64
  %v985 = vpop.permute.xlu0 %984
  %v987 = vmul.f32 %v969, %v985
  %989 = vrot.lane.b32.xlu0 %v987, 32
  %v990 = vpop.permute.xlu0 %989
  %s992 = scalar_lea.vmem %s7, 10
  %993 = vst.msk [vmem:[%s992] sm:$0x3] %vm396, %v990
  %s994 = scalar_lea.vmem %s61, 4
  %995 = vst.msk [vmem:[%s994 - $0x2] sm:$0xc] %vm399, %v990
  %996 = vrot.lane.b32.xlu0 %v987, 64
  %v997 = vpop.permute.xlu0 %996
  %v999 = vsel %vm85, %v990, %v997
  %v1000 = vmul.f32 %v279, %v999
  %v1002 = vsel %vm282, %v1000, 0
  %1004 = vmatprep.subr.mxu0 0.0
  %1005 = vmatpush1.msra.mxu0 0.0
  %1006 = vmatprep.subr.mxu0 0.0
  %1007 = vmatpush1.msra.mxu0 0.0
  %1008 = vmatprep.subr.mxu0 0.0
  %1009 = vmatpush1.msra.mxu0 0.0
  %1010 = vmatprep.subr.mxu0 0.0
  %1011 = vmatpush1.msra.mxu0 0.0
  %1012 = vmatprep.subr.mxu0 0.0
  %1013 = vmatpush1.msra.mxu0 0.0
  %1014 = vmatprep.subr.mxu0 0.0
  %1015 = vmatpush1.msra.mxu0 0.0
  %1016 = vmatprep.subr.mxu0 0.0
  %1017 = vmatpush1.msra.mxu0 0.0
  %1018 = vmatprep.subr.mxu0 0.0
  %1019 = vmatpush1.msra.mxu0 0.0
  %1020 = vmatprep.subr.mxu0 0.0
  %1021 = vmatpush1.msra.mxu0 %v272
  %1022 = vmatprep.subr.mxu0 0.0
  %1023 = vmatpush1.msra.mxu0 %v271
  %1024 = vmatprep.subr.mxu0 0.0
  %1025 = vmatpush1.msra.mxu0 %v270
  %1026 = vmatprep.subr.mxu0 0.0
  %1027 = vmatpush1.msra.mxu0 %v269
  %1028 = vmatprep.subr.mxu0 0.0
  %1029 = vmatpush1.msra.mxu0 %v268
  %1030 = vmatprep.subr.mxu0 0.0
  %1031 = vmatpush1.msra.mxu0 %v267
  %1032 = vmatprep.subr.mxu0 0.0
  %1033 = vmatpush1.msra.mxu0 %v266
  %1034 = vmatprep.subr.mxu0 0.0
  %1035 = vmatpush1.msra.mxu0 %v265
  %1036 = vmatprep.subr.mxu0 0.0
  %1037 = vmatpush2.msra.mxu0 0.0
  %1038 = vmatprep.subr.mxu0 0.0
  %1039 = vmatpush2.msra.mxu0 0.0
  %1040 = vmatprep.subr.mxu0 0.0
  %1041 = vmatpush2.msra.mxu0 0.0
  %1042 = vmatprep.subr.mxu0 0.0
  %1043 = vmatpush2.msra.mxu0 0.0
  %1044 = vmatprep.subr.mxu0 0.0
  %1045 = vmatpush2.msra.mxu0 0.0
  %1046 = vmatprep.subr.mxu0 0.0
  %1047 = vmatpush2.msra.mxu0 0.0
  %1048 = vmatprep.subr.mxu0 0.0
  %1049 = vmatpush2.msra.mxu0 0.0
  %1050 = vmatprep.subr.mxu0 0.0
  %1051 = vmatpush2.msra.mxu0 0.0
  %1052 = vmatprep.subr.mxu0 0.0
  %1053 = vmatpush2.msra.mxu0 0.0
  %1054 = vmatprep.subr.mxu0 0.0
  %1055 = vmatpush2.msra.mxu0 0.0
  %1056 = vmatprep.subr.mxu0 0.0
  %1057 = vmatpush2.msra.mxu0 0.0
  %1058 = vmatprep.subr.mxu0 0.0
  %1059 = vmatpush2.msra.mxu0 0.0
  %1060 = vmatprep.subr.mxu0 0.0
  %1061 = vmatpush2.msra.mxu0 0.0
  %1062 = vmatprep.subr.mxu0 0.0
  %1063 = vmatpush2.msra.mxu0 0.0
  %1064 = vmatprep.subr.mxu0 0.0
  %1065 = vmatpush2.msra.mxu0 0.0
  %1066 = vmatprep.subr.mxu0 0.0
  %1067 = vmatpush2.msra.mxu0 0.0
  %1068 = vmatprep.mubr.f32.mxu0 0.0
  %1069 = vmatmul.mubr.f32.gmra.mxu0 %v1002
  %v1070 = vpop.f32.mrf.mxu0
  %v1071 = vadd.f32 0.0, %v1070
  %v1072 = vpop.f32.mrf.mxu0
  %1073 = vdwg.mxu0
  %s1074 = scalar_lea.vmem [#allocation4], 12
  %v1075 = vld [vmem:[%s1074] sm:$0x3]
  %s1076 = scalar_lea.vmem [#allocation5], 2
  %v1077 = vld [vmem:[%s1076] sm:$0x3]
  %v1079 = vrot.slane %v1077, 6
  %v1081 = vsel %vm278, %v1075, %v1079
  %v1082 = vadd.f32 %v1081, %v1071
  %v1083 = vxor.u32 %v1082, 2147483648
  %v1084 = vmul.f32 %v1083, 1.442695
  %v1085 = vpow.pop %v1084
  %v1086 = vadd.f32 %v1085, 1.0
  %v1087 = vrcp.pop %v1086
  %v1088 = vmul.f32 1.0, %v1087
  %v1089 = vtanh.pop %v1082
  %v1090 = vmul.f32 %v1088, %v981
  %1092 = vrot.lane.b32.xlu0 %v1089, 64
  %v1093 = vpop.permute.xlu0 %1092
  %v1095 = vmul.f32 %v1088, %v1093
  %1097 = vrot.lane.b32.xlu0 %v1095, 32
  %v1098 = vpop.permute.xlu0 %1097
  %v1100 = vadd.f32 %v1090, %v1098
  %v1101 = vtanh.pop %v1100
  %1103 = vrot.lane.b32.xlu0 %v1101, 64
  %v1104 = vpop.permute.xlu0 %1103
  %v1106 = vmul.f32 %v1088, %v1104
  %1108 = vrot.lane.b32.xlu0 %v1106, 32
  %v1109 = vpop.permute.xlu0 %1108
  %s1111 = scalar_lea.vmem %s7, 12
  %1112 = vst.msk [vmem:[%s1111] sm:$0x3] %vm396, %v1109
  %s1113 = scalar_lea.vmem %s61, 2
  %1114 = vst.msk [vmem:[%s1113 - $0x2] sm:$0xc] %vm399, %v1109
  %1115 = vrot.lane.b32.xlu0 %v1106, 64
  %v1116 = vpop.permute.xlu0 %1115
  %v1118 = vsel %vm85, %v1109, %v1116
  %v1119 = vmul.f32 %v279, %v1118
  %v1121 = vsel %vm282, %v1119, 0
  %1123 = vmatprep.subr.mxu0 0.0
  %1124 = vmatpush1.msra.mxu0 0.0
  %1125 = vmatprep.subr.mxu0 0.0
  %1126 = vmatpush1.msra.mxu0 0.0
  %1127 = vmatprep.subr.mxu0 0.0
  %1128 = vmatpush1.msra.mxu0 0.0
  %1129 = vmatprep.subr.mxu0 0.0
  %1130 = vmatpush1.msra.mxu0 0.0
  %1131 = vmatprep.subr.mxu0 0.0
  %1132 = vmatpush1.msra.mxu0 0.0
  %1133 = vmatprep.subr.mxu0 0.0
  %1134 = vmatpush1.msra.mxu0 0.0
  %1135 = vmatprep.subr.mxu0 0.0
  %1136 = vmatpush1.msra.mxu0 0.0
  %1137 = vmatprep.subr.mxu0 0.0
  %1138 = vmatpush1.msra.mxu0 0.0
  %1139 = vmatprep.subr.mxu0 0.0
  %1140 = vmatpush1.msra.mxu0 %v272
  %1141 = vmatprep.subr.mxu0 0.0
  %1142 = vmatpush1.msra.mxu0 %v271
  %1143 = vmatprep.subr.mxu0 0.0
  %1144 = vmatpush1.msra.mxu0 %v270
  %1145 = vmatprep.subr.mxu0 0.0
  %1146 = vmatpush1.msra.mxu0 %v269
  %1147 = vmatprep.subr.mxu0 0.0
  %1148 = vmatpush1.msra.mxu0 %v268
  %1149 = vmatprep.subr.mxu0 0.0
  %1150 = vmatpush1.msra.mxu0 %v267
  %1151 = vmatprep.subr.mxu0 0.0
  %1152 = vmatpush1.msra.mxu0 %v266
  %1153 = vmatprep.subr.mxu0 0.0
  %1154 = vmatpush1.msra.mxu0 %v265
  %1155 = vmatprep.subr.mxu0 0.0
  %1156 = vmatpush2.msra.mxu0 0.0
  %1157 = vmatprep.subr.mxu0 0.0
  %1158 = vmatpush2.msra.mxu0 0.0
  %1159 = vmatprep.subr.mxu0 0.0
  %1160 = vmatpush2.msra.mxu0 0.0
  %1161 = vmatprep.subr.mxu0 0.0
  %1162 = vmatpush2.msra.mxu0 0.0
  %1163 = vmatprep.subr.mxu0 0.0
  %1164 = vmatpush2.msra.mxu0 0.0
  %1165 = vmatprep.subr.mxu0 0.0
  %1166 = vmatpush2.msra.mxu0 0.0
  %1167 = vmatprep.subr.mxu0 0.0
  %1168 = vmatpush2.msra.mxu0 0.0
  %1169 = vmatprep.subr.mxu0 0.0
  %1170 = vmatpush2.msra.mxu0 0.0
  %1171 = vmatprep.subr.mxu0 0.0
  %1172 = vmatpush2.msra.mxu0 0.0
  %1173 = vmatprep.subr.mxu0 0.0
  %1174 = vmatpush2.msra.mxu0 0.0
  %1175 = vmatprep.subr.mxu0 0.0
  %1176 = vmatpush2.msra.mxu0 0.0
  %1177 = vmatprep.subr.mxu0 0.0
  %1178 = vmatpush2.msra.mxu0 0.0
  %1179 = vmatprep.subr.mxu0 0.0
  %1180 = vmatpush2.msra.mxu0 0.0
  %1181 = vmatprep.subr.mxu0 0.0
  %1182 = vmatpush2.msra.mxu0 0.0
  %1183 = vmatprep.subr.mxu0 0.0
  %1184 = vmatpush2.msra.mxu0 0.0
  %1185 = vmatprep.subr.mxu0 0.0
  %1186 = vmatpush2.msra.mxu0 0.0
  %1187 = vmatprep.mubr.f32.mxu0 0.0
  %1188 = vmatmul.mubr.f32.gmra.mxu0 %v1121
  %v1189 = vpop.f32.mrf.mxu0
  %v1190 = vadd.f32 0.0, %v1189
  %v1191 = vpop.f32.mrf.mxu0
  %1192 = vdwg.mxu0
  %s1193 = scalar_lea.vmem [#allocation4], 14
  %v1194 = vld [vmem:[%s1193] sm:$0x3]
  %v1195 = vld [vmem:[#allocation5] sm:$0x3]
  %v1197 = vrot.slane %v1195, 6
  %v1199 = vsel %vm278, %v1194, %v1197
  %v1200 = vadd.f32 %v1199, %v1190
  %v1201 = vxor.u32 %v1200, 2147483648
  %v1202 = vmul.f32 %v1201, 1.442695
  %v1203 = vpow.pop %v1202
  %v1204 = vadd.f32 %v1203, 1.0
  %v1205 = vrcp.pop %v1204
  %v1206 = vmul.f32 1.0, %v1205
  %v1207 = vtanh.pop %v1200
  %v1208 = vmul.f32 %v1206, %v1100
  %1210 = vrot.lane.b32.xlu0 %v1207, 64
  %v1211 = vpop.permute.xlu0 %1210
  %v1213 = vmul.f32 %v1206, %v1211
  %1215 = vrot.lane.b32.xlu0 %v1213, 32
  %v1216 = vpop.permute.xlu0 %1215
  %v1218 = vadd.f32 %v1208, %v1216
  %v1219 = vtanh.pop %v1218
  %1221 = vrot.lane.b32.xlu0 %v1219, 64
  %v1222 = vpop.permute.xlu0 %1221
  %v1224 = vmul.f32 %v1206, %v1222
  %1226 = vrot.lane.b32.xlu0 %v1224, 32
  %v1227 = vpop.permute.xlu0 %1226
  %s1229 = scalar_lea.vmem %s7, 14
  %1230 = vst.msk [vmem:[%s1229] sm:$0x3] %vm396, %v1227
  %1231 = vst.msk [vmem:[%s61 - $0x2] sm:$0xc] %vm399, %v1227
  %1232 = vrot.lane.b32.xlu0 %v1224, 64
  %v1233 = vpop.permute.xlu0 %1232
  %v1235 = vsel %vm85, %v1227, %v1233
  %v1236 = vmul.f32 %v279, %v1235
  %vm1237 = vcmask 519168
  %1238 = vst.msk [vmem:[#allocation2] sm:$0xf] %vm1237, %v1236
  %1240 = vrot.lane.b32.xlu0 %v1218, 96
  %v1241 = vpop.permute.xlu0 %1240
  %vm1243 = vcmask 257024
  %1244 = vst.msk [vmem:[#allocation3] sm:$0xf] %vm1243, %v1241
  %s1245 = ssub.s32 0, 0
  %s1246 = smul.u32 2, %s1245
  %p1247 = scmp.lt.s32.totalorder %s1246, 1
  %s1248 = scalar_select %p1247, %s1246, 1
  %s1249 = smul.addr %s1248, 8
  %s1250 = scalar_lea.vmem %s8, %s1249
  // Predicated region
  $region34: #{sentence_tagging_bilstm_forward.3} parent=0 // pred_check
    _
  $region35: #{sentence_tagging_bilstm_forward.3} parent=0 // pred_check_branch
    %1252 = sbr.rel (0) target = $region37
  $region36: #{sentence_tagging_bilstm_forward.3} parent=0 // pred_region
    _
  $region37: #{sentence_tagging_bilstm_forward.3} parent=0 // pred_fallthru
    _
  // Predicated region
  $region38: #{sentence_tagging_bilstm_forward.3} parent=0 // pred_check
    _
  $region39: #{sentence_tagging_bilstm_forward.3} parent=0 // pred_check_branch
    %1254 = sbr.rel (0) target = $region41
  $region40: #{sentence_tagging_bilstm_forward.3} parent=0 // pred_region
    %s1255 = ssub.s32 0, 0
    %s1256 = smul.u32 2, %s1255
  $region41: #{sentence_tagging_bilstm_forward.3} parent=0 // pred_fallthru
    _
  // Predicated region
  $region42: #{sentence_tagging_bilstm_forward.3} parent=0 // pred_check
    _
  $region43: #{sentence_tagging_bilstm_forward.3} parent=0 // pred_check_branch
    %1258 = sbr.rel (0) target = $region45
  $region44: #{sentence_tagging_bilstm_forward.3} parent=0 // pred_region
    _
  $region45: #{sentence_tagging_bilstm_forward.3} parent=0 // pred_fallthru
    _
  // Predicated region
  $region46: #{sentence_tagging_bilstm_forward.3} parent=0 // pred_check
    _
  $region47: #{sentence_tagging_bilstm_forward.3} parent=0 // pred_check_branch
    %1260 = sbr.rel (0) target = $region49
  $region48: #{sentence_tagging_bilstm_forward.3} parent=0 // pred_region
    %s1261 = ssub.s32 0, 0
    %s1262 = smul.u32 2, %s1261
    %p1263 = scmp.lt.s32.totalorder %s1262, 1
    %s1264 = scalar_select %p1263, %s1262, 1
    %s1265 = smul.addr %s1264, 8
    %s1266 = scalar_lea.vmem %s8, %s1265
  $region49: #{sentence_tagging_bilstm_forward.3} parent=0 // pred_fallthru
    _

</llo_original>
